<compile_context>
chip_gen: v6e
topology: v6e:2x2x1
jax: 0.10.0
libtpu: 0.0.40
codegen_flags: <defaults>
</compile_context>

<pallas_src>
import functools

import jax
import jax.numpy as jnp
from jax.experimental import pallas as pl
from jax.experimental.pallas import tpu as pltpu


def _res_conv_kernel(xp_ref, w_ref, b_ref, o_ref, *, k_size, pad, strip_rows, width):
    """One (batch, strip) grid step.

    xp_ref: (1, strip_rows + 2*pad, W + 2*pad, Cp)  zero-padded input strip (halo incl.)
    w_ref : (K*K, Cp, Cp)                           conv weights, one (Cin, Cout) slab per tap
    b_ref : (1, Cp)                                 conv bias (channel-padded)
    o_ref : (1, strip_rows, W, Cp)                  output strip (NHWC, channels lane-dense)
    """
    K, TH, W = k_size, strip_rows, width
    Cp = w_ref.shape[-1]

    # Shift-and-accumulate conv: per-tap MXU matmul with f32 accumulation.
    acc = jnp.zeros((TH * W, Cp), dtype=jnp.float32)
    res = None
    center = pad * K + pad
    for t in range(K * K):
        kh, kw = divmod(t, K)
        tap = xp_ref[0, kh:kh + TH, kw:kw + W, :].reshape(TH * W, Cp)
        if t == center:
            res = tap                      # residual == interior of the padded strip (odd K)
        acc = acc + jnp.dot(tap, w_ref[t], preferred_element_type=jnp.float32)

    acc = acc + b_ref[...].astype(jnp.float32)       # bias, broadcast over pixels
    acc = jnp.maximum(acc, 0.0)                      # ReLU
    acc = acc + res.astype(jnp.float32)              # residual add (no extra HBM input)

    o_ref[0] = acc.reshape(TH, W, Cp).astype(o_ref.dtype)


def _vmem_capacity_bytes():
    """Generation-aware VMEM capacity (v5e/v6e: 128 MiB; v7x: 64 MiB per TensorCore)."""
    try:
        cap = int(pltpu.get_tpu_info().vmem_capacity_bytes)
        if cap > 0:
            return cap
    except Exception:   # capability probe only; never changes numerics
        pass
    return 64 << 20     # conservative default (v7x per-core)


def _pick_strip_rows(H, W, Cp, pad, K, in_itemsize, out_itemsize, budget_bytes):
    """Largest strip (full image, or a multiple-of-8 divisor of H) whose per-step working
    set (double-buffered in/out + f32 accumulator + resident weights) fits the budget."""
    def step_bytes(th):
        inp = 2 * (th + 2 * pad) * (W + 2 * pad) * Cp * in_itemsize   # double-buffered input
        out = 2 * th * W * Cp * out_itemsize                          # double-buffered output
        tmp = 2 * th * W * Cp * 4                                     # f32 acc + one shifted tap
        wgt = 2 * K * K * Cp * Cp * in_itemsize + 2 * Cp * 4          # resident weights/bias
        return inp + out + tmp + wgt

    if step_bytes(H) <= budget_bytes:
        return H
    cands = [th for th in range(8, H, 8) if H % th == 0]
    fitting = [th for th in cands if step_bytes(th) <= budget_bytes]
    if fitting:
        # Prefer matmul M = th*W that is a multiple of 256 (v6e/v7x MXU tiles).
        pref = [th for th in fitting if (th * W) % 256 == 0]
        return max(pref) if pref else max(fitting)
    return min(cands) if cands else H


@functools.partial(jax.jit, static_argnames=("k_size", "strip_rows", "mxu_dtype"))
def res_conv_forward(x_nchw, weight, bias, k_size=3, strip_rows=None, mxu_dtype=None):
    """x_nchw: (B, C, H, W); weight: (Cout=C, Cin=C, K, K) [PyTorch layout]; bias: (C,)."""
    B, C, H, W = x_nchw.shape
    K = k_size
    if K % 2 != 1:
        raise ValueError("Res_Conv requires odd kSize (even kSize breaks the residual add).")
    pad = (K - 1) // 2
    Wp = W + 2 * pad
    # Lane-dense channels: pad C up to a multiple of 128 so stores are unmasked vst
    # and the matmul N dim fills the MXU.
    Cp = max(128, ((C + 127) // 128) * 128)

    # Layout glue (fused by XLA under jit): NCHW -> NHWC, conv-halo zero pad + channel
    # zero pad in one jnp.pad.  This padded array is the only activation input.
    xh = jnp.transpose(x_nchw, (0, 2, 3, 1))
    xp = jnp.pad(xh, ((0, 0), (pad, pad), (pad, pad), (0, Cp - C)))
    w = jnp.transpose(weight, (2, 3, 1, 0))                         # (K, K, Cin, Cout)
    w = jnp.pad(w, ((0, 0), (0, 0), (0, Cp - C), (0, Cp - C))).reshape(K * K, Cp, Cp)
    b = jnp.pad(bias, (0, Cp - C)).reshape(1, Cp)

    if mxu_dtype is not None:   # e.g. jnp.bfloat16 on v6e/v7x: 2-3x MXU, half the DMA bytes
        xp = xp.astype(mxu_dtype)
        w = w.astype(mxu_dtype)

    out_dtype = x_nchw.dtype
    cap = _vmem_capacity_bytes()
    if strip_rows is None:
        th = _pick_strip_rows(H, W, Cp, pad, K, xp.dtype.itemsize,
                              jnp.dtype(out_dtype).itemsize, budget_bytes=cap // 3)
    else:
        th = strip_rows
    if H % th != 0 or (th != H and th % 8 != 0):
        th = H
    n_strips = H // th

    kern = functools.partial(_res_conv_kernel, k_size=K, pad=pad, strip_rows=th, width=W)

    if th == H:
        # Single strip per image: plain blocked indexing (path used for small images).
        xp_spec = pl.BlockSpec((1, H + 2 * pad, Wp, Cp), lambda bi, si: (bi, 0, 0, 0))
    else:
        # Overlapping halo strips along H via element-indexed offsets (auto-pipelined).
        xp_spec = pl.BlockSpec((1, pl.Element(th + 2 * pad), Wp, Cp),
                               lambda bi, si: (bi, si * th, 0, 0))

    flops = 2 * B * H * W * Cp * Cp * K * K
    bytes_accessed = (xp.size * xp.dtype.itemsize
                      + B * H * W * Cp * jnp.dtype(out_dtype).itemsize
                      + w.size * w.dtype.itemsize + b.size * b.dtype.itemsize)

    out = pl.pallas_call(
        kern,
        out_shape=jax.ShapeDtypeStruct((B, H, W, Cp), out_dtype),
        grid_spec=pltpu.PrefetchScalarGridSpec(
            num_scalar_prefetch=0,
            grid=(B, n_strips),
            in_specs=[
                xp_spec,
                pl.BlockSpec((K * K, Cp, Cp), lambda bi, si: (0, 0, 0)),   # resident weights
                pl.BlockSpec((1, Cp), lambda bi, si: (0, 0)),              # resident bias
            ],
            out_specs=pl.BlockSpec((1, th, W, Cp), lambda bi, si: (bi, si, 0, 0)),
        ),
        compiler_params=pltpu.CompilerParams(
            dimension_semantics=("parallel", "parallel"),
            vmem_limit_bytes=int(min(cap * 3 // 4, 112 << 20)),
        ),
        cost_estimate=pl.CostEstimate(
            flops=flops, transcendentals=0, bytes_accessed=bytes_accessed),
    )(xp, w, b)

    # Drop the channel padding and return NCHW like the PyTorch module.
    return jnp.transpose(out[..., :C], (0, 3, 1, 2))


def _reference(x_nchw, weight, bias, k_size=3):
    # Pure-JAX reference: Conv2d(padding=(k-1)//2) -> ReLU -> + residual.
    pad = (k_size - 1) // 2
    y = jax.lax.conv_general_dilated(
        x_nchw, weight,
        window_strides=(1, 1),
        padding=((pad, pad), (pad, pad)),
        dimension_numbers=("NCHW", "OIHW", "NCHW"),
    )
    y = jnp.maximum(y + bias.reshape(1, -1, 1, 1), 0.0)
    return y + x_nchw


if __name__ == "__main__":
    B, C, H, W = 2, 4, 16, 16
    K = 3

    key = jax.random.PRNGKey(0)
    kx, kwt, kb = jax.random.split(key, 3)

    x = jax.random.normal(kx, (B, C, H, W), dtype=jnp.float32)
    # Deterministic Kaiming-uniform-like init (PyTorch Conv2d default bound).
    fan_in = C * K * K
    bound = 1.0 / (fan_in ** 0.5)
    weight = jax.random.uniform(kwt, (C, C, K, K), minval=-bound, maxval=bound,
                                dtype=jnp.float32)
    bias = jax.random.uniform(kb, (C,), minval=-bound, maxval=bound, dtype=jnp.float32)

    out = res_conv_forward(x, weight, bias, k_size=K)
    out = jax.block_until_ready(out)

    ref = _reference(x, weight, bias, k_size=K)
    assert out.shape == (B, C, H, W)
    assert jnp.allclose(out, ref, atol=1e-4, rtol=1e-4)

    print("KERNEL_OK")
</pallas_src>

<mosaic_0001>
module attributes {stable_mosaic.version = 11 : i64} {
  func.func @_res_conv_kernel(%arg0: i32, %arg1: i32, %arg2: memref<1x18x18x128xf32, #tpu.memory_space<vmem>>, %arg3: memref<9x128x128xf32, #tpu.memory_space<vmem>>, %arg4: memref<1x128xf32, #tpu.memory_space<vmem>>, %arg5: memref<1x16x16x128xf32, #tpu.memory_space<vmem>>) attributes {dimension_semantics = [#tpu.dimension_semantics<parallel>, #tpu.dimension_semantics<parallel>], iteration_bounds = array<i64: 2, 1>, scalar_prefetch = 0 : i64, scratch_operands = 0 : i64, tpu.core_type = #tpu.core_type<tc>, window_params = [{transform_indices = @transform_0, window_bounds = array<i64: 1, 18, 18, 128>}, {pipeline_mode = #tpu.pipeline_mode<synchronous>, transform_indices = @transform_1, window_bounds = array<i64: 9, 128, 128>}, {pipeline_mode = #tpu.pipeline_mode<synchronous>, transform_indices = @transform_2, window_bounds = array<i64: 1, 128>}, {transform_indices = @transform_3, window_bounds = array<i64: 1, 16, 16, 128>}]} {
    %cst = arith.constant 0.000000e+00 : f32
    %0 = vector.broadcast %cst : f32 to vector<256x128xf32>
    %c0 = arith.constant 0 : index
    %c0_0 = arith.constant 0 : index
    %c0_1 = arith.constant 0 : index
    %c0_2 = arith.constant 0 : index
    %1 = vector.load %arg2[%c0, %c0_0, %c0_1, %c0_2] : memref<1x18x18x128xf32, #tpu.memory_space<vmem>>, vector<1x16x16x128xf32>
    %2 = vector.shape_cast %1 : vector<1x16x16x128xf32> to vector<16x16x128xf32>
    %3 = vector.shape_cast %2 : vector<16x16x128xf32> to vector<256x128xf32>
    %c0_3 = arith.constant 0 : index
    %c0_4 = arith.constant 0 : index
    %c0_5 = arith.constant 0 : index
    %4 = vector.load %arg3[%c0_3, %c0_4, %c0_5] : memref<9x128x128xf32, #tpu.memory_space<vmem>>, vector<1x128x128xf32>
    %5 = vector.shape_cast %4 : vector<1x128x128xf32> to vector<128x128xf32>
    %cst_6 = arith.constant dense<0.000000e+00> : vector<256x128xf32>
    %6 = tpu.matmul %3, %5, %cst_6 {dimension_numbers = #tpu.dot_dimension_numbers<[1], [0], [0], [1], [0, 0, 1, 1], [], []>} : vector<256x128xf32>, vector<128x128xf32>, vector<256x128xf32> -> vector<256x128xf32>
    %7 = arith.addf %0, %6 : vector<256x128xf32>
    %c0_7 = arith.constant 0 : index
    %c0_8 = arith.constant 0 : index
    %c1 = arith.constant 1 : index
    %c0_9 = arith.constant 0 : index
    %8 = vector.load %arg2[%c0_7, %c0_8, %c1, %c0_9] : memref<1x18x18x128xf32, #tpu.memory_space<vmem>>, vector<1x16x16x128xf32>
    %9 = vector.shape_cast %8 : vector<1x16x16x128xf32> to vector<16x16x128xf32>
    %10 = vector.shape_cast %9 : vector<16x16x128xf32> to vector<256x128xf32>
    %c1_10 = arith.constant 1 : index
    %c0_11 = arith.constant 0 : index
    %c0_12 = arith.constant 0 : index
    %11 = vector.load %arg3[%c1_10, %c0_11, %c0_12] : memref<9x128x128xf32, #tpu.memory_space<vmem>>, vector<1x128x128xf32>
    %12 = vector.shape_cast %11 : vector<1x128x128xf32> to vector<128x128xf32>
    %cst_13 = arith.constant dense<0.000000e+00> : vector<256x128xf32>
    %13 = tpu.matmul %10, %12, %cst_13 {dimension_numbers = #tpu.dot_dimension_numbers<[1], [0], [0], [1], [0, 0, 1, 1], [], []>} : vector<256x128xf32>, vector<128x128xf32>, vector<256x128xf32> -> vector<256x128xf32>
    %14 = arith.addf %7, %13 : vector<256x128xf32>
    %c0_14 = arith.constant 0 : index
    %c0_15 = arith.constant 0 : index
    %c2 = arith.constant 2 : index
    %c0_16 = arith.constant 0 : index
    %15 = vector.load %arg2[%c0_14, %c0_15, %c2, %c0_16] : memref<1x18x18x128xf32, #tpu.memory_space<vmem>>, vector<1x16x16x128xf32>
    %16 = vector.shape_cast %15 : vector<1x16x16x128xf32> to vector<16x16x128xf32>
    %17 = vector.shape_cast %16 : vector<16x16x128xf32> to vector<256x128xf32>
    %c2_17 = arith.constant 2 : index
    %c0_18 = arith.constant 0 : index
    %c0_19 = arith.constant 0 : index
    %18 = vector.load %arg3[%c2_17, %c0_18, %c0_19] : memref<9x128x128xf32, #tpu.memory_space<vmem>>, vector<1x128x128xf32>
    %19 = vector.shape_cast %18 : vector<1x128x128xf32> to vector<128x128xf32>
    %cst_20 = arith.constant dense<0.000000e+00> : vector<256x128xf32>
    %20 = tpu.matmul %17, %19, %cst_20 {dimension_numbers = #tpu.dot_dimension_numbers<[1], [0], [0], [1], [0, 0, 1, 1], [], []>} : vector<256x128xf32>, vector<128x128xf32>, vector<256x128xf32> -> vector<256x128xf32>
    %21 = arith.addf %14, %20 : vector<256x128xf32>
    %c0_21 = arith.constant 0 : index
    %c1_22 = arith.constant 1 : index
    %c0_23 = arith.constant 0 : index
    %c0_24 = arith.constant 0 : index
    %22 = vector.load %arg2[%c0_21, %c1_22, %c0_23, %c0_24] : memref<1x18x18x128xf32, #tpu.memory_space<vmem>>, vector<1x16x16x128xf32>
    %23 = vector.shape_cast %22 : vector<1x16x16x128xf32> to vector<16x16x128xf32>
    %24 = vector.shape_cast %23 : vector<16x16x128xf32> to vector<256x128xf32>
    %c3 = arith.constant 3 : index
    %c0_25 = arith.constant 0 : index
    %c0_26 = arith.constant 0 : index
    %25 = vector.load %arg3[%c3, %c0_25, %c0_26] : memref<9x128x128xf32, #tpu.memory_space<vmem>>, vector<1x128x128xf32>
    %26 = vector.shape_cast %25 : vector<1x128x128xf32> to vector<128x128xf32>
    %cst_27 = arith.constant dense<0.000000e+00> : vector<256x128xf32>
    %27 = tpu.matmul %24, %26, %cst_27 {dimension_numbers = #tpu.dot_dimension_numbers<[1], [0], [0], [1], [0, 0, 1, 1], [], []>} : vector<256x128xf32>, vector<128x128xf32>, vector<256x128xf32> -> vector<256x128xf32>
    %28 = arith.addf %21, %27 : vector<256x128xf32>
    %c0_28 = arith.constant 0 : index
    %c1_29 = arith.constant 1 : index
    %c1_30 = arith.constant 1 : index
    %c0_31 = arith.constant 0 : index
    %29 = vector.load %arg2[%c0_28, %c1_29, %c1_30, %c0_31] : memref<1x18x18x128xf32, #tpu.memory_space<vmem>>, vector<1x16x16x128xf32>
    %30 = vector.shape_cast %29 : vector<1x16x16x128xf32> to vector<16x16x128xf32>
    %31 = vector.shape_cast %30 : vector<16x16x128xf32> to vector<256x128xf32>
    %c4 = arith.constant 4 : index
    %c0_32 = arith.constant 0 : index
    %c0_33 = arith.constant 0 : index
    %32 = vector.load %arg3[%c4, %c0_32, %c0_33] : memref<9x128x128xf32, #tpu.memory_space<vmem>>, vector<1x128x128xf32>
    %33 = vector.shape_cast %32 : vector<1x128x128xf32> to vector<128x128xf32>
    %cst_34 = arith.constant dense<0.000000e+00> : vector<256x128xf32>
    %34 = tpu.matmul %31, %33, %cst_34 {dimension_numbers = #tpu.dot_dimension_numbers<[1], [0], [0], [1], [0, 0, 1, 1], [], []>} : vector<256x128xf32>, vector<128x128xf32>, vector<256x128xf32> -> vector<256x128xf32>
    %35 = arith.addf %28, %34 : vector<256x128xf32>
    %c0_35 = arith.constant 0 : index
    %c1_36 = arith.constant 1 : index
    %c2_37 = arith.constant 2 : index
    %c0_38 = arith.constant 0 : index
    %36 = vector.load %arg2[%c0_35, %c1_36, %c2_37, %c0_38] : memref<1x18x18x128xf32, #tpu.memory_space<vmem>>, vector<1x16x16x128xf32>
    %37 = vector.shape_cast %36 : vector<1x16x16x128xf32> to vector<16x16x128xf32>
    %38 = vector.shape_cast %37 : vector<16x16x128xf32> to vector<256x128xf32>
    %c5 = arith.constant 5 : index
    %c0_39 = arith.constant 0 : index
    %c0_40 = arith.constant 0 : index
    %39 = vector.load %arg3[%c5, %c0_39, %c0_40] : memref<9x128x128xf32, #tpu.memory_space<vmem>>, vector<1x128x128xf32>
    %40 = vector.shape_cast %39 : vector<1x128x128xf32> to vector<128x128xf32>
    %cst_41 = arith.constant dense<0.000000e+00> : vector<256x128xf32>
    %41 = tpu.matmul %38, %40, %cst_41 {dimension_numbers = #tpu.dot_dimension_numbers<[1], [0], [0], [1], [0, 0, 1, 1], [], []>} : vector<256x128xf32>, vector<128x128xf32>, vector<256x128xf32> -> vector<256x128xf32>
    %42 = arith.addf %35, %41 : vector<256x128xf32>
    %c0_42 = arith.constant 0 : index
    %c2_43 = arith.constant 2 : index
    %c0_44 = arith.constant 0 : index
    %c0_45 = arith.constant 0 : index
    %43 = vector.load %arg2[%c0_42, %c2_43, %c0_44, %c0_45] : memref<1x18x18x128xf32, #tpu.memory_space<vmem>>, vector<1x16x16x128xf32>
    %44 = vector.shape_cast %43 : vector<1x16x16x128xf32> to vector<16x16x128xf32>
    %45 = vector.shape_cast %44 : vector<16x16x128xf32> to vector<256x128xf32>
    %c6 = arith.constant 6 : index
    %c0_46 = arith.constant 0 : index
    %c0_47 = arith.constant 0 : index
    %46 = vector.load %arg3[%c6, %c0_46, %c0_47] : memref<9x128x128xf32, #tpu.memory_space<vmem>>, vector<1x128x128xf32>
    %47 = vector.shape_cast %46 : vector<1x128x128xf32> to vector<128x128xf32>
    %cst_48 = arith.constant dense<0.000000e+00> : vector<256x128xf32>
    %48 = tpu.matmul %45, %47, %cst_48 {dimension_numbers = #tpu.dot_dimension_numbers<[1], [0], [0], [1], [0, 0, 1, 1], [], []>} : vector<256x128xf32>, vector<128x128xf32>, vector<256x128xf32> -> vector<256x128xf32>
    %49 = arith.addf %42, %48 : vector<256x128xf32>
    %c0_49 = arith.constant 0 : index
    %c2_50 = arith.constant 2 : index
    %c1_51 = arith.constant 1 : index
    %c0_52 = arith.constant 0 : index
    %50 = vector.load %arg2[%c0_49, %c2_50, %c1_51, %c0_52] : memref<1x18x18x128xf32, #tpu.memory_space<vmem>>, vector<1x16x16x128xf32>
    %51 = vector.shape_cast %50 : vector<1x16x16x128xf32> to vector<16x16x128xf32>
    %52 = vector.shape_cast %51 : vector<16x16x128xf32> to vector<256x128xf32>
    %c7 = arith.constant 7 : index
    %c0_53 = arith.constant 0 : index
    %c0_54 = arith.constant 0 : index
    %53 = vector.load %arg3[%c7, %c0_53, %c0_54] : memref<9x128x128xf32, #tpu.memory_space<vmem>>, vector<1x128x128xf32>
    %54 = vector.shape_cast %53 : vector<1x128x128xf32> to vector<128x128xf32>
    %cst_55 = arith.constant dense<0.000000e+00> : vector<256x128xf32>
    %55 = tpu.matmul %52, %54, %cst_55 {dimension_numbers = #tpu.dot_dimension_numbers<[1], [0], [0], [1], [0, 0, 1, 1], [], []>} : vector<256x128xf32>, vector<128x128xf32>, vector<256x128xf32> -> vector<256x128xf32>
    %56 = arith.addf %49, %55 : vector<256x128xf32>
    %c0_56 = arith.constant 0 : index
    %c2_57 = arith.constant 2 : index
    %c2_58 = arith.constant 2 : index
    %c0_59 = arith.constant 0 : index
    %57 = vector.load %arg2[%c0_56, %c2_57, %c2_58, %c0_59] : memref<1x18x18x128xf32, #tpu.memory_space<vmem>>, vector<1x16x16x128xf32>
    %58 = vector.shape_cast %57 : vector<1x16x16x128xf32> to vector<16x16x128xf32>
    %59 = vector.shape_cast %58 : vector<16x16x128xf32> to vector<256x128xf32>
    %c8 = arith.constant 8 : index
    %c0_60 = arith.constant 0 : index
    %c0_61 = arith.constant 0 : index
    %60 = vector.load %arg3[%c8, %c0_60, %c0_61] : memref<9x128x128xf32, #tpu.memory_space<vmem>>, vector<1x128x128xf32>
    %61 = vector.shape_cast %60 : vector<1x128x128xf32> to vector<128x128xf32>
    %cst_62 = arith.constant dense<0.000000e+00> : vector<256x128xf32>
    %62 = tpu.matmul %59, %61, %cst_62 {dimension_numbers = #tpu.dot_dimension_numbers<[1], [0], [0], [1], [0, 0, 1, 1], [], []>} : vector<256x128xf32>, vector<128x128xf32>, vector<256x128xf32> -> vector<256x128xf32>
    %63 = arith.addf %56, %62 : vector<256x128xf32>
    %c0_63 = arith.constant 0 : index
    %c0_64 = arith.constant 0 : index
    %64 = vector.load %arg4[%c0_63, %c0_64] : memref<1x128xf32, #tpu.memory_space<vmem>>, vector<1x128xf32>
    %65 = vector.broadcast %64 : vector<1x128xf32> to vector<256x128xf32>
    %66 = arith.addf %63, %65 : vector<256x128xf32>
    %cst_65 = arith.constant 0.000000e+00 : f32
    %67 = vector.broadcast %cst_65 : f32 to vector<256x128xf32>
    %68 = arith.maximumf %66, %67 : vector<256x128xf32>
    %69 = arith.addf %68, %31 : vector<256x128xf32>
    %70 = vector.shape_cast %69 : vector<256x128xf32> to vector<16x16x128xf32>
    %c0_66 = arith.constant 0 : index
    %c0_67 = arith.constant 0 : index
    %c0_68 = arith.constant 0 : index
    %c0_69 = arith.constant 0 : index
    %71 = vector.load %arg5[%c0_66, %c0_67, %c0_68, %c0_69] : memref<1x16x16x128xf32, #tpu.memory_space<vmem>>, vector<1x16x16x128xf32>
    %72 = vector.shape_cast %71 : vector<1x16x16x128xf32> to vector<16x16x128xf32>
    %73 = vector.shape_cast %70 : vector<16x16x128xf32> to vector<1x16x16x128xf32>
    tpu.vector_store %arg5[%c0_66, %c0_67, %c0_68, %c0_69], %73 {strides = array<i32>} : memref<1x16x16x128xf32, #tpu.memory_space<vmem>>, vector<1x16x16x128xf32>,
    return
  }
  func.func @transform_0(%arg0: i32, %arg1: i32) -> (i32, i32, i32, i32) {
    %c0_i32 = arith.constant 0 : i32
    %c0_i32_0 = arith.constant 0 : i32
    %c0_i32_1 = arith.constant 0 : i32
    %c0_i32_2 = arith.constant 0 : i32
    return %arg0, %c0_i32, %c0_i32_0, %c0_i32_1 : i32, i32, i32, i32
  }
  func.func @transform_1(%arg0: i32, %arg1: i32) -> (i32, i32, i32) {
    %c0_i32 = arith.constant 0 : i32
    %c0_i32_0 = arith.constant 0 : i32
    %c0_i32_1 = arith.constant 0 : i32
    %c0_i32_2 = arith.constant 0 : i32
    return %c0_i32, %c0_i32_0, %c0_i32_1 : i32, i32, i32
  }
  func.func @transform_2(%arg0: i32, %arg1: i32) -> (i32, i32) {
    %c0_i32 = arith.constant 0 : i32
    %c0_i32_0 = arith.constant 0 : i32
    %c0_i32_1 = arith.constant 0 : i32
    return %c0_i32, %c0_i32_0 : i32, i32
  }
  func.func @transform_3(%arg0: i32, %arg1: i32) -> (i32, i32, i32, i32) {
    %c0_i32 = arith.constant 0 : i32
    %c0_i32_0 = arith.constant 0 : i32
    %c0_i32_1 = arith.constant 0 : i32
    return %arg0, %arg1, %c0_i32, %c0_i32_0 : i32, i32, i32, i32
  }
}

</mosaic_0001>

<llo_original>
// kernel: res_conv_forward.1
$region0: #{res_conv_forward.1}
  #allocation0 [shape = 'u32[]', space=smem, size = 0x4, offset = 0x4, fixed_abs, tag = 'smem constant byte address 0x4 - core index']
  #allocation1 [shape = 'u32[144,128]{1,0:T(1,128)}', space=vmem, size = 0x12000, scoped, tag = 'internal scratch']
  %s0 = inlined_call_operand.vmem [shape: f32[2,18,18,128], index: 0, kind: input, shape index: {}]
  %s1 = inlined_call_operand.vmem [shape: f32[9,128,128], index: 1, kind: input, shape index: {}]
  %s2 = inlined_call_operand.vmem [shape: f32[1,128], index: 2, kind: input, shape index: {}]
  %s3 = inlined_call_operand.vmem [shape: f32[2,16,16,128], index: 3, kind: output, shape index: {}]
  %s4 = sld [smem:[#allocation0]]
  $region45: #{res_conv_forward.1} parent=0
    _
  %s6 = ssub.s32 1, %s4
  %s7 = scalar_select 0, %s6, %s4
  loop: start=0, step=1, limit=4
  $region2: #{res_conv_forward.1} parent=0 // loop_pre_header
    _
  $region3: #{res_conv_forward.1} parent=0 // loop_header
    %s9 = sphi 0, %s13
    %p10 = scmp.ge.s32.totalorder %s9, 4
    %s16 = sphi 0, %s28
    %s17 = sphi 0, %s24
    %s18 = sphi 0, %s16
    %s19 = sphi 0, %s17
    %s20 = sphi 0, %s18
    %s21 = sphi 0, %s19
    %s31 = sphi 0, %s33
    %s34 = sphi 0, %s31
    %s35 = sphi 0, %s34
    %s51 = sphi 0, %s35
    %s55 = sphi 0, %s55
    %s57 = sphi 0, %s55
    %s58 = sphi 0, %s57
    %s72 = sphi 0, %s58
    %s76 = sphi 0, %s76
    %s78 = sphi 0, %s76
    %s79 = sphi 0, %s78
    %s93 = sphi 0, %s79
    %s101 = sphi 0, %s103
    %s104 = sphi 0, %s101
    %s105 = sphi 0, %s104
    %s121 = sphi 0, %s105
  $region4: #{res_conv_forward.1} parent=0 // loop_header_branch
    %12 = sbr.rel (%p10) target = $region8
  $region5: #{res_conv_forward.1} parent=0 // loop_body
    %s14 = ssub.s32 %s9, 1
    %s15 = ssub.s32 %s9, 2
    %s22 = sadd.s32 1, %s17
    %p23 = scmp.ge.s32.totalorder %s22, 1
    %s24 = scalar_select %p23, 0, %s22
    %s25 = sadd.s32 1, %s16
    %s26 = scalar_select %p23, %s25, %s16
    %p27 = scmp.ge.s32.totalorder %s26, 2
    %s28 = scalar_select %p27, 0, %s26
    %s29 = ssub.s32 %s16, %s28
    %p30 = scmp.eq.s32.totalorder %s29, 0
    %s32 = sadd.s32 %s31, 1
    %s33 = scalar_select %p30, %s31, %s32
    %p36 = pneg %p30
    %p37 = scmp.eq.s32.totalorder %s9, 1
    %p38 = por %p36, %p37
    %p39 = scmp.ne.s32.totalorder %s31, %s34
    %p40 = scmp.eq.s32.totalorder %s9, 0
    %p41 = por %p39, %p40
    %p42 = scmp.ne.s32.totalorder %s31, %s34
    %p43 = scmp.eq.s32.totalorder %s14, 1
    %p44 = por %p42, %p43
    %p45 = scmp.ne.s32.totalorder %s34, %s35
    %p46 = scmp.eq.s32.totalorder %s14, 0
    %p47 = por %p45, %p46
    %p48 = scmp.ne.s32.totalorder %s34, %s35
    %p49 = scmp.eq.s32.totalorder %s15, 1
    %p50 = por %p48, %p49
    %p52 = scmp.ne.s32.totalorder %s35, %s51
    %p53 = scmp.eq.s32.totalorder %s15, 0
    %p54 = por %p52, %p53
    %s56 = sadd.s32 %s55, 1
    %p59 = scmp.eq.s32.totalorder %s9, 1
    %p60 = scmp.ne.s32.totalorder %s55, %s57
    %p61 = scmp.eq.s32.totalorder %s9, 0
    %p62 = por %p60, %p61
    %p63 = scmp.ne.s32.totalorder %s55, %s57
    %p64 = scmp.eq.s32.totalorder %s14, 1
    %p65 = por %p63, %p64
    %p66 = scmp.ne.s32.totalorder %s57, %s58
    %p67 = scmp.eq.s32.totalorder %s14, 0
    %p68 = por %p66, %p67
    %p69 = scmp.ne.s32.totalorder %s57, %s58
    %p70 = scmp.eq.s32.totalorder %s15, 1
    %p71 = por %p69, %p70
    %p73 = scmp.ne.s32.totalorder %s58, %s72
    %p74 = scmp.eq.s32.totalorder %s15, 0
    %p75 = por %p73, %p74
    %s77 = sadd.s32 %s76, 1
    %p80 = scmp.eq.s32.totalorder %s9, 1
    %p81 = scmp.ne.s32.totalorder %s76, %s78
    %p82 = scmp.eq.s32.totalorder %s9, 0
    %p83 = por %p81, %p82
    %p84 = scmp.ne.s32.totalorder %s76, %s78
    %p85 = scmp.eq.s32.totalorder %s14, 1
    %p86 = por %p84, %p85
    %p87 = scmp.ne.s32.totalorder %s78, %s79
    %p88 = scmp.eq.s32.totalorder %s14, 0
    %p89 = por %p87, %p88
    %p90 = scmp.ne.s32.totalorder %s78, %s79
    %p91 = scmp.eq.s32.totalorder %s15, 1
    %p92 = por %p90, %p91
    %p94 = scmp.ne.s32.totalorder %s79, %s93
    %p95 = scmp.eq.s32.totalorder %s15, 0
    %p96 = por %p94, %p95
    %s97 = ssub.s32 %s16, %s28
    %s98 = ssub.s32 %s17, %s24
    %s99 = sor.u32 %s97, %s98
    %p100 = scmp.eq.s32.totalorder %s99, 0
    %s102 = sadd.s32 %s101, 1
    %s103 = scalar_select %p100, %s101, %s102
    %p106 = pneg %p100
    %p107 = scmp.eq.s32.totalorder %s9, 1
    %p108 = por %p106, %p107
    %p109 = scmp.ne.s32.totalorder %s101, %s104
    %p110 = scmp.eq.s32.totalorder %s9, 0
    %p111 = por %p109, %p110
    %p112 = scmp.ne.s32.totalorder %s101, %s104
    %p113 = scmp.eq.s32.totalorder %s14, 1
    %p114 = por %p112, %p113
    %p115 = scmp.ne.s32.totalorder %s104, %s105
    %p116 = scmp.eq.s32.totalorder %s14, 0
    %p117 = por %p115, %p116
    %p118 = scmp.ne.s32.totalorder %s104, %s105
    %p119 = scmp.eq.s32.totalorder %s15, 1
    %p120 = por %p118, %p119
    %p122 = scmp.ne.s32.totalorder %s105, %s121
    %p123 = scmp.eq.s32.totalorder %s15, 0
    %p124 = por %p122, %p123
    %p125 = scmp.le.s32.totalorder 1, %s9
    %p126 = scmp.lt.s32.totalorder %s9, 3
    %p127 = pnand %p125, %p126
    %p128 = pneg %p127
    // Predicated region
    $region9: #{res_conv_forward.1} parent=5 // pred_check
      _
    $region10: #{res_conv_forward.1} parent=5 // pred_check_branch
      %130 = sbr.rel (%p127) target = $region12
    $region11: #{res_conv_forward.1} parent=5 // pred_region
      %s131 = ssub.s32 %s9, 1
      // Predicated region
      $region13: #{res_conv_forward.1} parent=11 // pred_check
        %p132 = pneg %p68
      $region14: #{res_conv_forward.1} parent=11 // pred_check_branch
        %134 = sbr.rel (%p132) target = $region16
      $region15: #{res_conv_forward.1} parent=11 // pred_region
        _
      $region16: #{res_conv_forward.1} parent=11 // pred_fallthru
        _
      // Predicated region
      $region17: #{res_conv_forward.1} parent=11 // pred_check
        %p135 = pneg %p89
      $region18: #{res_conv_forward.1} parent=11 // pred_check_branch
        %137 = sbr.rel (%p135) target = $region20
      $region19: #{res_conv_forward.1} parent=11 // pred_region
        _
      $region20: #{res_conv_forward.1} parent=11 // pred_fallthru
        _
    $region12: #{res_conv_forward.1} parent=5 // pred_fallthru
      _
    %p138 = scmp.lt.s32.totalorder %s9, 2
    // Predicated region
    $region21: #{res_conv_forward.1} parent=5 // pred_check
      %p139 = pneg %p138
    $region22: #{res_conv_forward.1} parent=5 // pred_check_branch
      %141 = sbr.rel (%p139) target = $region24
    $region23: #{res_conv_forward.1} parent=5 // pred_region
      // Predicated region
      $region25: #{res_conv_forward.1} parent=23 // pred_check
        %p142 = pneg %p41
      $region26: #{res_conv_forward.1} parent=23 // pred_check_branch
        %144 = sbr.rel (%p142) target = $region28
      $region27: #{res_conv_forward.1} parent=23 // pred_region
        %p145 = scmp.lt.s32.totalorder %s16, 1
        %s146 = scalar_select %p145, %s16, 1
        %s147 = smul.addr %s146, 54
        %s148 = smul.addr %s147, 8
        %s149 = scalar_lea.vmem %s0, %s148
      $region28: #{res_conv_forward.1} parent=23 // pred_fallthru
        _
    $region24: #{res_conv_forward.1} parent=5 // pred_fallthru
      _
    %p150 = scmp.le.s32.totalorder 1, %s9
    %p151 = scmp.lt.s32.totalorder %s9, 3
    %p152 = pnand %p150, %p151
    %p153 = pneg %p152
    // Predicated region
    $region29: #{res_conv_forward.1} parent=5 // pred_check
      _
    $region30: #{res_conv_forward.1} parent=5 // pred_check_branch
      %155 = sbr.rel (%p152) target = $region32
    $region31: #{res_conv_forward.1} parent=5 // pred_region
      %s156 = ssub.s32 %s9, 1
      %p157 = scmp.lt.s32.totalorder %s18, 1
      %s158 = scalar_select %p157, %s18, 1
      %s159 = smul.addr %s158, 54
      %s160 = smul.addr %s159, 8
      %s161 = scalar_lea.vmem %s0, %s160
      %p162 = pneg %p47
      %p163 = pneg %p44
      %p164 = pneg %p68
      %p165 = pneg %p65
      %p166 = pneg %p89
      %p167 = pneg %p86
      %p168 = pneg %p117
      %p169 = pneg %p114
      %s170 = smul.u32 16, %s19
      %p171 = scmp.lt.s32.totalorder %s18, 1
      %s172 = scalar_select %p171, %s18, 1
      %p173 = scmp.lt.s32.totalorder %s170, 15
      %s174 = scalar_select %p173, %s170, 15
      %s175 = smul.addr %s174, 2
      %s176 = smul.addr %s172, 32
      %s177 = sadd.s32 %s175, %s176
      %s178 = smul.addr %s177, 8
      %s179 = scalar_lea.vmem %s3, %s178
      %p180 = scmp.lt.s32.totalorder %s18, 1
      %s181 = scalar_select %p180, %s18, 1
      %s182 = smul.addr %s181, 54
      %s183 = smul.addr %s182, 8
      %s184 = scalar_lea.vmem %s0, %s183
      %s185 = smul.u32 16, %s19
      %p186 = scmp.lt.s32.totalorder %s18, 1
      %s187 = scalar_select %p186, %s18, 1
      %p188 = scmp.lt.s32.totalorder %s185, 15
      %s189 = scalar_select %p188, %s185, 15
      %s190 = smul.addr %s189, 2
      %s191 = smul.addr %s187, 32
      %s192 = sadd.s32 %s190, %s191
      %s193 = smul.addr %s192, 8
      %s194 = scalar_lea.vmem %s3, %s193
      %s195 = smul.u32 16, %s19
      %v196 = vld [vmem:[%s184] sm:$0xff]
      %v197 = vld [vmem:[%s184 + $0x8] sm:$0xff]
      %v198 = vld [vmem:[%s184 + $0x18] sm:$0xff]
      %v199 = vld [vmem:[%s184 + $0x20] sm:$0xff]
      %v200 = vld [vmem:[%s184 + $0x30] sm:$0xff]
      %v201 = vld [vmem:[%s184 + $0x38] sm:$0xff]
      %v202 = vld [vmem:[%s184 + $0x48] sm:$0xff]
      %v203 = vld [vmem:[%s184 + $0x50] sm:$0xff]
      %v204 = vld [vmem:[%s184 + $0x60] sm:$0xff]
      %v205 = vld [vmem:[%s184 + $0x68] sm:$0xff]
      %v206 = vld [vmem:[%s184 + $0x78] sm:$0xff]
      %v207 = vld [vmem:[%s184 + $0x80] sm:$0xff]
      %v208 = vld [vmem:[%s184 + $0x90] sm:$0xff]
      %v209 = vld [vmem:[%s184 + $0x98] sm:$0xff]
      %v210 = vld [vmem:[%s184 + $0xa8] sm:$0xff]
      %v211 = vld [vmem:[%s184 + $0xb0] sm:$0xff]
      %v212 = vld [vmem:[%s184 + $0xc0] sm:$0xff]
      %v213 = vld [vmem:[%s184 + $0xc8] sm:$0xff]
      %v214 = vld [vmem:[%s184 + $0xd8] sm:$0xff]
      %v215 = vld [vmem:[%s184 + $0xe0] sm:$0xff]
      %v216 = vld [vmem:[%s184 + $0xf0] sm:$0xff]
      %v217 = vld [vmem:[%s184 + $0xf8] sm:$0xff]
      %v218 = vld [vmem:[%s184 + $0x108] sm:$0xff]
      %v219 = vld [vmem:[%s184 + $0x110] sm:$0xff]
      %v220 = vld [vmem:[%s184 + $0x120] sm:$0xff]
      %v221 = vld [vmem:[%s184 + $0x128] sm:$0xff]
      %v222 = vld [vmem:[%s184 + $0x138] sm:$0xff]
      %v223 = vld [vmem:[%s184 + $0x140] sm:$0xff]
      %v224 = vld [vmem:[%s184 + $0x150] sm:$0xff]
      %v225 = vld [vmem:[%s184 + $0x158] sm:$0xff]
      %v226 = vld [vmem:[%s184 + $0x168] sm:$0xff]
      %v227 = vld [vmem:[%s184 + $0x170] sm:$0xff]
      %v228 = vld [vmem:[%s1] sm:$0xff]
      %v229 = vld [vmem:[%s1 + $0x8] sm:$0xff]
      %v230 = vld [vmem:[%s1 + $0x10] sm:$0xff]
      %v231 = vld [vmem:[%s1 + $0x18] sm:$0xff]
      %v232 = vld [vmem:[%s1 + $0x20] sm:$0xff]
      %v233 = vld [vmem:[%s1 + $0x28] sm:$0xff]
      %v234 = vld [vmem:[%s1 + $0x30] sm:$0xff]
      %v235 = vld [vmem:[%s1 + $0x38] sm:$0xff]
      %v236 = vld [vmem:[%s1 + $0x40] sm:$0xff]
      %v237 = vld [vmem:[%s1 + $0x48] sm:$0xff]
      %v238 = vld [vmem:[%s1 + $0x50] sm:$0xff]
      %v239 = vld [vmem:[%s1 + $0x58] sm:$0xff]
      %v240 = vld [vmem:[%s1 + $0x60] sm:$0xff]
      %v241 = vld [vmem:[%s1 + $0x68] sm:$0xff]
      %v242 = vld [vmem:[%s1 + $0x70] sm:$0xff]
      %v243 = vld [vmem:[%s1 + $0x78] sm:$0xff]
      %v244 = vld [vmem:[%s184 + $0x1] sm:$0xff]
      %v245 = vld [vmem:[%s184 + $0x9] sm:$0xff]
      %v246 = vld [vmem:[%s184 + $0x19] sm:$0xff]
      %v247 = vld [vmem:[%s184 + $0x21] sm:$0xff]
      %v248 = vld [vmem:[%s184 + $0x31] sm:$0xff]
      %v249 = vld [vmem:[%s184 + $0x39] sm:$0xff]
      %v250 = vld [vmem:[%s184 + $0x49] sm:$0xff]
      %v251 = vld [vmem:[%s184 + $0x51] sm:$0xff]
      %v252 = vld [vmem:[%s184 + $0x61] sm:$0xff]
      %v253 = vld [vmem:[%s184 + $0x69] sm:$0xff]
      %v254 = vld [vmem:[%s184 + $0x79] sm:$0xff]
      %v255 = vld [vmem:[%s184 + $0x81] sm:$0xff]
      %v256 = vld [vmem:[%s184 + $0x91] sm:$0xff]
      %v257 = vld [vmem:[%s184 + $0x99] sm:$0xff]
      %v258 = vld [vmem:[%s184 + $0xa9] sm:$0xff]
      %v259 = vld [vmem:[%s184 + $0xb1] sm:$0xff]
      %v260 = vld [vmem:[%s184 + $0xc1] sm:$0xff]
      %v261 = vld [vmem:[%s184 + $0xc9] sm:$0xff]
      %v262 = vld [vmem:[%s184 + $0xd9] sm:$0xff]
      %v263 = vld [vmem:[%s184 + $0xe1] sm:$0xff]
      %v264 = vld [vmem:[%s184 + $0xf1] sm:$0xff]
      %v265 = vld [vmem:[%s184 + $0xf9] sm:$0xff]
      %v266 = vld [vmem:[%s184 + $0x109] sm:$0xff]
      %v267 = vld [vmem:[%s184 + $0x111] sm:$0xff]
      %v268 = vld [vmem:[%s184 + $0x121] sm:$0xff]
      %v269 = vld [vmem:[%s184 + $0x129] sm:$0xff]
      %v270 = vld [vmem:[%s184 + $0x139] sm:$0xff]
      %v271 = vld [vmem:[%s184 + $0x141] sm:$0xff]
      %v272 = vld [vmem:[%s184 + $0x151] sm:$0xff]
      %v273 = vld [vmem:[%s184 + $0x159] sm:$0xff]
      %v274 = vld [vmem:[%s184 + $0x169] sm:$0xff]
      %v275 = vld [vmem:[%s184 + $0x171] sm:$0xff]
      %s276 = scalar_lea.vmem %s1, 128
      %v277 = vld [vmem:[%s276] sm:$0xff]
      %v278 = vld [vmem:[%s276 + $0x8] sm:$0xff]
      %v279 = vld [vmem:[%s276 + $0x10] sm:$0xff]
      %v280 = vld [vmem:[%s276 + $0x18] sm:$0xff]
      %v281 = vld [vmem:[%s276 + $0x20] sm:$0xff]
      %v282 = vld [vmem:[%s276 + $0x28] sm:$0xff]
      %v283 = vld [vmem:[%s276 + $0x30] sm:$0xff]
      %v284 = vld [vmem:[%s276 + $0x38] sm:$0xff]
      %v285 = vld [vmem:[%s276 + $0x40] sm:$0xff]
      %v286 = vld [vmem:[%s276 + $0x48] sm:$0xff]
      %v287 = vld [vmem:[%s276 + $0x50] sm:$0xff]
      %v288 = vld [vmem:[%s276 + $0x58] sm:$0xff]
      %v289 = vld [vmem:[%s276 + $0x60] sm:$0xff]
      %v290 = vld [vmem:[%s276 + $0x68] sm:$0xff]
      %v291 = vld [vmem:[%s276 + $0x70] sm:$0xff]
      %v292 = vld [vmem:[%s276 + $0x78] sm:$0xff]
      %293 = vmatprep.subr.mxu0 0.0
      %294 = vmatpush1.msra.mxu0 %v292
      %295 = vmatprep.subr.mxu0 0.0
      %296 = vmatpush1.msra.mxu0 %v291
      %297 = vmatprep.subr.mxu0 0.0
      %298 = vmatpush1.msra.mxu0 %v290
      %299 = vmatprep.subr.mxu0 0.0
      %300 = vmatpush1.msra.mxu0 %v289
      %301 = vmatprep.subr.mxu0 0.0
      %302 = vmatpush1.msra.mxu0 %v288
      %303 = vmatprep.subr.mxu0 0.0
      %304 = vmatpush1.msra.mxu0 %v287
      %305 = vmatprep.subr.mxu0 0.0
      %306 = vmatpush1.msra.mxu0 %v286
      %307 = vmatprep.subr.mxu0 0.0
      %308 = vmatpush1.msra.mxu0 %v285
      %309 = vmatprep.subr.mxu0 0.0
      %310 = vmatpush1.msra.mxu0 %v284
      %311 = vmatprep.subr.mxu0 0.0
      %312 = vmatpush1.msra.mxu0 %v283
      %313 = vmatprep.subr.mxu0 0.0
      %314 = vmatpush1.msra.mxu0 %v282
      %315 = vmatprep.subr.mxu0 0.0
      %316 = vmatpush1.msra.mxu0 %v281
      %317 = vmatprep.subr.mxu0 0.0
      %318 = vmatpush1.msra.mxu0 %v280
      %319 = vmatprep.subr.mxu0 0.0
      %320 = vmatpush1.msra.mxu0 %v279
      %321 = vmatprep.subr.mxu0 0.0
      %322 = vmatpush1.msra.mxu0 %v278
      %323 = vmatprep.subr.mxu0 0.0
      %324 = vmatpush1.msra.mxu0 %v277
      %325 = vmatprep.subr.mxu0 0.0
      %326 = vmatpush2.msra.mxu0 0.0
      %327 = vmatprep.subr.mxu0 0.0
      %328 = vmatpush2.msra.mxu0 0.0
      %329 = vmatprep.subr.mxu0 0.0
      %330 = vmatpush2.msra.mxu0 0.0
      %331 = vmatprep.subr.mxu0 0.0
      %332 = vmatpush2.msra.mxu0 0.0
      %333 = vmatprep.subr.mxu0 0.0
      %334 = vmatpush2.msra.mxu0 0.0
      %335 = vmatprep.subr.mxu0 0.0
      %336 = vmatpush2.msra.mxu0 0.0
      %337 = vmatprep.subr.mxu0 0.0
      %338 = vmatpush2.msra.mxu0 0.0
      %339 = vmatprep.subr.mxu0 0.0
      %340 = vmatpush2.msra.mxu0 0.0
      %341 = vmatprep.subr.mxu0 0.0
      %342 = vmatpush2.msra.mxu0 0.0
      %343 = vmatprep.subr.mxu0 0.0
      %344 = vmatpush2.msra.mxu0 0.0
      %345 = vmatprep.subr.mxu0 0.0
      %346 = vmatpush2.msra.mxu0 0.0
      %347 = vmatprep.subr.mxu0 0.0
      %348 = vmatpush2.msra.mxu0 0.0
      %349 = vmatprep.subr.mxu0 0.0
      %350 = vmatpush2.msra.mxu0 0.0
      %351 = vmatprep.subr.mxu0 0.0
      %352 = vmatpush2.msra.mxu0 0.0
      %353 = vmatprep.subr.mxu0 0.0
      %354 = vmatpush2.msra.mxu0 0.0
      %355 = vmatprep.subr.mxu0 0.0
      %356 = vmatpush2.msra.mxu0 0.0
      %357 = vmatprep.mubr.f32.mxu0 0.0
      %358 = vmatmul.mubr.f32.gmra.mxu0 %v244
      %v359 = vpop.f32.mrf.mxu0
      %v360 = vadd.f32 0.0, %v359
      %v361 = vpop.f32.mrf.mxu0
      %362 = vmatprep.mubr.f32.mxu0 0.0
      %363 = vmatmul.mubr.f32.gmra.mxu0 %v245
      %v364 = vpop.f32.mrf.mxu0
      %v365 = vadd.f32 0.0, %v364
      %v366 = vpop.f32.mrf.mxu0
      %367 = vmatprep.mubr.f32.mxu0 0.0
      %368 = vmatmul.mubr.f32.gmra.mxu0 %v246
      %v369 = vpop.f32.mrf.mxu0
      %v370 = vadd.f32 0.0, %v369
      %v371 = vpop.f32.mrf.mxu0
      %372 = vmatprep.mubr.f32.mxu0 0.0
      %373 = vmatmul.mubr.f32.gmra.mxu0 %v247
      %v374 = vpop.f32.mrf.mxu0
      %v375 = vadd.f32 0.0, %v374
      %v376 = vpop.f32.mrf.mxu0
      %377 = vmatprep.mubr.f32.mxu0 0.0
      %378 = vmatmul.mubr.f32.gmra.mxu0 %v248
      %v379 = vpop.f32.mrf.mxu0
      %v380 = vadd.f32 0.0, %v379
      %v381 = vpop.f32.mrf.mxu0
      %382 = vmatprep.mubr.f32.mxu0 0.0
      %383 = vmatmul.mubr.f32.gmra.mxu0 %v249
      %v384 = vpop.f32.mrf.mxu0
      %v385 = vadd.f32 0.0, %v384
      %v386 = vpop.f32.mrf.mxu0
      %387 = vmatprep.mubr.f32.mxu0 0.0
      %388 = vmatmul.mubr.f32.gmra.mxu0 %v250
      %v389 = vpop.f32.mrf.mxu0
      %v390 = vadd.f32 0.0, %v389
      %v391 = vpop.f32.mrf.mxu0
      %392 = vmatprep.mubr.f32.mxu0 0.0
      %393 = vmatmul.mubr.f32.gmra.mxu0 %v251
      %v394 = vpop.f32.mrf.mxu0
      %v395 = vadd.f32 0.0, %v394
      %v396 = vpop.f32.mrf.mxu0
      %397 = vmatprep.mubr.f32.mxu0 0.0
      %398 = vmatmul.mubr.f32.gmra.mxu0 %v252
      %v399 = vpop.f32.mrf.mxu0
      %v400 = vadd.f32 0.0, %v399
      %v401 = vpop.f32.mrf.mxu0
      %402 = vmatprep.mubr.f32.mxu0 0.0
      %403 = vmatmul.mubr.f32.gmra.mxu0 %v253
      %v404 = vpop.f32.mrf.mxu0
      %v405 = vadd.f32 0.0, %v404
      %v406 = vpop.f32.mrf.mxu0
      %407 = vmatprep.mubr.f32.mxu0 0.0
      %408 = vmatmul.mubr.f32.gmra.mxu0 %v254
      %v409 = vpop.f32.mrf.mxu0
      %v410 = vadd.f32 0.0, %v409
      %v411 = vpop.f32.mrf.mxu0
      %412 = vmatprep.mubr.f32.mxu0 0.0
      %413 = vmatmul.mubr.f32.gmra.mxu0 %v255
      %v414 = vpop.f32.mrf.mxu0
      %v415 = vadd.f32 0.0, %v414
      %v416 = vpop.f32.mrf.mxu0
      %417 = vmatprep.mubr.f32.mxu0 0.0
      %418 = vmatmul.mubr.f32.gmra.mxu0 %v256
      %v419 = vpop.f32.mrf.mxu0
      %v420 = vadd.f32 0.0, %v419
      %v421 = vpop.f32.mrf.mxu0
      %422 = vmatprep.mubr.f32.mxu0 0.0
      %423 = vmatmul.mubr.f32.gmra.mxu0 %v257
      %v424 = vpop.f32.mrf.mxu0
      %v425 = vadd.f32 0.0, %v424
      %v426 = vpop.f32.mrf.mxu0
      %427 = vmatprep.mubr.f32.mxu0 0.0
      %428 = vmatmul.mubr.f32.gmra.mxu0 %v258
      %v429 = vpop.f32.mrf.mxu0
      %v430 = vadd.f32 0.0, %v429
      %v431 = vpop.f32.mrf.mxu0
      %432 = vmatprep.mubr.f32.mxu0 0.0
      %433 = vmatmul.mubr.f32.gmra.mxu0 %v259
      %v434 = vpop.f32.mrf.mxu0
      %v435 = vadd.f32 0.0, %v434
      %v436 = vpop.f32.mrf.mxu0
      %437 = vmatprep.mubr.f32.mxu0 0.0
      %438 = vmatmul.mubr.f32.gmra.mxu0 %v260
      %v439 = vpop.f32.mrf.mxu0
      %v440 = vadd.f32 0.0, %v439
      %v441 = vpop.f32.mrf.mxu0
      %442 = vmatprep.mubr.f32.mxu0 0.0
      %443 = vmatmul.mubr.f32.gmra.mxu0 %v261
      %v444 = vpop.f32.mrf.mxu0
      %v445 = vadd.f32 0.0, %v444
      %v446 = vpop.f32.mrf.mxu0
      %447 = vmatprep.mubr.f32.mxu0 0.0
      %448 = vmatmul.mubr.f32.gmra.mxu0 %v262
      %v449 = vpop.f32.mrf.mxu0
      %v450 = vadd.f32 0.0, %v449
      %v451 = vpop.f32.mrf.mxu0
      %452 = vmatprep.mubr.f32.mxu0 0.0
      %453 = vmatmul.mubr.f32.gmra.mxu0 %v263
      %v454 = vpop.f32.mrf.mxu0
      %v455 = vadd.f32 0.0, %v454
      %v456 = vpop.f32.mrf.mxu0
      %457 = vmatprep.mubr.f32.mxu0 0.0
      %458 = vmatmul.mubr.f32.gmra.mxu0 %v264
      %v459 = vpop.f32.mrf.mxu0
      %v460 = vadd.f32 0.0, %v459
      %v461 = vpop.f32.mrf.mxu0
      %462 = vmatprep.mubr.f32.mxu0 0.0
      %463 = vmatmul.mubr.f32.gmra.mxu0 %v265
      %v464 = vpop.f32.mrf.mxu0
      %v465 = vadd.f32 0.0, %v464
      %v466 = vpop.f32.mrf.mxu0
      %467 = vmatprep.mubr.f32.mxu0 0.0
      %468 = vmatmul.mubr.f32.gmra.mxu0 %v266
      %v469 = vpop.f32.mrf.mxu0
      %v470 = vadd.f32 0.0, %v469
      %v471 = vpop.f32.mrf.mxu0
      %472 = vmatprep.mubr.f32.mxu0 0.0
      %473 = vmatmul.mubr.f32.gmra.mxu0 %v267
      %v474 = vpop.f32.mrf.mxu0
      %v475 = vadd.f32 0.0, %v474
      %v476 = vpop.f32.mrf.mxu0
      %477 = vmatprep.mubr.f32.mxu0 0.0
      %478 = vmatmul.mubr.f32.gmra.mxu0 %v268
      %v479 = vpop.f32.mrf.mxu0
      %v480 = vadd.f32 0.0, %v479
      %v481 = vpop.f32.mrf.mxu0
      %482 = vmatprep.mubr.f32.mxu0 0.0
      %483 = vmatmul.mubr.f32.gmra.mxu0 %v269
      %v484 = vpop.f32.mrf.mxu0
      %v485 = vadd.f32 0.0, %v484
      %v486 = vpop.f32.mrf.mxu0
      %487 = vmatprep.mubr.f32.mxu0 0.0
      %488 = vmatmul.mubr.f32.gmra.mxu0 %v270
      %v489 = vpop.f32.mrf.mxu0
      %v490 = vadd.f32 0.0, %v489
      %v491 = vpop.f32.mrf.mxu0
      %492 = vmatprep.mubr.f32.mxu0 0.0
      %493 = vmatmul.mubr.f32.gmra.mxu0 %v271
      %v494 = vpop.f32.mrf.mxu0
      %v495 = vadd.f32 0.0, %v494
      %v496 = vpop.f32.mrf.mxu0
      %497 = vmatprep.mubr.f32.mxu0 0.0
      %498 = vmatmul.mubr.f32.gmra.mxu0 %v272
      %v499 = vpop.f32.mrf.mxu0
      %v500 = vadd.f32 0.0, %v499
      %v501 = vpop.f32.mrf.mxu0
      %502 = vmatprep.mubr.f32.mxu0 0.0
      %503 = vmatmul.mubr.f32.gmra.mxu0 %v273
      %v504 = vpop.f32.mrf.mxu0
      %v505 = vadd.f32 0.0, %v504
      %v506 = vpop.f32.mrf.mxu0
      %507 = vmatprep.mubr.f32.mxu0 0.0
      %508 = vmatmul.mubr.f32.gmra.mxu0 %v274
      %v509 = vpop.f32.mrf.mxu0
      %v510 = vadd.f32 0.0, %v509
      %v511 = vpop.f32.mrf.mxu0
      %512 = vmatprep.mubr.f32.mxu0 0.0
      %513 = vmatmul.mubr.f32.gmra.mxu0 %v275
      %v514 = vpop.f32.mrf.mxu0
      %v515 = vadd.f32 0.0, %v514
      %v516 = vpop.f32.mrf.mxu0
      %517 = vdwg.mxu0
      %518 = vmatprep.subr.mxu0 0.0
      %519 = vmatpush1.msra.mxu0 %v243
      %520 = vmatprep.subr.mxu0 0.0
      %521 = vmatpush1.msra.mxu0 %v242
      %522 = vmatprep.subr.mxu0 0.0
      %523 = vmatpush1.msra.mxu0 %v241
      %524 = vmatprep.subr.mxu0 0.0
      %525 = vmatpush1.msra.mxu0 %v240
      %526 = vmatprep.subr.mxu0 0.0
      %527 = vmatpush1.msra.mxu0 %v239
      %528 = vmatprep.subr.mxu0 0.0
      %529 = vmatpush1.msra.mxu0 %v238
      %530 = vmatprep.subr.mxu0 0.0
      %531 = vmatpush1.msra.mxu0 %v237
      %532 = vmatprep.subr.mxu0 0.0
      %533 = vmatpush1.msra.mxu0 %v236
      %534 = vmatprep.subr.mxu0 0.0
      %535 = vmatpush1.msra.mxu0 %v235
      %536 = vmatprep.subr.mxu0 0.0
      %537 = vmatpush1.msra.mxu0 %v234
      %538 = vmatprep.subr.mxu0 0.0
      %539 = vmatpush1.msra.mxu0 %v233
      %540 = vmatprep.subr.mxu0 0.0
      %541 = vmatpush1.msra.mxu0 %v232
      %542 = vmatprep.subr.mxu0 0.0
      %543 = vmatpush1.msra.mxu0 %v231
      %544 = vmatprep.subr.mxu0 0.0
      %545 = vmatpush1.msra.mxu0 %v230
      %546 = vmatprep.subr.mxu0 0.0
      %547 = vmatpush1.msra.mxu0 %v229
      %548 = vmatprep.subr.mxu0 0.0
      %549 = vmatpush1.msra.mxu0 %v228
      %550 = vmatprep.subr.mxu0 0.0
      %551 = vmatpush2.msra.mxu0 0.0
      %552 = vmatprep.subr.mxu0 0.0
      %553 = vmatpush2.msra.mxu0 0.0
      %554 = vmatprep.subr.mxu0 0.0
      %555 = vmatpush2.msra.mxu0 0.0
      %556 = vmatprep.subr.mxu0 0.0
      %557 = vmatpush2.msra.mxu0 0.0
      %558 = vmatprep.subr.mxu0 0.0
      %559 = vmatpush2.msra.mxu0 0.0
      %560 = vmatprep.subr.mxu0 0.0
      %561 = vmatpush2.msra.mxu0 0.0
      %562 = vmatprep.subr.mxu0 0.0
      %563 = vmatpush2.msra.mxu0 0.0
      %564 = vmatprep.subr.mxu0 0.0
      %565 = vmatpush2.msra.mxu0 0.0
      %566 = vmatprep.subr.mxu0 0.0
      %567 = vmatpush2.msra.mxu0 0.0
      %568 = vmatprep.subr.mxu0 0.0
      %569 = vmatpush2.msra.mxu0 0.0
      %570 = vmatprep.subr.mxu0 0.0
      %571 = vmatpush2.msra.mxu0 0.0
      %572 = vmatprep.subr.mxu0 0.0
      %573 = vmatpush2.msra.mxu0 0.0
      %574 = vmatprep.subr.mxu0 0.0
      %575 = vmatpush2.msra.mxu0 0.0
      %576 = vmatprep.subr.mxu0 0.0
      %577 = vmatpush2.msra.mxu0 0.0
      %578 = vmatprep.subr.mxu0 0.0
      %579 = vmatpush2.msra.mxu0 0.0
      %580 = vmatprep.subr.mxu0 0.0
      %581 = vmatpush2.msra.mxu0 0.0
      %582 = vmatprep.mubr.f32.mxu0 0.0
      %583 = vmatmul.mubr.f32.gmra.mxu0 %v196
      %v584 = vpop.f32.mrf.mxu0
      %v585 = vadd.f32 %v360, %v584
      %v586 = vpop.f32.mrf.mxu0
      %587 = vmatprep.mubr.f32.mxu0 0.0
      %588 = vmatmul.mubr.f32.gmra.mxu0 %v197
      %v589 = vpop.f32.mrf.mxu0
      %v590 = vadd.f32 %v365, %v589
      %v591 = vpop.f32.mrf.mxu0
      %592 = vmatprep.mubr.f32.mxu0 0.0
      %593 = vmatmul.mubr.f32.gmra.mxu0 %v198
      %v594 = vpop.f32.mrf.mxu0
      %v595 = vadd.f32 %v370, %v594
      %v596 = vpop.f32.mrf.mxu0
      %597 = vmatprep.mubr.f32.mxu0 0.0
      %598 = vmatmul.mubr.f32.gmra.mxu0 %v199
      %v599 = vpop.f32.mrf.mxu0
      %v600 = vadd.f32 %v375, %v599
      %v601 = vpop.f32.mrf.mxu0
      %602 = vmatprep.mubr.f32.mxu0 0.0
      %603 = vmatmul.mubr.f32.gmra.mxu0 %v200
      %v604 = vpop.f32.mrf.mxu0
      %v605 = vadd.f32 %v380, %v604
      %v606 = vpop.f32.mrf.mxu0
      %607 = vmatprep.mubr.f32.mxu0 0.0
      %608 = vmatmul.mubr.f32.gmra.mxu0 %v201
      %v609 = vpop.f32.mrf.mxu0
      %v610 = vadd.f32 %v385, %v609
      %v611 = vpop.f32.mrf.mxu0
      %612 = vmatprep.mubr.f32.mxu0 0.0
      %613 = vmatmul.mubr.f32.gmra.mxu0 %v202
      %v614 = vpop.f32.mrf.mxu0
      %v615 = vadd.f32 %v390, %v614
      %v616 = vpop.f32.mrf.mxu0
      %617 = vmatprep.mubr.f32.mxu0 0.0
      %618 = vmatmul.mubr.f32.gmra.mxu0 %v203
      %v619 = vpop.f32.mrf.mxu0
      %v620 = vadd.f32 %v395, %v619
      %v621 = vpop.f32.mrf.mxu0
      %622 = vmatprep.mubr.f32.mxu0 0.0
      %623 = vmatmul.mubr.f32.gmra.mxu0 %v204
      %v624 = vpop.f32.mrf.mxu0
      %v625 = vadd.f32 %v400, %v624
      %v626 = vpop.f32.mrf.mxu0
      %627 = vmatprep.mubr.f32.mxu0 0.0
      %628 = vmatmul.mubr.f32.gmra.mxu0 %v205
      %v629 = vpop.f32.mrf.mxu0
      %v630 = vadd.f32 %v405, %v629
      %v631 = vpop.f32.mrf.mxu0
      %632 = vmatprep.mubr.f32.mxu0 0.0
      %633 = vmatmul.mubr.f32.gmra.mxu0 %v206
      %v634 = vpop.f32.mrf.mxu0
      %v635 = vadd.f32 %v410, %v634
      %v636 = vpop.f32.mrf.mxu0
      %637 = vmatprep.mubr.f32.mxu0 0.0
      %638 = vmatmul.mubr.f32.gmra.mxu0 %v207
      %v639 = vpop.f32.mrf.mxu0
      %v640 = vadd.f32 %v415, %v639
      %v641 = vpop.f32.mrf.mxu0
      %642 = vmatprep.mubr.f32.mxu0 0.0
      %643 = vmatmul.mubr.f32.gmra.mxu0 %v208
      %v644 = vpop.f32.mrf.mxu0
      %v645 = vadd.f32 %v420, %v644
      %v646 = vpop.f32.mrf.mxu0
      %647 = vmatprep.mubr.f32.mxu0 0.0
      %648 = vmatmul.mubr.f32.gmra.mxu0 %v209
      %v649 = vpop.f32.mrf.mxu0
      %v650 = vadd.f32 %v425, %v649
      %v651 = vpop.f32.mrf.mxu0
      %652 = vmatprep.mubr.f32.mxu0 0.0
      %653 = vmatmul.mubr.f32.gmra.mxu0 %v210
      %v654 = vpop.f32.mrf.mxu0
      %v655 = vadd.f32 %v430, %v654
      %v656 = vpop.f32.mrf.mxu0
      %657 = vmatprep.mubr.f32.mxu0 0.0
      %658 = vmatmul.mubr.f32.gmra.mxu0 %v211
      %v659 = vpop.f32.mrf.mxu0
      %v660 = vadd.f32 %v435, %v659
      %v661 = vpop.f32.mrf.mxu0
      %662 = vmatprep.mubr.f32.mxu0 0.0
      %663 = vmatmul.mubr.f32.gmra.mxu0 %v212
      %v664 = vpop.f32.mrf.mxu0
      %v665 = vadd.f32 %v440, %v664
      %v666 = vpop.f32.mrf.mxu0
      %667 = vmatprep.mubr.f32.mxu0 0.0
      %668 = vmatmul.mubr.f32.gmra.mxu0 %v213
      %v669 = vpop.f32.mrf.mxu0
      %v670 = vadd.f32 %v445, %v669
      %v671 = vpop.f32.mrf.mxu0
      %672 = vmatprep.mubr.f32.mxu0 0.0
      %673 = vmatmul.mubr.f32.gmra.mxu0 %v214
      %v674 = vpop.f32.mrf.mxu0
      %v675 = vadd.f32 %v450, %v674
      %v676 = vpop.f32.mrf.mxu0
      %677 = vmatprep.mubr.f32.mxu0 0.0
      %678 = vmatmul.mubr.f32.gmra.mxu0 %v215
      %v679 = vpop.f32.mrf.mxu0
      %v680 = vadd.f32 %v455, %v679
      %v681 = vpop.f32.mrf.mxu0
      %682 = vmatprep.mubr.f32.mxu0 0.0
      %683 = vmatmul.mubr.f32.gmra.mxu0 %v216
      %v684 = vpop.f32.mrf.mxu0
      %v685 = vadd.f32 %v460, %v684
      %v686 = vpop.f32.mrf.mxu0
      %687 = vmatprep.mubr.f32.mxu0 0.0
      %688 = vmatmul.mubr.f32.gmra.mxu0 %v217
      %v689 = vpop.f32.mrf.mxu0
      %v690 = vadd.f32 %v465, %v689
      %v691 = vpop.f32.mrf.mxu0
      %692 = vmatprep.mubr.f32.mxu0 0.0
      %693 = vmatmul.mubr.f32.gmra.mxu0 %v218
      %v694 = vpop.f32.mrf.mxu0
      %v695 = vadd.f32 %v470, %v694
      %v696 = vpop.f32.mrf.mxu0
      %697 = vmatprep.mubr.f32.mxu0 0.0
      %698 = vmatmul.mubr.f32.gmra.mxu0 %v219
      %v699 = vpop.f32.mrf.mxu0
      %v700 = vadd.f32 %v475, %v699
      %v701 = vpop.f32.mrf.mxu0
      %702 = vmatprep.mubr.f32.mxu0 0.0
      %703 = vmatmul.mubr.f32.gmra.mxu0 %v220
      %v704 = vpop.f32.mrf.mxu0
      %v705 = vadd.f32 %v480, %v704
      %v706 = vpop.f32.mrf.mxu0
      %707 = vmatprep.mubr.f32.mxu0 0.0
      %708 = vmatmul.mubr.f32.gmra.mxu0 %v221
      %v709 = vpop.f32.mrf.mxu0
      %v710 = vadd.f32 %v485, %v709
      %v711 = vpop.f32.mrf.mxu0
      %712 = vmatprep.mubr.f32.mxu0 0.0
      %713 = vmatmul.mubr.f32.gmra.mxu0 %v222
      %v714 = vpop.f32.mrf.mxu0
      %v715 = vadd.f32 %v490, %v714
      %v716 = vpop.f32.mrf.mxu0
      %717 = vmatprep.mubr.f32.mxu0 0.0
      %718 = vmatmul.mubr.f32.gmra.mxu0 %v223
      %v719 = vpop.f32.mrf.mxu0
      %v720 = vadd.f32 %v495, %v719
      %v721 = vpop.f32.mrf.mxu0
      %722 = vmatprep.mubr.f32.mxu0 0.0
      %723 = vmatmul.mubr.f32.gmra.mxu0 %v224
      %v724 = vpop.f32.mrf.mxu0
      %v725 = vadd.f32 %v500, %v724
      %v726 = vpop.f32.mrf.mxu0
      %727 = vmatprep.mubr.f32.mxu0 0.0
      %728 = vmatmul.mubr.f32.gmra.mxu0 %v225
      %v729 = vpop.f32.mrf.mxu0
      %v730 = vadd.f32 %v505, %v729
      %v731 = vpop.f32.mrf.mxu0
      %732 = vmatprep.mubr.f32.mxu0 0.0
      %733 = vmatmul.mubr.f32.gmra.mxu0 %v226
      %v734 = vpop.f32.mrf.mxu0
      %v735 = vadd.f32 %v510, %v734
      %v736 = vpop.f32.mrf.mxu0
      %737 = vmatprep.mubr.f32.mxu0 0.0
      %738 = vmatmul.mubr.f32.gmra.mxu0 %v227
      %v739 = vpop.f32.mrf.mxu0
      %v740 = vadd.f32 %v515, %v739
      %v741 = vpop.f32.mrf.mxu0
      %742 = vdwg.mxu0
      %v743 = vld [vmem:[%s184 + $0x2] sm:$0xff]
      %v744 = vld [vmem:[%s184 + $0xa] sm:$0xff]
      %v745 = vld [vmem:[%s184 + $0x1a] sm:$0xff]
      %v746 = vld [vmem:[%s184 + $0x22] sm:$0xff]
      %v747 = vld [vmem:[%s184 + $0x32] sm:$0xff]
      %v748 = vld [vmem:[%s184 + $0x3a] sm:$0xff]
      %v749 = vld [vmem:[%s184 + $0x4a] sm:$0xff]
      %v750 = vld [vmem:[%s184 + $0x52] sm:$0xff]
      %v751 = vld [vmem:[%s184 + $0x62] sm:$0xff]
      %v752 = vld [vmem:[%s184 + $0x6a] sm:$0xff]
      %v753 = vld [vmem:[%s184 + $0x7a] sm:$0xff]
      %v754 = vld [vmem:[%s184 + $0x82] sm:$0xff]
      %v755 = vld [vmem:[%s184 + $0x92] sm:$0xff]
      %v756 = vld [vmem:[%s184 + $0x9a] sm:$0xff]
      %v757 = vld [vmem:[%s184 + $0xaa] sm:$0xff]
      %v758 = vld [vmem:[%s184 + $0xb2] sm:$0xff]
      %v759 = vld [vmem:[%s184 + $0xc2] sm:$0xff]
      %v760 = vld [vmem:[%s184 + $0xca] sm:$0xff]
      %v761 = vld [vmem:[%s184 + $0xda] sm:$0xff]
      %v762 = vld [vmem:[%s184 + $0xe2] sm:$0xff]
      %v763 = vld [vmem:[%s184 + $0xf2] sm:$0xff]
      %v764 = vld [vmem:[%s184 + $0xfa] sm:$0xff]
      %v765 = vld [vmem:[%s184 + $0x10a] sm:$0xff]
      %v766 = vld [vmem:[%s184 + $0x112] sm:$0xff]
      %v767 = vld [vmem:[%s184 + $0x122] sm:$0xff]
      %v768 = vld [vmem:[%s184 + $0x12a] sm:$0xff]
      %v769 = vld [vmem:[%s184 + $0x13a] sm:$0xff]
      %v770 = vld [vmem:[%s184 + $0x142] sm:$0xff]
      %v771 = vld [vmem:[%s184 + $0x152] sm:$0xff]
      %v772 = vld [vmem:[%s184 + $0x15a] sm:$0xff]
      %v773 = vld [vmem:[%s184 + $0x16a] sm:$0xff]
      %v774 = vld [vmem:[%s184 + $0x172] sm:$0xff]
      %s775 = scalar_lea.vmem %s1, 256
      %v776 = vld [vmem:[%s775] sm:$0xff]
      %v777 = vld [vmem:[%s775 + $0x8] sm:$0xff]
      %v778 = vld [vmem:[%s775 + $0x10] sm:$0xff]
      %v779 = vld [vmem:[%s775 + $0x18] sm:$0xff]
      %v780 = vld [vmem:[%s775 + $0x20] sm:$0xff]
      %v781 = vld [vmem:[%s775 + $0x28] sm:$0xff]
      %v782 = vld [vmem:[%s775 + $0x30] sm:$0xff]
      %v783 = vld [vmem:[%s775 + $0x38] sm:$0xff]
      %v784 = vld [vmem:[%s775 + $0x40] sm:$0xff]
      %v785 = vld [vmem:[%s775 + $0x48] sm:$0xff]
      %v786 = vld [vmem:[%s775 + $0x50] sm:$0xff]
      %v787 = vld [vmem:[%s775 + $0x58] sm:$0xff]
      %v788 = vld [vmem:[%s775 + $0x60] sm:$0xff]
      %v789 = vld [vmem:[%s775 + $0x68] sm:$0xff]
      %v790 = vld [vmem:[%s775 + $0x70] sm:$0xff]
      %v791 = vld [vmem:[%s775 + $0x78] sm:$0xff]
      %792 = vmatprep.subr.mxu0 0.0
      %793 = vmatpush1.msra.mxu0 %v791
      %794 = vmatprep.subr.mxu0 0.0
      %795 = vmatpush1.msra.mxu0 %v790
      %796 = vmatprep.subr.mxu0 0.0
      %797 = vmatpush1.msra.mxu0 %v789
      %798 = vmatprep.subr.mxu0 0.0
      %799 = vmatpush1.msra.mxu0 %v788
      %800 = vmatprep.subr.mxu0 0.0
      %801 = vmatpush1.msra.mxu0 %v787
      %802 = vmatprep.subr.mxu0 0.0
      %803 = vmatpush1.msra.mxu0 %v786
      %804 = vmatprep.subr.mxu0 0.0
      %805 = vmatpush1.msra.mxu0 %v785
      %806 = vmatprep.subr.mxu0 0.0
      %807 = vmatpush1.msra.mxu0 %v784
      %808 = vmatprep.subr.mxu0 0.0
      %809 = vmatpush1.msra.mxu0 %v783
      %810 = vmatprep.subr.mxu0 0.0
      %811 = vmatpush1.msra.mxu0 %v782
      %812 = vmatprep.subr.mxu0 0.0
      %813 = vmatpush1.msra.mxu0 %v781
      %814 = vmatprep.subr.mxu0 0.0
      %815 = vmatpush1.msra.mxu0 %v780
      %816 = vmatprep.subr.mxu0 0.0
      %817 = vmatpush1.msra.mxu0 %v779
      %818 = vmatprep.subr.mxu0 0.0
      %819 = vmatpush1.msra.mxu0 %v778
      %820 = vmatprep.subr.mxu0 0.0
      %821 = vmatpush1.msra.mxu0 %v777
      %822 = vmatprep.subr.mxu0 0.0
      %823 = vmatpush1.msra.mxu0 %v776
      %824 = vmatprep.subr.mxu0 0.0
      %825 = vmatpush2.msra.mxu0 0.0
      %826 = vmatprep.subr.mxu0 0.0
      %827 = vmatpush2.msra.mxu0 0.0
      %828 = vmatprep.subr.mxu0 0.0
      %829 = vmatpush2.msra.mxu0 0.0
      %830 = vmatprep.subr.mxu0 0.0
      %831 = vmatpush2.msra.mxu0 0.0
      %832 = vmatprep.subr.mxu0 0.0
      %833 = vmatpush2.msra.mxu0 0.0
      %834 = vmatprep.subr.mxu0 0.0
      %835 = vmatpush2.msra.mxu0 0.0
      %836 = vmatprep.subr.mxu0 0.0
      %837 = vmatpush2.msra.mxu0 0.0
      %838 = vmatprep.subr.mxu0 0.0
      %839 = vmatpush2.msra.mxu0 0.0
      %840 = vmatprep.subr.mxu0 0.0
      %841 = vmatpush2.msra.mxu0 0.0
      %842 = vmatprep.subr.mxu0 0.0
      %843 = vmatpush2.msra.mxu0 0.0
      %844 = vmatprep.subr.mxu0 0.0
      %845 = vmatpush2.msra.mxu0 0.0
      %846 = vmatprep.subr.mxu0 0.0
      %847 = vmatpush2.msra.mxu0 0.0
      %848 = vmatprep.subr.mxu0 0.0
      %849 = vmatpush2.msra.mxu0 0.0
      %850 = vmatprep.subr.mxu0 0.0
      %851 = vmatpush2.msra.mxu0 0.0
      %852 = vmatprep.subr.mxu0 0.0
      %853 = vmatpush2.msra.mxu0 0.0
      %854 = vmatprep.subr.mxu0 0.0
      %855 = vmatpush2.msra.mxu0 0.0
      %856 = vmatprep.mubr.f32.mxu0 0.0
      %857 = vmatmul.mubr.f32.gmra.mxu0 %v743
      %v858 = vpop.f32.mrf.mxu0
      %v859 = vadd.f32 0.0, %v858
      %v860 = vpop.f32.mrf.mxu0
      %861 = vmatprep.mubr.f32.mxu0 0.0
      %862 = vmatmul.mubr.f32.gmra.mxu0 %v744
      %v863 = vpop.f32.mrf.mxu0
      %v864 = vadd.f32 0.0, %v863
      %v865 = vpop.f32.mrf.mxu0
      %866 = vmatprep.mubr.f32.mxu0 0.0
      %867 = vmatmul.mubr.f32.gmra.mxu0 %v745
      %v868 = vpop.f32.mrf.mxu0
      %v869 = vadd.f32 0.0, %v868
      %v870 = vpop.f32.mrf.mxu0
      %871 = vmatprep.mubr.f32.mxu0 0.0
      %872 = vmatmul.mubr.f32.gmra.mxu0 %v746
      %v873 = vpop.f32.mrf.mxu0
      %v874 = vadd.f32 0.0, %v873
      %v875 = vpop.f32.mrf.mxu0
      %876 = vmatprep.mubr.f32.mxu0 0.0
      %877 = vmatmul.mubr.f32.gmra.mxu0 %v747
      %v878 = vpop.f32.mrf.mxu0
      %v879 = vadd.f32 0.0, %v878
      %v880 = vpop.f32.mrf.mxu0
      %881 = vmatprep.mubr.f32.mxu0 0.0
      %882 = vmatmul.mubr.f32.gmra.mxu0 %v748
      %v883 = vpop.f32.mrf.mxu0
      %v884 = vadd.f32 0.0, %v883
      %v885 = vpop.f32.mrf.mxu0
      %886 = vmatprep.mubr.f32.mxu0 0.0
      %887 = vmatmul.mubr.f32.gmra.mxu0 %v749
      %v888 = vpop.f32.mrf.mxu0
      %v889 = vadd.f32 0.0, %v888
      %v890 = vpop.f32.mrf.mxu0
      %891 = vmatprep.mubr.f32.mxu0 0.0
      %892 = vmatmul.mubr.f32.gmra.mxu0 %v750
      %v893 = vpop.f32.mrf.mxu0
      %v894 = vadd.f32 0.0, %v893
      %v895 = vpop.f32.mrf.mxu0
      %896 = vmatprep.mubr.f32.mxu0 0.0
      %897 = vmatmul.mubr.f32.gmra.mxu0 %v751
      %v898 = vpop.f32.mrf.mxu0
      %v899 = vadd.f32 0.0, %v898
      %v900 = vpop.f32.mrf.mxu0
      %901 = vmatprep.mubr.f32.mxu0 0.0
      %902 = vmatmul.mubr.f32.gmra.mxu0 %v752
      %v903 = vpop.f32.mrf.mxu0
      %v904 = vadd.f32 0.0, %v903
      %v905 = vpop.f32.mrf.mxu0
      %906 = vmatprep.mubr.f32.mxu0 0.0
      %907 = vmatmul.mubr.f32.gmra.mxu0 %v753
      %v908 = vpop.f32.mrf.mxu0
      %v909 = vadd.f32 0.0, %v908
      %v910 = vpop.f32.mrf.mxu0
      %911 = vmatprep.mubr.f32.mxu0 0.0
      %912 = vmatmul.mubr.f32.gmra.mxu0 %v754
      %v913 = vpop.f32.mrf.mxu0
      %v914 = vadd.f32 0.0, %v913
      %v915 = vpop.f32.mrf.mxu0
      %916 = vmatprep.mubr.f32.mxu0 0.0
      %917 = vmatmul.mubr.f32.gmra.mxu0 %v755
      %v918 = vpop.f32.mrf.mxu0
      %v919 = vadd.f32 0.0, %v918
      %v920 = vpop.f32.mrf.mxu0
      %921 = vmatprep.mubr.f32.mxu0 0.0
      %922 = vmatmul.mubr.f32.gmra.mxu0 %v756
      %v923 = vpop.f32.mrf.mxu0
      %v924 = vadd.f32 0.0, %v923
      %v925 = vpop.f32.mrf.mxu0
      %926 = vmatprep.mubr.f32.mxu0 0.0
      %927 = vmatmul.mubr.f32.gmra.mxu0 %v757
      %v928 = vpop.f32.mrf.mxu0
      %v929 = vadd.f32 0.0, %v928
      %v930 = vpop.f32.mrf.mxu0
      %931 = vmatprep.mubr.f32.mxu0 0.0
      %932 = vmatmul.mubr.f32.gmra.mxu0 %v758
      %v933 = vpop.f32.mrf.mxu0
      %v934 = vadd.f32 0.0, %v933
      %v935 = vpop.f32.mrf.mxu0
      %936 = vmatprep.mubr.f32.mxu0 0.0
      %937 = vmatmul.mubr.f32.gmra.mxu0 %v759
      %v938 = vpop.f32.mrf.mxu0
      %v939 = vadd.f32 0.0, %v938
      %v940 = vpop.f32.mrf.mxu0
      %941 = vmatprep.mubr.f32.mxu0 0.0
      %942 = vmatmul.mubr.f32.gmra.mxu0 %v760
      %v943 = vpop.f32.mrf.mxu0
      %v944 = vadd.f32 0.0, %v943
      %v945 = vpop.f32.mrf.mxu0
      %946 = vmatprep.mubr.f32.mxu0 0.0
      %947 = vmatmul.mubr.f32.gmra.mxu0 %v761
      %v948 = vpop.f32.mrf.mxu0
      %v949 = vadd.f32 0.0, %v948
      %v950 = vpop.f32.mrf.mxu0
      %951 = vmatprep.mubr.f32.mxu0 0.0
      %952 = vmatmul.mubr.f32.gmra.mxu0 %v762
      %v953 = vpop.f32.mrf.mxu0
      %v954 = vadd.f32 0.0, %v953
      %v955 = vpop.f32.mrf.mxu0
      %956 = vmatprep.mubr.f32.mxu0 0.0
      %957 = vmatmul.mubr.f32.gmra.mxu0 %v763
      %v958 = vpop.f32.mrf.mxu0
      %v959 = vadd.f32 0.0, %v958
      %v960 = vpop.f32.mrf.mxu0
      %961 = vmatprep.mubr.f32.mxu0 0.0
      %962 = vmatmul.mubr.f32.gmra.mxu0 %v764
      %v963 = vpop.f32.mrf.mxu0
      %v964 = vadd.f32 0.0, %v963
      %v965 = vpop.f32.mrf.mxu0
      %966 = vmatprep.mubr.f32.mxu0 0.0
      %967 = vmatmul.mubr.f32.gmra.mxu0 %v765
      %v968 = vpop.f32.mrf.mxu0
      %v969 = vadd.f32 0.0, %v968
      %v970 = vpop.f32.mrf.mxu0
      %971 = vmatprep.mubr.f32.mxu0 0.0
      %972 = vmatmul.mubr.f32.gmra.mxu0 %v766
      %v973 = vpop.f32.mrf.mxu0
      %v974 = vadd.f32 0.0, %v973
      %v975 = vpop.f32.mrf.mxu0
      %976 = vmatprep.mubr.f32.mxu0 0.0
      %977 = vmatmul.mubr.f32.gmra.mxu0 %v767
      %v978 = vpop.f32.mrf.mxu0
      %v979 = vadd.f32 0.0, %v978
      %v980 = vpop.f32.mrf.mxu0
      %981 = vmatprep.mubr.f32.mxu0 0.0
      %982 = vmatmul.mubr.f32.gmra.mxu0 %v768
      %v983 = vpop.f32.mrf.mxu0
      %v984 = vadd.f32 0.0, %v983
      %v985 = vpop.f32.mrf.mxu0
      %986 = vmatprep.mubr.f32.mxu0 0.0
      %987 = vmatmul.mubr.f32.gmra.mxu0 %v769
      %v988 = vpop.f32.mrf.mxu0
      %v989 = vadd.f32 0.0, %v988
      %v990 = vpop.f32.mrf.mxu0
      %991 = vmatprep.mubr.f32.mxu0 0.0
      %992 = vmatmul.mubr.f32.gmra.mxu0 %v770
      %v993 = vpop.f32.mrf.mxu0
      %v994 = vadd.f32 0.0, %v993
      %v995 = vpop.f32.mrf.mxu0
      %996 = vmatprep.mubr.f32.mxu0 0.0
      %997 = vmatmul.mubr.f32.gmra.mxu0 %v771
      %v998 = vpop.f32.mrf.mxu0
      %v999 = vadd.f32 0.0, %v998
      %v1000 = vpop.f32.mrf.mxu0
      %1001 = vmatprep.mubr.f32.mxu0 0.0
      %1002 = vmatmul.mubr.f32.gmra.mxu0 %v772
      %v1003 = vpop.f32.mrf.mxu0
      %v1004 = vadd.f32 0.0, %v1003
      %v1005 = vpop.f32.mrf.mxu0
      %1006 = vmatprep.mubr.f32.mxu0 0.0
      %1007 = vmatmul.mubr.f32.gmra.mxu0 %v773
      %v1008 = vpop.f32.mrf.mxu0
      %v1009 = vadd.f32 0.0, %v1008
      %v1010 = vpop.f32.mrf.mxu0
      %1011 = vmatprep.mubr.f32.mxu0 0.0
      %1012 = vmatmul.mubr.f32.gmra.mxu0 %v774
      %v1013 = vpop.f32.mrf.mxu0
      %v1014 = vadd.f32 0.0, %v1013
      %v1015 = vpop.f32.mrf.mxu0
      %1016 = vdwg.mxu0
      %v1017 = vadd.f32 %v585, %v859
      %v1018 = vadd.f32 %v590, %v864
      %v1019 = vadd.f32 %v595, %v869
      %v1020 = vadd.f32 %v600, %v874
      %v1021 = vadd.f32 %v605, %v879
      %v1022 = vadd.f32 %v610, %v884
      %v1023 = vadd.f32 %v615, %v889
      %v1024 = vadd.f32 %v620, %v894
      %v1025 = vadd.f32 %v625, %v899
      %v1026 = vadd.f32 %v630, %v904
      %v1027 = vadd.f32 %v635, %v909
      %v1028 = vadd.f32 %v640, %v914
      %v1029 = vadd.f32 %v645, %v919
      %v1030 = vadd.f32 %v650, %v924
      %v1031 = vadd.f32 %v655, %v929
      %v1032 = vadd.f32 %v660, %v934
      %v1033 = vadd.f32 %v665, %v939
      %v1034 = vadd.f32 %v670, %v944
      %v1035 = vadd.f32 %v675, %v949
      %v1036 = vadd.f32 %v680, %v954
      %v1037 = vadd.f32 %v685, %v959
      %v1038 = vadd.f32 %v690, %v964
      %v1039 = vadd.f32 %v695, %v969
      %v1040 = vadd.f32 %v700, %v974
      %v1041 = vadd.f32 %v705, %v979
      %v1042 = vadd.f32 %v710, %v984
      %v1043 = vadd.f32 %v715, %v989
      %v1044 = vadd.f32 %v720, %v994
      %v1045 = vadd.f32 %v725, %v999
      %v1046 = vadd.f32 %v730, %v1004
      %v1047 = vadd.f32 %v735, %v1009
      %v1048 = vadd.f32 %v740, %v1014
      %s1049 = scalar_lea.vmem %s184, 24
      %v1050 = vld [vmem:[%s1049] sm:$0xff]
      %v1051 = vld [vmem:[%s1049 + $0x8] sm:$0xff]
      %v1052 = vld [vmem:[%s1049 + $0x18] sm:$0xff]
      %v1053 = vld [vmem:[%s1049 + $0x20] sm:$0xff]
      %v1054 = vld [vmem:[%s1049 + $0x30] sm:$0xff]
      %v1055 = vld [vmem:[%s1049 + $0x38] sm:$0xff]
      %v1056 = vld [vmem:[%s1049 + $0x48] sm:$0xff]
      %v1057 = vld [vmem:[%s1049 + $0x50] sm:$0xff]
      %v1058 = vld [vmem:[%s1049 + $0x60] sm:$0xff]
      %v1059 = vld [vmem:[%s1049 + $0x68] sm:$0xff]
      %v1060 = vld [vmem:[%s1049 + $0x78] sm:$0xff]
      %v1061 = vld [vmem:[%s1049 + $0x80] sm:$0xff]
      %v1062 = vld [vmem:[%s1049 + $0x90] sm:$0xff]
      %v1063 = vld [vmem:[%s1049 + $0x98] sm:$0xff]
      %v1064 = vld [vmem:[%s1049 + $0xa8] sm:$0xff]
      %v1065 = vld [vmem:[%s1049 + $0xb0] sm:$0xff]
      %v1066 = vld [vmem:[%s1049 + $0xc0] sm:$0xff]
      %v1067 = vld [vmem:[%s1049 + $0xc8] sm:$0xff]
      %v1068 = vld [vmem:[%s1049 + $0xd8] sm:$0xff]
      %v1069 = vld [vmem:[%s1049 + $0xe0] sm:$0xff]
      %v1070 = vld [vmem:[%s1049 + $0xf0] sm:$0xff]
      %v1071 = vld [vmem:[%s1049 + $0xf8] sm:$0xff]
      %v1072 = vld [vmem:[%s1049 + $0x108] sm:$0xff]
      %v1073 = vld [vmem:[%s1049 + $0x110] sm:$0xff]
      %v1074 = vld [vmem:[%s1049 + $0x120] sm:$0xff]
      %v1075 = vld [vmem:[%s1049 + $0x128] sm:$0xff]
      %v1076 = vld [vmem:[%s1049 + $0x138] sm:$0xff]
      %v1077 = vld [vmem:[%s1049 + $0x140] sm:$0xff]
      %v1078 = vld [vmem:[%s1049 + $0x150] sm:$0xff]
      %v1079 = vld [vmem:[%s1049 + $0x158] sm:$0xff]
      %v1080 = vld [vmem:[%s1049 + $0x168] sm:$0xff]
      %v1081 = vld [vmem:[%s1049 + $0x170] sm:$0xff]
      %s1082 = scalar_lea.vmem %s1, 384
      %v1083 = vld [vmem:[%s1082] sm:$0xff]
      %v1084 = vld [vmem:[%s1082 + $0x8] sm:$0xff]
      %v1085 = vld [vmem:[%s1082 + $0x10] sm:$0xff]
      %v1086 = vld [vmem:[%s1082 + $0x18] sm:$0xff]
      %v1087 = vld [vmem:[%s1082 + $0x20] sm:$0xff]
      %v1088 = vld [vmem:[%s1082 + $0x28] sm:$0xff]
      %v1089 = vld [vmem:[%s1082 + $0x30] sm:$0xff]
      %v1090 = vld [vmem:[%s1082 + $0x38] sm:$0xff]
      %v1091 = vld [vmem:[%s1082 + $0x40] sm:$0xff]
      %v1092 = vld [vmem:[%s1082 + $0x48] sm:$0xff]
      %v1093 = vld [vmem:[%s1082 + $0x50] sm:$0xff]
      %v1094 = vld [vmem:[%s1082 + $0x58] sm:$0xff]
      %v1095 = vld [vmem:[%s1082 + $0x60] sm:$0xff]
      %v1096 = vld [vmem:[%s1082 + $0x68] sm:$0xff]
      %v1097 = vld [vmem:[%s1082 + $0x70] sm:$0xff]
      %v1098 = vld [vmem:[%s1082 + $0x78] sm:$0xff]
      %1099 = vmatprep.subr.mxu0 0.0
      %1100 = vmatpush1.msra.mxu0 %v1098
      %1101 = vmatprep.subr.mxu0 0.0
      %1102 = vmatpush1.msra.mxu0 %v1097
      %1103 = vmatprep.subr.mxu0 0.0
      %1104 = vmatpush1.msra.mxu0 %v1096
      %1105 = vmatprep.subr.mxu0 0.0
      %1106 = vmatpush1.msra.mxu0 %v1095
      %1107 = vmatprep.subr.mxu0 0.0
      %1108 = vmatpush1.msra.mxu0 %v1094
      %1109 = vmatprep.subr.mxu0 0.0
      %1110 = vmatpush1.msra.mxu0 %v1093
      %1111 = vmatprep.subr.mxu0 0.0
      %1112 = vmatpush1.msra.mxu0 %v1092
      %1113 = vmatprep.subr.mxu0 0.0
      %1114 = vmatpush1.msra.mxu0 %v1091
      %1115 = vmatprep.subr.mxu0 0.0
      %1116 = vmatpush1.msra.mxu0 %v1090
      %1117 = vmatprep.subr.mxu0 0.0
      %1118 = vmatpush1.msra.mxu0 %v1089
      %1119 = vmatprep.subr.mxu0 0.0
      %1120 = vmatpush1.msra.mxu0 %v1088
      %1121 = vmatprep.subr.mxu0 0.0
      %1122 = vmatpush1.msra.mxu0 %v1087
      %1123 = vmatprep.subr.mxu0 0.0
      %1124 = vmatpush1.msra.mxu0 %v1086
      %1125 = vmatprep.subr.mxu0 0.0
      %1126 = vmatpush1.msra.mxu0 %v1085
      %1127 = vmatprep.subr.mxu0 0.0
      %1128 = vmatpush1.msra.mxu0 %v1084
      %1129 = vmatprep.subr.mxu0 0.0
      %1130 = vmatpush1.msra.mxu0 %v1083
      %1131 = vmatprep.subr.mxu0 0.0
      %1132 = vmatpush2.msra.mxu0 0.0
      %1133 = vmatprep.subr.mxu0 0.0
      %1134 = vmatpush2.msra.mxu0 0.0
      %1135 = vmatprep.subr.mxu0 0.0
      %1136 = vmatpush2.msra.mxu0 0.0
      %1137 = vmatprep.subr.mxu0 0.0
      %1138 = vmatpush2.msra.mxu0 0.0
      %1139 = vmatprep.subr.mxu0 0.0
      %1140 = vmatpush2.msra.mxu0 0.0
      %1141 = vmatprep.subr.mxu0 0.0
      %1142 = vmatpush2.msra.mxu0 0.0
      %1143 = vmatprep.subr.mxu0 0.0
      %1144 = vmatpush2.msra.mxu0 0.0
      %1145 = vmatprep.subr.mxu0 0.0
      %1146 = vmatpush2.msra.mxu0 0.0
      %1147 = vmatprep.subr.mxu0 0.0
      %1148 = vmatpush2.msra.mxu0 0.0
      %1149 = vmatprep.subr.mxu0 0.0
      %1150 = vmatpush2.msra.mxu0 0.0
      %1151 = vmatprep.subr.mxu0 0.0
      %1152 = vmatpush2.msra.mxu0 0.0
      %1153 = vmatprep.subr.mxu0 0.0
      %1154 = vmatpush2.msra.mxu0 0.0
      %1155 = vmatprep.subr.mxu0 0.0
      %1156 = vmatpush2.msra.mxu0 0.0
      %1157 = vmatprep.subr.mxu0 0.0
      %1158 = vmatpush2.msra.mxu0 0.0
      %1159 = vmatprep.subr.mxu0 0.0
      %1160 = vmatpush2.msra.mxu0 0.0
      %1161 = vmatprep.subr.mxu0 0.0
      %1162 = vmatpush2.msra.mxu0 0.0
      %1163 = vmatprep.mubr.f32.mxu0 0.0
      %1164 = vmatmul.mubr.f32.gmra.mxu0 %v1050
      %v1165 = vpop.f32.mrf.mxu0
      %v1166 = vadd.f32 0.0, %v1165
      %v1167 = vpop.f32.mrf.mxu0
      %1168 = vmatprep.mubr.f32.mxu0 0.0
      %1169 = vmatmul.mubr.f32.gmra.mxu0 %v1051
      %v1170 = vpop.f32.mrf.mxu0
      %v1171 = vadd.f32 0.0, %v1170
      %v1172 = vpop.f32.mrf.mxu0
      %1173 = vmatprep.mubr.f32.mxu0 0.0
      %1174 = vmatmul.mubr.f32.gmra.mxu0 %v1052
      %v1175 = vpop.f32.mrf.mxu0
      %v1176 = vadd.f32 0.0, %v1175
      %v1177 = vpop.f32.mrf.mxu0
      %1178 = vmatprep.mubr.f32.mxu0 0.0
      %1179 = vmatmul.mubr.f32.gmra.mxu0 %v1053
      %v1180 = vpop.f32.mrf.mxu0
      %v1181 = vadd.f32 0.0, %v1180
      %v1182 = vpop.f32.mrf.mxu0
      %1183 = vmatprep.mubr.f32.mxu0 0.0
      %1184 = vmatmul.mubr.f32.gmra.mxu0 %v1054
      %v1185 = vpop.f32.mrf.mxu0
      %v1186 = vadd.f32 0.0, %v1185
      %v1187 = vpop.f32.mrf.mxu0
      %1188 = vmatprep.mubr.f32.mxu0 0.0
      %1189 = vmatmul.mubr.f32.gmra.mxu0 %v1055
      %v1190 = vpop.f32.mrf.mxu0
      %v1191 = vadd.f32 0.0, %v1190
      %v1192 = vpop.f32.mrf.mxu0
      %1193 = vmatprep.mubr.f32.mxu0 0.0
      %1194 = vmatmul.mubr.f32.gmra.mxu0 %v1056
      %v1195 = vpop.f32.mrf.mxu0
      %v1196 = vadd.f32 0.0, %v1195
      %v1197 = vpop.f32.mrf.mxu0
      %1198 = vmatprep.mubr.f32.mxu0 0.0
      %1199 = vmatmul.mubr.f32.gmra.mxu0 %v1057
      %v1200 = vpop.f32.mrf.mxu0
      %v1201 = vadd.f32 0.0, %v1200
      %v1202 = vpop.f32.mrf.mxu0
      %1203 = vmatprep.mubr.f32.mxu0 0.0
      %1204 = vmatmul.mubr.f32.gmra.mxu0 %v1058
      %v1205 = vpop.f32.mrf.mxu0
      %v1206 = vadd.f32 0.0, %v1205
      %v1207 = vpop.f32.mrf.mxu0
      %1208 = vmatprep.mubr.f32.mxu0 0.0
      %1209 = vmatmul.mubr.f32.gmra.mxu0 %v1059
      %v1210 = vpop.f32.mrf.mxu0
      %v1211 = vadd.f32 0.0, %v1210
      %v1212 = vpop.f32.mrf.mxu0
      %1213 = vmatprep.mubr.f32.mxu0 0.0
      %1214 = vmatmul.mubr.f32.gmra.mxu0 %v1060
      %v1215 = vpop.f32.mrf.mxu0
      %v1216 = vadd.f32 0.0, %v1215
      %v1217 = vpop.f32.mrf.mxu0
      %1218 = vmatprep.mubr.f32.mxu0 0.0
      %1219 = vmatmul.mubr.f32.gmra.mxu0 %v1061
      %v1220 = vpop.f32.mrf.mxu0
      %v1221 = vadd.f32 0.0, %v1220
      %v1222 = vpop.f32.mrf.mxu0
      %1223 = vmatprep.mubr.f32.mxu0 0.0
      %1224 = vmatmul.mubr.f32.gmra.mxu0 %v1062
      %v1225 = vpop.f32.mrf.mxu0
      %v1226 = vadd.f32 0.0, %v1225
      %v1227 = vpop.f32.mrf.mxu0
      %1228 = vmatprep.mubr.f32.mxu0 0.0
      %1229 = vmatmul.mubr.f32.gmra.mxu0 %v1063
      %v1230 = vpop.f32.mrf.mxu0
      %v1231 = vadd.f32 0.0, %v1230
      %v1232 = vpop.f32.mrf.mxu0
      %1233 = vmatprep.mubr.f32.mxu0 0.0
      %1234 = vmatmul.mubr.f32.gmra.mxu0 %v1064
      %v1235 = vpop.f32.mrf.mxu0
      %v1236 = vadd.f32 0.0, %v1235
      %v1237 = vpop.f32.mrf.mxu0
      %1238 = vmatprep.mubr.f32.mxu0 0.0
      %1239 = vmatmul.mubr.f32.gmra.mxu0 %v1065
      %v1240 = vpop.f32.mrf.mxu0
      %v1241 = vadd.f32 0.0, %v1240
      %v1242 = vpop.f32.mrf.mxu0
      %1243 = vmatprep.mubr.f32.mxu0 0.0
      %1244 = vmatmul.mubr.f32.gmra.mxu0 %v1066
      %v1245 = vpop.f32.mrf.mxu0
      %v1246 = vadd.f32 0.0, %v1245
      %v1247 = vpop.f32.mrf.mxu0
      %1248 = vmatprep.mubr.f32.mxu0 0.0
      %1249 = vmatmul.mubr.f32.gmra.mxu0 %v1067
      %v1250 = vpop.f32.mrf.mxu0
      %v1251 = vadd.f32 0.0, %v1250
      %v1252 = vpop.f32.mrf.mxu0
      %1253 = vmatprep.mubr.f32.mxu0 0.0
      %1254 = vmatmul.mubr.f32.gmra.mxu0 %v1068
      %v1255 = vpop.f32.mrf.mxu0
      %v1256 = vadd.f32 0.0, %v1255
      %v1257 = vpop.f32.mrf.mxu0
      %1258 = vmatprep.mubr.f32.mxu0 0.0
      %1259 = vmatmul.mubr.f32.gmra.mxu0 %v1069
      %v1260 = vpop.f32.mrf.mxu0
      %v1261 = vadd.f32 0.0, %v1260
      %v1262 = vpop.f32.mrf.mxu0
      %1263 = vmatprep.mubr.f32.mxu0 0.0
      %1264 = vmatmul.mubr.f32.gmra.mxu0 %v1070
      %v1265 = vpop.f32.mrf.mxu0
      %v1266 = vadd.f32 0.0, %v1265
      %v1267 = vpop.f32.mrf.mxu0
      %1268 = vmatprep.mubr.f32.mxu0 0.0
      %1269 = vmatmul.mubr.f32.gmra.mxu0 %v1071
      %v1270 = vpop.f32.mrf.mxu0
      %v1271 = vadd.f32 0.0, %v1270
      %v1272 = vpop.f32.mrf.mxu0
      %1273 = vmatprep.mubr.f32.mxu0 0.0
      %1274 = vmatmul.mubr.f32.gmra.mxu0 %v1072
      %v1275 = vpop.f32.mrf.mxu0
      %v1276 = vadd.f32 0.0, %v1275
      %v1277 = vpop.f32.mrf.mxu0
      %1278 = vmatprep.mubr.f32.mxu0 0.0
      %1279 = vmatmul.mubr.f32.gmra.mxu0 %v1073
      %v1280 = vpop.f32.mrf.mxu0
      %v1281 = vadd.f32 0.0, %v1280
      %v1282 = vpop.f32.mrf.mxu0
      %1283 = vmatprep.mubr.f32.mxu0 0.0
      %1284 = vmatmul.mubr.f32.gmra.mxu0 %v1074
      %v1285 = vpop.f32.mrf.mxu0
      %v1286 = vadd.f32 0.0, %v1285
      %v1287 = vpop.f32.mrf.mxu0
      %1288 = vmatprep.mubr.f32.mxu0 0.0
      %1289 = vmatmul.mubr.f32.gmra.mxu0 %v1075
      %v1290 = vpop.f32.mrf.mxu0
      %v1291 = vadd.f32 0.0, %v1290
      %v1292 = vpop.f32.mrf.mxu0
      %1293 = vmatprep.mubr.f32.mxu0 0.0
      %1294 = vmatmul.mubr.f32.gmra.mxu0 %v1076
      %v1295 = vpop.f32.mrf.mxu0
      %v1296 = vadd.f32 0.0, %v1295
      %v1297 = vpop.f32.mrf.mxu0
      %1298 = vmatprep.mubr.f32.mxu0 0.0
      %1299 = vmatmul.mubr.f32.gmra.mxu0 %v1077
      %v1300 = vpop.f32.mrf.mxu0
      %v1301 = vadd.f32 0.0, %v1300
      %v1302 = vpop.f32.mrf.mxu0
      %1303 = vmatprep.mubr.f32.mxu0 0.0
      %1304 = vmatmul.mubr.f32.gmra.mxu0 %v1078
      %v1305 = vpop.f32.mrf.mxu0
      %v1306 = vadd.f32 0.0, %v1305
      %v1307 = vpop.f32.mrf.mxu0
      %1308 = vmatprep.mubr.f32.mxu0 0.0
      %1309 = vmatmul.mubr.f32.gmra.mxu0 %v1079
      %v1310 = vpop.f32.mrf.mxu0
      %v1311 = vadd.f32 0.0, %v1310
      %v1312 = vpop.f32.mrf.mxu0
      %1313 = vmatprep.mubr.f32.mxu0 0.0
      %1314 = vmatmul.mubr.f32.gmra.mxu0 %v1080
      %v1315 = vpop.f32.mrf.mxu0
      %v1316 = vadd.f32 0.0, %v1315
      %v1317 = vpop.f32.mrf.mxu0
      %1318 = vmatprep.mubr.f32.mxu0 0.0
      %1319 = vmatmul.mubr.f32.gmra.mxu0 %v1081
      %v1320 = vpop.f32.mrf.mxu0
      %v1321 = vadd.f32 0.0, %v1320
      %v1322 = vpop.f32.mrf.mxu0
      %1323 = vdwg.mxu0
      %v1324 = vadd.f32 %v1017, %v1166
      %v1325 = vadd.f32 %v1018, %v1171
      %v1326 = vadd.f32 %v1019, %v1176
      %v1327 = vadd.f32 %v1020, %v1181
      %v1328 = vadd.f32 %v1021, %v1186
      %v1329 = vadd.f32 %v1022, %v1191
      %v1330 = vadd.f32 %v1023, %v1196
      %v1331 = vadd.f32 %v1024, %v1201
      %v1332 = vadd.f32 %v1025, %v1206
      %v1333 = vadd.f32 %v1026, %v1211
      %v1334 = vadd.f32 %v1027, %v1216
      %v1335 = vadd.f32 %v1028, %v1221
      %v1336 = vadd.f32 %v1029, %v1226
      %v1337 = vadd.f32 %v1030, %v1231
      %v1338 = vadd.f32 %v1031, %v1236
      %v1339 = vadd.f32 %v1032, %v1241
      %v1340 = vadd.f32 %v1033, %v1246
      %v1341 = vadd.f32 %v1034, %v1251
      %v1342 = vadd.f32 %v1035, %v1256
      %v1343 = vadd.f32 %v1036, %v1261
      %v1344 = vadd.f32 %v1037, %v1266
      %v1345 = vadd.f32 %v1038, %v1271
      %v1346 = vadd.f32 %v1039, %v1276
      %v1347 = vadd.f32 %v1040, %v1281
      %v1348 = vadd.f32 %v1041, %v1286
      %v1349 = vadd.f32 %v1042, %v1291
      %v1350 = vadd.f32 %v1043, %v1296
      %v1351 = vadd.f32 %v1044, %v1301
      %v1352 = vadd.f32 %v1045, %v1306
      %v1353 = vadd.f32 %v1046, %v1311
      %v1354 = vadd.f32 %v1047, %v1316
      %v1355 = vadd.f32 %v1048, %v1321
      %v1356 = vld [vmem:[%s1049 + $0x1] sm:$0xff]
      %v1357 = vld [vmem:[%s1049 + $0x9] sm:$0xff]
      %v1358 = vld [vmem:[%s1049 + $0x19] sm:$0xff]
      %v1359 = vld [vmem:[%s1049 + $0x21] sm:$0xff]
      %v1360 = vld [vmem:[%s1049 + $0x31] sm:$0xff]
      %v1361 = vld [vmem:[%s1049 + $0x39] sm:$0xff]
      %v1362 = vld [vmem:[%s1049 + $0x49] sm:$0xff]
      %v1363 = vld [vmem:[%s1049 + $0x51] sm:$0xff]
      %v1364 = vld [vmem:[%s1049 + $0x61] sm:$0xff]
      %v1365 = vld [vmem:[%s1049 + $0x69] sm:$0xff]
      %v1366 = vld [vmem:[%s1049 + $0x79] sm:$0xff]
      %v1367 = vld [vmem:[%s1049 + $0x81] sm:$0xff]
      %v1368 = vld [vmem:[%s1049 + $0x91] sm:$0xff]
      %v1369 = vld [vmem:[%s1049 + $0x99] sm:$0xff]
      %v1370 = vld [vmem:[%s1049 + $0xa9] sm:$0xff]
      %v1371 = vld [vmem:[%s1049 + $0xb1] sm:$0xff]
      %v1372 = vld [vmem:[%s1049 + $0xc1] sm:$0xff]
      %v1373 = vld [vmem:[%s1049 + $0xc9] sm:$0xff]
      %v1374 = vld [vmem:[%s1049 + $0xd9] sm:$0xff]
      %v1375 = vld [vmem:[%s1049 + $0xe1] sm:$0xff]
      %v1376 = vld [vmem:[%s1049 + $0xf1] sm:$0xff]
      %v1377 = vld [vmem:[%s1049 + $0xf9] sm:$0xff]
      %v1378 = vld [vmem:[%s1049 + $0x109] sm:$0xff]
      %v1379 = vld [vmem:[%s1049 + $0x111] sm:$0xff]
      %v1380 = vld [vmem:[%s1049 + $0x121] sm:$0xff]
      %v1381 = vld [vmem:[%s1049 + $0x129] sm:$0xff]
      %v1382 = vld [vmem:[%s1049 + $0x139] sm:$0xff]
      %v1383 = vld [vmem:[%s1049 + $0x141] sm:$0xff]
      %v1384 = vld [vmem:[%s1049 + $0x151] sm:$0xff]
      %v1385 = vld [vmem:[%s1049 + $0x159] sm:$0xff]
      %v1386 = vld [vmem:[%s1049 + $0x169] sm:$0xff]
      %v1387 = vld [vmem:[%s1049 + $0x171] sm:$0xff]
      %s1388 = scalar_lea.vmem %s1, 512
      %v1389 = vld [vmem:[%s1388] sm:$0xff]
      %v1390 = vld [vmem:[%s1388 + $0x8] sm:$0xff]
      %v1391 = vld [vmem:[%s1388 + $0x10] sm:$0xff]
      %v1392 = vld [vmem:[%s1388 + $0x18] sm:$0xff]
      %v1393 = vld [vmem:[%s1388 + $0x20] sm:$0xff]
      %v1394 = vld [vmem:[%s1388 + $0x28] sm:$0xff]
      %v1395 = vld [vmem:[%s1388 + $0x30] sm:$0xff]
      %v1396 = vld [vmem:[%s1388 + $0x38] sm:$0xff]
      %v1397 = vld [vmem:[%s1388 + $0x40] sm:$0xff]
      %v1398 = vld [vmem:[%s1388 + $0x48] sm:$0xff]
      %v1399 = vld [vmem:[%s1388 + $0x50] sm:$0xff]
      %v1400 = vld [vmem:[%s1388 + $0x58] sm:$0xff]
      %v1401 = vld [vmem:[%s1388 + $0x60] sm:$0xff]
      %v1402 = vld [vmem:[%s1388 + $0x68] sm:$0xff]
      %v1403 = vld [vmem:[%s1388 + $0x70] sm:$0xff]
      %v1404 = vld [vmem:[%s1388 + $0x78] sm:$0xff]
      %1405 = vmatprep.subr.mxu0 0.0
      %1406 = vmatpush1.msra.mxu0 %v1404
      %1407 = vmatprep.subr.mxu0 0.0
      %1408 = vmatpush1.msra.mxu0 %v1403
      %1409 = vmatprep.subr.mxu0 0.0
      %1410 = vmatpush1.msra.mxu0 %v1402
      %1411 = vmatprep.subr.mxu0 0.0
      %1412 = vmatpush1.msra.mxu0 %v1401
      %1413 = vmatprep.subr.mxu0 0.0
      %1414 = vmatpush1.msra.mxu0 %v1400
      %1415 = vmatprep.subr.mxu0 0.0
      %1416 = vmatpush1.msra.mxu0 %v1399
      %1417 = vmatprep.subr.mxu0 0.0
      %1418 = vmatpush1.msra.mxu0 %v1398
      %1419 = vmatprep.subr.mxu0 0.0
      %1420 = vmatpush1.msra.mxu0 %v1397
      %1421 = vmatprep.subr.mxu0 0.0
      %1422 = vmatpush1.msra.mxu0 %v1396
      %1423 = vmatprep.subr.mxu0 0.0
      %1424 = vmatpush1.msra.mxu0 %v1395
      %1425 = vmatprep.subr.mxu0 0.0
      %1426 = vmatpush1.msra.mxu0 %v1394
      %1427 = vmatprep.subr.mxu0 0.0
      %1428 = vmatpush1.msra.mxu0 %v1393
      %1429 = vmatprep.subr.mxu0 0.0
      %1430 = vmatpush1.msra.mxu0 %v1392
      %1431 = vmatprep.subr.mxu0 0.0
      %1432 = vmatpush1.msra.mxu0 %v1391
      %1433 = vmatprep.subr.mxu0 0.0
      %1434 = vmatpush1.msra.mxu0 %v1390
      %1435 = vmatprep.subr.mxu0 0.0
      %1436 = vmatpush1.msra.mxu0 %v1389
      %1437 = vmatprep.subr.mxu0 0.0
      %1438 = vmatpush2.msra.mxu0 0.0
      %1439 = vmatprep.subr.mxu0 0.0
      %1440 = vmatpush2.msra.mxu0 0.0
      %1441 = vmatprep.subr.mxu0 0.0
      %1442 = vmatpush2.msra.mxu0 0.0
      %1443 = vmatprep.subr.mxu0 0.0
      %1444 = vmatpush2.msra.mxu0 0.0
      %1445 = vmatprep.subr.mxu0 0.0
      %1446 = vmatpush2.msra.mxu0 0.0
      %1447 = vmatprep.subr.mxu0 0.0
      %1448 = vmatpush2.msra.mxu0 0.0
      %1449 = vmatprep.subr.mxu0 0.0
      %1450 = vmatpush2.msra.mxu0 0.0
      %1451 = vmatprep.subr.mxu0 0.0
      %1452 = vmatpush2.msra.mxu0 0.0
      %1453 = vmatprep.subr.mxu0 0.0
      %1454 = vmatpush2.msra.mxu0 0.0
      %1455 = vmatprep.subr.mxu0 0.0
      %1456 = vmatpush2.msra.mxu0 0.0
      %1457 = vmatprep.subr.mxu0 0.0
      %1458 = vmatpush2.msra.mxu0 0.0
      %1459 = vmatprep.subr.mxu0 0.0
      %1460 = vmatpush2.msra.mxu0 0.0
      %1461 = vmatprep.subr.mxu0 0.0
      %1462 = vmatpush2.msra.mxu0 0.0
      %1463 = vmatprep.subr.mxu0 0.0
      %1464 = vmatpush2.msra.mxu0 0.0
      %1465 = vmatprep.subr.mxu0 0.0
      %1466 = vmatpush2.msra.mxu0 0.0
      %1467 = vmatprep.subr.mxu0 0.0
      %1468 = vmatpush2.msra.mxu0 0.0
      %1469 = vmatprep.mubr.f32.mxu0 0.0
      %1470 = vmatmul.mubr.f32.gmra.mxu0 %v1356
      %v1471 = vpop.f32.mrf.mxu0
      %v1472 = vadd.f32 0.0, %v1471
      %v1473 = vpop.f32.mrf.mxu0
      %1474 = vmatprep.mubr.f32.mxu0 0.0
      %1475 = vmatmul.mubr.f32.gmra.mxu0 %v1357
      %v1476 = vpop.f32.mrf.mxu0
      %v1477 = vadd.f32 0.0, %v1476
      %v1478 = vpop.f32.mrf.mxu0
      %1479 = vmatprep.mubr.f32.mxu0 0.0
      %1480 = vmatmul.mubr.f32.gmra.mxu0 %v1358
      %v1481 = vpop.f32.mrf.mxu0
      %v1482 = vadd.f32 0.0, %v1481
      %v1483 = vpop.f32.mrf.mxu0
      %1484 = vmatprep.mubr.f32.mxu0 0.0
      %1485 = vmatmul.mubr.f32.gmra.mxu0 %v1359
      %v1486 = vpop.f32.mrf.mxu0
      %v1487 = vadd.f32 0.0, %v1486
      %v1488 = vpop.f32.mrf.mxu0
      %1489 = vmatprep.mubr.f32.mxu0 0.0
      %1490 = vmatmul.mubr.f32.gmra.mxu0 %v1360
      %v1491 = vpop.f32.mrf.mxu0
      %v1492 = vadd.f32 0.0, %v1491
      %v1493 = vpop.f32.mrf.mxu0
      %1494 = vmatprep.mubr.f32.mxu0 0.0
      %1495 = vmatmul.mubr.f32.gmra.mxu0 %v1361
      %v1496 = vpop.f32.mrf.mxu0
      %v1497 = vadd.f32 0.0, %v1496
      %v1498 = vpop.f32.mrf.mxu0
      %1499 = vmatprep.mubr.f32.mxu0 0.0
      %1500 = vmatmul.mubr.f32.gmra.mxu0 %v1362
      %v1501 = vpop.f32.mrf.mxu0
      %v1502 = vadd.f32 0.0, %v1501
      %v1503 = vpop.f32.mrf.mxu0
      %1504 = vmatprep.mubr.f32.mxu0 0.0
      %1505 = vmatmul.mubr.f32.gmra.mxu0 %v1363
      %v1506 = vpop.f32.mrf.mxu0
      %v1507 = vadd.f32 0.0, %v1506
      %v1508 = vpop.f32.mrf.mxu0
      %1509 = vmatprep.mubr.f32.mxu0 0.0
      %1510 = vmatmul.mubr.f32.gmra.mxu0 %v1364
      %v1511 = vpop.f32.mrf.mxu0
      %v1512 = vadd.f32 0.0, %v1511
      %v1513 = vpop.f32.mrf.mxu0
      %1514 = vmatprep.mubr.f32.mxu0 0.0
      %1515 = vmatmul.mubr.f32.gmra.mxu0 %v1365
      %v1516 = vpop.f32.mrf.mxu0
      %v1517 = vadd.f32 0.0, %v1516
      %v1518 = vpop.f32.mrf.mxu0
      %1519 = vmatprep.mubr.f32.mxu0 0.0
      %1520 = vmatmul.mubr.f32.gmra.mxu0 %v1366
      %v1521 = vpop.f32.mrf.mxu0
      %v1522 = vadd.f32 0.0, %v1521
      %v1523 = vpop.f32.mrf.mxu0
      %1524 = vmatprep.mubr.f32.mxu0 0.0
      %1525 = vmatmul.mubr.f32.gmra.mxu0 %v1367
      %v1526 = vpop.f32.mrf.mxu0
      %v1527 = vadd.f32 0.0, %v1526
      %v1528 = vpop.f32.mrf.mxu0
      %1529 = vmatprep.mubr.f32.mxu0 0.0
      %1530 = vmatmul.mubr.f32.gmra.mxu0 %v1368
      %v1531 = vpop.f32.mrf.mxu0
      %v1532 = vadd.f32 0.0, %v1531
      %v1533 = vpop.f32.mrf.mxu0
      %1534 = vmatprep.mubr.f32.mxu0 0.0
      %1535 = vmatmul.mubr.f32.gmra.mxu0 %v1369
      %v1536 = vpop.f32.mrf.mxu0
      %v1537 = vadd.f32 0.0, %v1536
      %v1538 = vpop.f32.mrf.mxu0
      %1539 = vmatprep.mubr.f32.mxu0 0.0
      %1540 = vmatmul.mubr.f32.gmra.mxu0 %v1370
      %v1541 = vpop.f32.mrf.mxu0
      %v1542 = vadd.f32 0.0, %v1541
      %v1543 = vpop.f32.mrf.mxu0
      %1544 = vmatprep.mubr.f32.mxu0 0.0
      %1545 = vmatmul.mubr.f32.gmra.mxu0 %v1371
      %v1546 = vpop.f32.mrf.mxu0
      %v1547 = vadd.f32 0.0, %v1546
      %v1548 = vpop.f32.mrf.mxu0
      %1549 = vmatprep.mubr.f32.mxu0 0.0
      %1550 = vmatmul.mubr.f32.gmra.mxu0 %v1372
      %v1551 = vpop.f32.mrf.mxu0
      %v1552 = vadd.f32 0.0, %v1551
      %v1553 = vpop.f32.mrf.mxu0
      %1554 = vmatprep.mubr.f32.mxu0 0.0
      %1555 = vmatmul.mubr.f32.gmra.mxu0 %v1373
      %v1556 = vpop.f32.mrf.mxu0
      %v1557 = vadd.f32 0.0, %v1556
      %v1558 = vpop.f32.mrf.mxu0
      %1559 = vmatprep.mubr.f32.mxu0 0.0
      %1560 = vmatmul.mubr.f32.gmra.mxu0 %v1374
      %v1561 = vpop.f32.mrf.mxu0
      %v1562 = vadd.f32 0.0, %v1561
      %v1563 = vpop.f32.mrf.mxu0
      %1564 = vmatprep.mubr.f32.mxu0 0.0
      %1565 = vmatmul.mubr.f32.gmra.mxu0 %v1375
      %v1566 = vpop.f32.mrf.mxu0
      %v1567 = vadd.f32 0.0, %v1566
      %v1568 = vpop.f32.mrf.mxu0
      %1569 = vmatprep.mubr.f32.mxu0 0.0
      %1570 = vmatmul.mubr.f32.gmra.mxu0 %v1376
      %v1571 = vpop.f32.mrf.mxu0
      %v1572 = vadd.f32 0.0, %v1571
      %v1573 = vpop.f32.mrf.mxu0
      %1574 = vmatprep.mubr.f32.mxu0 0.0
      %1575 = vmatmul.mubr.f32.gmra.mxu0 %v1377
      %v1576 = vpop.f32.mrf.mxu0
      %v1577 = vadd.f32 0.0, %v1576
      %v1578 = vpop.f32.mrf.mxu0
      %1579 = vmatprep.mubr.f32.mxu0 0.0
      %1580 = vmatmul.mubr.f32.gmra.mxu0 %v1378
      %v1581 = vpop.f32.mrf.mxu0
      %v1582 = vadd.f32 0.0, %v1581
      %v1583 = vpop.f32.mrf.mxu0
      %1584 = vmatprep.mubr.f32.mxu0 0.0
      %1585 = vmatmul.mubr.f32.gmra.mxu0 %v1379
      %v1586 = vpop.f32.mrf.mxu0
      %v1587 = vadd.f32 0.0, %v1586
      %v1588 = vpop.f32.mrf.mxu0
      %1589 = vmatprep.mubr.f32.mxu0 0.0
      %1590 = vmatmul.mubr.f32.gmra.mxu0 %v1380
      %v1591 = vpop.f32.mrf.mxu0
      %v1592 = vadd.f32 0.0, %v1591
      %v1593 = vpop.f32.mrf.mxu0
      %1594 = vmatprep.mubr.f32.mxu0 0.0
      %1595 = vmatmul.mubr.f32.gmra.mxu0 %v1381
      %v1596 = vpop.f32.mrf.mxu0
      %v1597 = vadd.f32 0.0, %v1596
      %v1598 = vpop.f32.mrf.mxu0
      %1599 = vmatprep.mubr.f32.mxu0 0.0
      %1600 = vmatmul.mubr.f32.gmra.mxu0 %v1382
      %v1601 = vpop.f32.mrf.mxu0
      %v1602 = vadd.f32 0.0, %v1601
      %v1603 = vpop.f32.mrf.mxu0
      %1604 = vmatprep.mubr.f32.mxu0 0.0
      %1605 = vmatmul.mubr.f32.gmra.mxu0 %v1383
      %v1606 = vpop.f32.mrf.mxu0
      %v1607 = vadd.f32 0.0, %v1606
      %v1608 = vpop.f32.mrf.mxu0
      %1609 = vmatprep.mubr.f32.mxu0 0.0
      %1610 = vmatmul.mubr.f32.gmra.mxu0 %v1384
      %v1611 = vpop.f32.mrf.mxu0
      %v1612 = vadd.f32 0.0, %v1611
      %v1613 = vpop.f32.mrf.mxu0
      %1614 = vmatprep.mubr.f32.mxu0 0.0
      %1615 = vmatmul.mubr.f32.gmra.mxu0 %v1385
      %v1616 = vpop.f32.mrf.mxu0
      %v1617 = vadd.f32 0.0, %v1616
      %v1618 = vpop.f32.mrf.mxu0
      %1619 = vmatprep.mubr.f32.mxu0 0.0
      %1620 = vmatmul.mubr.f32.gmra.mxu0 %v1386
      %v1621 = vpop.f32.mrf.mxu0
      %v1622 = vadd.f32 0.0, %v1621
      %v1623 = vpop.f32.mrf.mxu0
      %1624 = vmatprep.mubr.f32.mxu0 0.0
      %1625 = vmatmul.mubr.f32.gmra.mxu0 %v1387
      %v1626 = vpop.f32.mrf.mxu0
      %v1627 = vadd.f32 0.0, %v1626
      %v1628 = vpop.f32.mrf.mxu0
      %1629 = vdwg.mxu0
      %v1630 = vadd.f32 %v1324, %v1472
      %v1631 = vadd.f32 %v1325, %v1477
      %v1632 = vadd.f32 %v1326, %v1482
      %v1633 = vadd.f32 %v1327, %v1487
      %v1634 = vadd.f32 %v1328, %v1492
      %v1635 = vadd.f32 %v1329, %v1497
      %v1636 = vadd.f32 %v1330, %v1502
      %v1637 = vadd.f32 %v1331, %v1507
      %v1638 = vadd.f32 %v1332, %v1512
      %v1639 = vadd.f32 %v1333, %v1517
      %v1640 = vadd.f32 %v1334, %v1522
      %v1641 = vadd.f32 %v1335, %v1527
      %v1642 = vadd.f32 %v1336, %v1532
      %v1643 = vadd.f32 %v1337, %v1537
      %v1644 = vadd.f32 %v1338, %v1542
      %v1645 = vadd.f32 %v1339, %v1547
      %v1646 = vadd.f32 %v1340, %v1552
      %v1647 = vadd.f32 %v1341, %v1557
      %v1648 = vadd.f32 %v1342, %v1562
      %v1649 = vadd.f32 %v1343, %v1567
      %v1650 = vadd.f32 %v1344, %v1572
      %v1651 = vadd.f32 %v1345, %v1577
      %v1652 = vadd.f32 %v1346, %v1582
      %v1653 = vadd.f32 %v1347, %v1587
      %v1654 = vadd.f32 %v1348, %v1592
      %v1655 = vadd.f32 %v1349, %v1597
      %v1656 = vadd.f32 %v1350, %v1602
      %v1657 = vadd.f32 %v1351, %v1607
      %v1658 = vadd.f32 %v1352, %v1612
      %v1659 = vadd.f32 %v1353, %v1617
      %v1660 = vadd.f32 %v1354, %v1622
      %v1661 = vadd.f32 %v1355, %v1627
      %v1662 = vld [vmem:[%s1049 + $0x2] sm:$0xff]
      %v1663 = vld [vmem:[%s1049 + $0xa] sm:$0xff]
      %v1664 = vld [vmem:[%s1049 + $0x1a] sm:$0xff]
      %v1665 = vld [vmem:[%s1049 + $0x22] sm:$0xff]
      %v1666 = vld [vmem:[%s1049 + $0x32] sm:$0xff]
      %v1667 = vld [vmem:[%s1049 + $0x3a] sm:$0xff]
      %v1668 = vld [vmem:[%s1049 + $0x4a] sm:$0xff]
      %v1669 = vld [vmem:[%s1049 + $0x52] sm:$0xff]
      %v1670 = vld [vmem:[%s1049 + $0x62] sm:$0xff]
      %v1671 = vld [vmem:[%s1049 + $0x6a] sm:$0xff]
      %v1672 = vld [vmem:[%s1049 + $0x7a] sm:$0xff]
      %v1673 = vld [vmem:[%s1049 + $0x82] sm:$0xff]
      %v1674 = vld [vmem:[%s1049 + $0x92] sm:$0xff]
      %v1675 = vld [vmem:[%s1049 + $0x9a] sm:$0xff]
      %v1676 = vld [vmem:[%s1049 + $0xaa] sm:$0xff]
      %v1677 = vld [vmem:[%s1049 + $0xb2] sm:$0xff]
      %v1678 = vld [vmem:[%s1049 + $0xc2] sm:$0xff]
      %v1679 = vld [vmem:[%s1049 + $0xca] sm:$0xff]
      %v1680 = vld [vmem:[%s1049 + $0xda] sm:$0xff]
      %v1681 = vld [vmem:[%s1049 + $0xe2] sm:$0xff]
      %v1682 = vld [vmem:[%s1049 + $0xf2] sm:$0xff]
      %v1683 = vld [vmem:[%s1049 + $0xfa] sm:$0xff]
      %v1684 = vld [vmem:[%s1049 + $0x10a] sm:$0xff]
      %v1685 = vld [vmem:[%s1049 + $0x112] sm:$0xff]
      %v1686 = vld [vmem:[%s1049 + $0x122] sm:$0xff]
      %v1687 = vld [vmem:[%s1049 + $0x12a] sm:$0xff]
      %v1688 = vld [vmem:[%s1049 + $0x13a] sm:$0xff]
      %v1689 = vld [vmem:[%s1049 + $0x142] sm:$0xff]
      %v1690 = vld [vmem:[%s1049 + $0x152] sm:$0xff]
      %v1691 = vld [vmem:[%s1049 + $0x15a] sm:$0xff]
      %v1692 = vld [vmem:[%s1049 + $0x16a] sm:$0xff]
      %v1693 = vld [vmem:[%s1049 + $0x172] sm:$0xff]
      %s1694 = scalar_lea.vmem %s1, 640
      %v1695 = vld [vmem:[%s1694] sm:$0xff]
      %v1696 = vld [vmem:[%s1694 + $0x8] sm:$0xff]
      %v1697 = vld [vmem:[%s1694 + $0x10] sm:$0xff]
      %v1698 = vld [vmem:[%s1694 + $0x18] sm:$0xff]
      %v1699 = vld [vmem:[%s1694 + $0x20] sm:$0xff]
      %v1700 = vld [vmem:[%s1694 + $0x28] sm:$0xff]
      %v1701 = vld [vmem:[%s1694 + $0x30] sm:$0xff]
      %v1702 = vld [vmem:[%s1694 + $0x38] sm:$0xff]
      %v1703 = vld [vmem:[%s1694 + $0x40] sm:$0xff]
      %v1704 = vld [vmem:[%s1694 + $0x48] sm:$0xff]
      %v1705 = vld [vmem:[%s1694 + $0x50] sm:$0xff]
      %v1706 = vld [vmem:[%s1694 + $0x58] sm:$0xff]
      %v1707 = vld [vmem:[%s1694 + $0x60] sm:$0xff]
      %v1708 = vld [vmem:[%s1694 + $0x68] sm:$0xff]
      %v1709 = vld [vmem:[%s1694 + $0x70] sm:$0xff]
      %v1710 = vld [vmem:[%s1694 + $0x78] sm:$0xff]
      %1711 = vmatprep.subr.mxu0 0.0
      %1712 = vmatpush1.msra.mxu0 %v1710
      %1713 = vmatprep.subr.mxu0 0.0
      %1714 = vmatpush1.msra.mxu0 %v1709
      %1715 = vmatprep.subr.mxu0 0.0
      %1716 = vmatpush1.msra.mxu0 %v1708
      %1717 = vmatprep.subr.mxu0 0.0
      %1718 = vmatpush1.msra.mxu0 %v1707
      %1719 = vmatprep.subr.mxu0 0.0
      %1720 = vmatpush1.msra.mxu0 %v1706
      %1721 = vmatprep.subr.mxu0 0.0
      %1722 = vmatpush1.msra.mxu0 %v1705
      %1723 = vmatprep.subr.mxu0 0.0
      %1724 = vmatpush1.msra.mxu0 %v1704
      %1725 = vmatprep.subr.mxu0 0.0
      %1726 = vmatpush1.msra.mxu0 %v1703
      %1727 = vmatprep.subr.mxu0 0.0
      %1728 = vmatpush1.msra.mxu0 %v1702
      %1729 = vmatprep.subr.mxu0 0.0
      %1730 = vmatpush1.msra.mxu0 %v1701
      %1731 = vmatprep.subr.mxu0 0.0
      %1732 = vmatpush1.msra.mxu0 %v1700
      %1733 = vmatprep.subr.mxu0 0.0
      %1734 = vmatpush1.msra.mxu0 %v1699
      %1735 = vmatprep.subr.mxu0 0.0
      %1736 = vmatpush1.msra.mxu0 %v1698
      %1737 = vmatprep.subr.mxu0 0.0
      %1738 = vmatpush1.msra.mxu0 %v1697
      %1739 = vmatprep.subr.mxu0 0.0
      %1740 = vmatpush1.msra.mxu0 %v1696
      %1741 = vmatprep.subr.mxu0 0.0
      %1742 = vmatpush1.msra.mxu0 %v1695
      %1743 = vmatprep.subr.mxu0 0.0
      %1744 = vmatpush2.msra.mxu0 0.0
      %1745 = vmatprep.subr.mxu0 0.0
      %1746 = vmatpush2.msra.mxu0 0.0
      %1747 = vmatprep.subr.mxu0 0.0
      %1748 = vmatpush2.msra.mxu0 0.0
      %1749 = vmatprep.subr.mxu0 0.0
      %1750 = vmatpush2.msra.mxu0 0.0
      %1751 = vmatprep.subr.mxu0 0.0
      %1752 = vmatpush2.msra.mxu0 0.0
      %1753 = vmatprep.subr.mxu0 0.0
      %1754 = vmatpush2.msra.mxu0 0.0
      %1755 = vmatprep.subr.mxu0 0.0
      %1756 = vmatpush2.msra.mxu0 0.0
      %1757 = vmatprep.subr.mxu0 0.0
      %1758 = vmatpush2.msra.mxu0 0.0
      %1759 = vmatprep.subr.mxu0 0.0
      %1760 = vmatpush2.msra.mxu0 0.0
      %1761 = vmatprep.subr.mxu0 0.0
      %1762 = vmatpush2.msra.mxu0 0.0
      %1763 = vmatprep.subr.mxu0 0.0
      %1764 = vmatpush2.msra.mxu0 0.0
      %1765 = vmatprep.subr.mxu0 0.0
      %1766 = vmatpush2.msra.mxu0 0.0
      %1767 = vmatprep.subr.mxu0 0.0
      %1768 = vmatpush2.msra.mxu0 0.0
      %1769 = vmatprep.subr.mxu0 0.0
      %1770 = vmatpush2.msra.mxu0 0.0
      %1771 = vmatprep.subr.mxu0 0.0
      %1772 = vmatpush2.msra.mxu0 0.0
      %1773 = vmatprep.subr.mxu0 0.0
      %1774 = vmatpush2.msra.mxu0 0.0
      %1775 = vmatprep.mubr.f32.mxu0 0.0
      %1776 = vmatmul.mubr.f32.gmra.mxu0 %v1662
      %v1777 = vpop.f32.mrf.mxu0
      %v1778 = vadd.f32 0.0, %v1777
      %v1779 = vpop.f32.mrf.mxu0
      %1780 = vmatprep.mubr.f32.mxu0 0.0
      %1781 = vmatmul.mubr.f32.gmra.mxu0 %v1663
      %v1782 = vpop.f32.mrf.mxu0
      %v1783 = vadd.f32 0.0, %v1782
      %v1784 = vpop.f32.mrf.mxu0
      %1785 = vmatprep.mubr.f32.mxu0 0.0
      %1786 = vmatmul.mubr.f32.gmra.mxu0 %v1664
      %v1787 = vpop.f32.mrf.mxu0
      %v1788 = vadd.f32 0.0, %v1787
      %v1789 = vpop.f32.mrf.mxu0
      %1790 = vmatprep.mubr.f32.mxu0 0.0
      %1791 = vmatmul.mubr.f32.gmra.mxu0 %v1665
      %v1792 = vpop.f32.mrf.mxu0
      %v1793 = vadd.f32 0.0, %v1792
      %v1794 = vpop.f32.mrf.mxu0
      %1795 = vmatprep.mubr.f32.mxu0 0.0
      %1796 = vmatmul.mubr.f32.gmra.mxu0 %v1666
      %v1797 = vpop.f32.mrf.mxu0
      %v1798 = vadd.f32 0.0, %v1797
      %v1799 = vpop.f32.mrf.mxu0
      %1800 = vmatprep.mubr.f32.mxu0 0.0
      %1801 = vmatmul.mubr.f32.gmra.mxu0 %v1667
      %v1802 = vpop.f32.mrf.mxu0
      %v1803 = vadd.f32 0.0, %v1802
      %v1804 = vpop.f32.mrf.mxu0
      %1805 = vmatprep.mubr.f32.mxu0 0.0
      %1806 = vmatmul.mubr.f32.gmra.mxu0 %v1668
      %v1807 = vpop.f32.mrf.mxu0
      %v1808 = vadd.f32 0.0, %v1807
      %v1809 = vpop.f32.mrf.mxu0
      %1810 = vmatprep.mubr.f32.mxu0 0.0
      %1811 = vmatmul.mubr.f32.gmra.mxu0 %v1669
      %v1812 = vpop.f32.mrf.mxu0
      %v1813 = vadd.f32 0.0, %v1812
      %v1814 = vpop.f32.mrf.mxu0
      %1815 = vmatprep.mubr.f32.mxu0 0.0
      %1816 = vmatmul.mubr.f32.gmra.mxu0 %v1670
      %v1817 = vpop.f32.mrf.mxu0
      %v1818 = vadd.f32 0.0, %v1817
      %v1819 = vpop.f32.mrf.mxu0
      %1820 = vmatprep.mubr.f32.mxu0 0.0
      %1821 = vmatmul.mubr.f32.gmra.mxu0 %v1671
      %v1822 = vpop.f32.mrf.mxu0
      %v1823 = vadd.f32 0.0, %v1822
      %v1824 = vpop.f32.mrf.mxu0
      %1825 = vmatprep.mubr.f32.mxu0 0.0
      %1826 = vmatmul.mubr.f32.gmra.mxu0 %v1672
      %v1827 = vpop.f32.mrf.mxu0
      %v1828 = vadd.f32 0.0, %v1827
      %v1829 = vpop.f32.mrf.mxu0
      %1830 = vmatprep.mubr.f32.mxu0 0.0
      %1831 = vmatmul.mubr.f32.gmra.mxu0 %v1673
      %v1832 = vpop.f32.mrf.mxu0
      %v1833 = vadd.f32 0.0, %v1832
      %v1834 = vpop.f32.mrf.mxu0
      %1835 = vmatprep.mubr.f32.mxu0 0.0
      %1836 = vmatmul.mubr.f32.gmra.mxu0 %v1674
      %v1837 = vpop.f32.mrf.mxu0
      %v1838 = vadd.f32 0.0, %v1837
      %v1839 = vpop.f32.mrf.mxu0
      %1840 = vmatprep.mubr.f32.mxu0 0.0
      %1841 = vmatmul.mubr.f32.gmra.mxu0 %v1675
      %v1842 = vpop.f32.mrf.mxu0
      %v1843 = vadd.f32 0.0, %v1842
      %v1844 = vpop.f32.mrf.mxu0
      %1845 = vmatprep.mubr.f32.mxu0 0.0
      %1846 = vmatmul.mubr.f32.gmra.mxu0 %v1676
      %v1847 = vpop.f32.mrf.mxu0
      %v1848 = vadd.f32 0.0, %v1847
      %v1849 = vpop.f32.mrf.mxu0
      %1850 = vmatprep.mubr.f32.mxu0 0.0
      %1851 = vmatmul.mubr.f32.gmra.mxu0 %v1677
      %v1852 = vpop.f32.mrf.mxu0
      %v1853 = vadd.f32 0.0, %v1852
      %v1854 = vpop.f32.mrf.mxu0
      %1855 = vmatprep.mubr.f32.mxu0 0.0
      %1856 = vmatmul.mubr.f32.gmra.mxu0 %v1678
      %v1857 = vpop.f32.mrf.mxu0
      %v1858 = vadd.f32 0.0, %v1857
      %v1859 = vpop.f32.mrf.mxu0
      %1860 = vmatprep.mubr.f32.mxu0 0.0
      %1861 = vmatmul.mubr.f32.gmra.mxu0 %v1679
      %v1862 = vpop.f32.mrf.mxu0
      %v1863 = vadd.f32 0.0, %v1862
      %v1864 = vpop.f32.mrf.mxu0
      %1865 = vmatprep.mubr.f32.mxu0 0.0
      %1866 = vmatmul.mubr.f32.gmra.mxu0 %v1680
      %v1867 = vpop.f32.mrf.mxu0
      %v1868 = vadd.f32 0.0, %v1867
      %v1869 = vpop.f32.mrf.mxu0
      %1870 = vmatprep.mubr.f32.mxu0 0.0
      %1871 = vmatmul.mubr.f32.gmra.mxu0 %v1681
      %v1872 = vpop.f32.mrf.mxu0
      %v1873 = vadd.f32 0.0, %v1872
      %v1874 = vpop.f32.mrf.mxu0
      %1875 = vmatprep.mubr.f32.mxu0 0.0
      %1876 = vmatmul.mubr.f32.gmra.mxu0 %v1682
      %v1877 = vpop.f32.mrf.mxu0
      %v1878 = vadd.f32 0.0, %v1877
      %v1879 = vpop.f32.mrf.mxu0
      %1880 = vmatprep.mubr.f32.mxu0 0.0
      %1881 = vmatmul.mubr.f32.gmra.mxu0 %v1683
      %v1882 = vpop.f32.mrf.mxu0
      %v1883 = vadd.f32 0.0, %v1882
      %v1884 = vpop.f32.mrf.mxu0
      %1885 = vmatprep.mubr.f32.mxu0 0.0
      %1886 = vmatmul.mubr.f32.gmra.mxu0 %v1684
      %v1887 = vpop.f32.mrf.mxu0
      %v1888 = vadd.f32 0.0, %v1887
      %v1889 = vpop.f32.mrf.mxu0
      %1890 = vmatprep.mubr.f32.mxu0 0.0
      %1891 = vmatmul.mubr.f32.gmra.mxu0 %v1685
      %v1892 = vpop.f32.mrf.mxu0
      %v1893 = vadd.f32 0.0, %v1892
      %v1894 = vpop.f32.mrf.mxu0
      %1895 = vmatprep.mubr.f32.mxu0 0.0
      %1896 = vmatmul.mubr.f32.gmra.mxu0 %v1686
      %v1897 = vpop.f32.mrf.mxu0
      %v1898 = vadd.f32 0.0, %v1897
      %v1899 = vpop.f32.mrf.mxu0
      %1900 = vmatprep.mubr.f32.mxu0 0.0
      %1901 = vmatmul.mubr.f32.gmra.mxu0 %v1687
      %v1902 = vpop.f32.mrf.mxu0
      %v1903 = vadd.f32 0.0, %v1902
      %v1904 = vpop.f32.mrf.mxu0
      %1905 = vmatprep.mubr.f32.mxu0 0.0
      %1906 = vmatmul.mubr.f32.gmra.mxu0 %v1688
      %v1907 = vpop.f32.mrf.mxu0
      %v1908 = vadd.f32 0.0, %v1907
      %v1909 = vpop.f32.mrf.mxu0
      %1910 = vmatprep.mubr.f32.mxu0 0.0
      %1911 = vmatmul.mubr.f32.gmra.mxu0 %v1689
      %v1912 = vpop.f32.mrf.mxu0
      %v1913 = vadd.f32 0.0, %v1912
      %v1914 = vpop.f32.mrf.mxu0
      %1915 = vmatprep.mubr.f32.mxu0 0.0
      %1916 = vmatmul.mubr.f32.gmra.mxu0 %v1690
      %v1917 = vpop.f32.mrf.mxu0
      %v1918 = vadd.f32 0.0, %v1917
      %v1919 = vpop.f32.mrf.mxu0
      %1920 = vmatprep.mubr.f32.mxu0 0.0
      %1921 = vmatmul.mubr.f32.gmra.mxu0 %v1691
      %v1922 = vpop.f32.mrf.mxu0
      %v1923 = vadd.f32 0.0, %v1922
      %v1924 = vpop.f32.mrf.mxu0
      %1925 = vmatprep.mubr.f32.mxu0 0.0
      %1926 = vmatmul.mubr.f32.gmra.mxu0 %v1692
      %v1927 = vpop.f32.mrf.mxu0
      %v1928 = vadd.f32 0.0, %v1927
      %v1929 = vpop.f32.mrf.mxu0
      %1930 = vmatprep.mubr.f32.mxu0 0.0
      %1931 = vmatmul.mubr.f32.gmra.mxu0 %v1693
      %v1932 = vpop.f32.mrf.mxu0
      %v1933 = vadd.f32 0.0, %v1932
      %v1934 = vpop.f32.mrf.mxu0
      %1935 = vdwg.mxu0
      %v1936 = vadd.f32 %v1630, %v1778
      %v1937 = vadd.f32 %v1631, %v1783
      %v1938 = vadd.f32 %v1632, %v1788
      %v1939 = vadd.f32 %v1633, %v1793
      %v1940 = vadd.f32 %v1634, %v1798
      %v1941 = vadd.f32 %v1635, %v1803
      %v1942 = vadd.f32 %v1636, %v1808
      %v1943 = vadd.f32 %v1637, %v1813
      %v1944 = vadd.f32 %v1638, %v1818
      %v1945 = vadd.f32 %v1639, %v1823
      %v1946 = vadd.f32 %v1640, %v1828
      %v1947 = vadd.f32 %v1641, %v1833
      %v1948 = vadd.f32 %v1642, %v1838
      %v1949 = vadd.f32 %v1643, %v1843
      %v1950 = vadd.f32 %v1644, %v1848
      %v1951 = vadd.f32 %v1645, %v1853
      %v1952 = vadd.f32 %v1646, %v1858
      %v1953 = vadd.f32 %v1647, %v1863
      %v1954 = vadd.f32 %v1648, %v1868
      %v1955 = vadd.f32 %v1649, %v1873
      %v1956 = vadd.f32 %v1650, %v1878
      %v1957 = vadd.f32 %v1651, %v1883
      %v1958 = vadd.f32 %v1652, %v1888
      %v1959 = vadd.f32 %v1653, %v1893
      %v1960 = vadd.f32 %v1654, %v1898
      %v1961 = vadd.f32 %v1655, %v1903
      %v1962 = vadd.f32 %v1656, %v1908
      %v1963 = vadd.f32 %v1657, %v1913
      %v1964 = vadd.f32 %v1658, %v1918
      %v1965 = vadd.f32 %v1659, %v1923
      %v1966 = vadd.f32 %v1660, %v1928
      %v1967 = vadd.f32 %v1661, %v1933
      %s1968 = scalar_lea.vmem %s184, 48
      %v1969 = vld [vmem:[%s1968] sm:$0xff]
      %v1970 = vld [vmem:[%s1968 + $0x8] sm:$0xff]
      %v1971 = vld [vmem:[%s1968 + $0x18] sm:$0xff]
      %v1972 = vld [vmem:[%s1968 + $0x20] sm:$0xff]
      %v1973 = vld [vmem:[%s1968 + $0x30] sm:$0xff]
      %v1974 = vld [vmem:[%s1968 + $0x38] sm:$0xff]
      %v1975 = vld [vmem:[%s1968 + $0x48] sm:$0xff]
      %v1976 = vld [vmem:[%s1968 + $0x50] sm:$0xff]
      %v1977 = vld [vmem:[%s1968 + $0x60] sm:$0xff]
      %v1978 = vld [vmem:[%s1968 + $0x68] sm:$0xff]
      %v1979 = vld [vmem:[%s1968 + $0x78] sm:$0xff]
      %v1980 = vld [vmem:[%s1968 + $0x80] sm:$0xff]
      %v1981 = vld [vmem:[%s1968 + $0x90] sm:$0xff]
      %v1982 = vld [vmem:[%s1968 + $0x98] sm:$0xff]
      %v1983 = vld [vmem:[%s1968 + $0xa8] sm:$0xff]
      %v1984 = vld [vmem:[%s1968 + $0xb0] sm:$0xff]
      %v1985 = vld [vmem:[%s1968 + $0xc0] sm:$0xff]
      %v1986 = vld [vmem:[%s1968 + $0xc8] sm:$0xff]
      %v1987 = vld [vmem:[%s1968 + $0xd8] sm:$0xff]
      %v1988 = vld [vmem:[%s1968 + $0xe0] sm:$0xff]
      %v1989 = vld [vmem:[%s1968 + $0xf0] sm:$0xff]
      %v1990 = vld [vmem:[%s1968 + $0xf8] sm:$0xff]
      %v1991 = vld [vmem:[%s1968 + $0x108] sm:$0xff]
      %v1992 = vld [vmem:[%s1968 + $0x110] sm:$0xff]
      %v1993 = vld [vmem:[%s1968 + $0x120] sm:$0xff]
      %v1994 = vld [vmem:[%s1968 + $0x128] sm:$0xff]
      %v1995 = vld [vmem:[%s1968 + $0x138] sm:$0xff]
      %v1996 = vld [vmem:[%s1968 + $0x140] sm:$0xff]
      %v1997 = vld [vmem:[%s1968 + $0x150] sm:$0xff]
      %v1998 = vld [vmem:[%s1968 + $0x158] sm:$0xff]
      %v1999 = vld [vmem:[%s1968 + $0x168] sm:$0xff]
      %v2000 = vld [vmem:[%s1968 + $0x170] sm:$0xff]
      %s2001 = scalar_lea.vmem %s1, 768
      %v2002 = vld [vmem:[%s2001] sm:$0xff]
      %v2003 = vld [vmem:[%s2001 + $0x8] sm:$0xff]
      %v2004 = vld [vmem:[%s2001 + $0x10] sm:$0xff]
      %v2005 = vld [vmem:[%s2001 + $0x18] sm:$0xff]
      %v2006 = vld [vmem:[%s2001 + $0x20] sm:$0xff]
      %v2007 = vld [vmem:[%s2001 + $0x28] sm:$0xff]
      %v2008 = vld [vmem:[%s2001 + $0x30] sm:$0xff]
      %v2009 = vld [vmem:[%s2001 + $0x38] sm:$0xff]
      %v2010 = vld [vmem:[%s2001 + $0x40] sm:$0xff]
      %v2011 = vld [vmem:[%s2001 + $0x48] sm:$0xff]
      %v2012 = vld [vmem:[%s2001 + $0x50] sm:$0xff]
      %v2013 = vld [vmem:[%s2001 + $0x58] sm:$0xff]
      %v2014 = vld [vmem:[%s2001 + $0x60] sm:$0xff]
      %v2015 = vld [vmem:[%s2001 + $0x68] sm:$0xff]
      %v2016 = vld [vmem:[%s2001 + $0x70] sm:$0xff]
      %v2017 = vld [vmem:[%s2001 + $0x78] sm:$0xff]
      %2018 = vmatprep.subr.mxu0 0.0
      %2019 = vmatpush1.msra.mxu0 %v2017
      %2020 = vmatprep.subr.mxu0 0.0
      %2021 = vmatpush1.msra.mxu0 %v2016
      %2022 = vmatprep.subr.mxu0 0.0
      %2023 = vmatpush1.msra.mxu0 %v2015
      %2024 = vmatprep.subr.mxu0 0.0
      %2025 = vmatpush1.msra.mxu0 %v2014
      %2026 = vmatprep.subr.mxu0 0.0
      %2027 = vmatpush1.msra.mxu0 %v2013
      %2028 = vmatprep.subr.mxu0 0.0
      %2029 = vmatpush1.msra.mxu0 %v2012
      %2030 = vmatprep.subr.mxu0 0.0
      %2031 = vmatpush1.msra.mxu0 %v2011
      %2032 = vmatprep.subr.mxu0 0.0
      %2033 = vmatpush1.msra.mxu0 %v2010
      %2034 = vmatprep.subr.mxu0 0.0
      %2035 = vmatpush1.msra.mxu0 %v2009
      %2036 = vmatprep.subr.mxu0 0.0
      %2037 = vmatpush1.msra.mxu0 %v2008
      %2038 = vmatprep.subr.mxu0 0.0
      %2039 = vmatpush1.msra.mxu0 %v2007
      %2040 = vmatprep.subr.mxu0 0.0
      %2041 = vmatpush1.msra.mxu0 %v2006
      %2042 = vmatprep.subr.mxu0 0.0
      %2043 = vmatpush1.msra.mxu0 %v2005
      %2044 = vmatprep.subr.mxu0 0.0
      %2045 = vmatpush1.msra.mxu0 %v2004
      %2046 = vmatprep.subr.mxu0 0.0
      %2047 = vmatpush1.msra.mxu0 %v2003
      %2048 = vmatprep.subr.mxu0 0.0
      %2049 = vmatpush1.msra.mxu0 %v2002
      %2050 = vmatprep.subr.mxu0 0.0
      %2051 = vmatpush2.msra.mxu0 0.0
      %2052 = vmatprep.subr.mxu0 0.0
      %2053 = vmatpush2.msra.mxu0 0.0
      %2054 = vmatprep.subr.mxu0 0.0
      %2055 = vmatpush2.msra.mxu0 0.0
      %2056 = vmatprep.subr.mxu0 0.0
      %2057 = vmatpush2.msra.mxu0 0.0
      %2058 = vmatprep.subr.mxu0 0.0
      %2059 = vmatpush2.msra.mxu0 0.0
      %2060 = vmatprep.subr.mxu0 0.0
      %2061 = vmatpush2.msra.mxu0 0.0
      %2062 = vmatprep.subr.mxu0 0.0
      %2063 = vmatpush2.msra.mxu0 0.0
      %2064 = vmatprep.subr.mxu0 0.0
      %2065 = vmatpush2.msra.mxu0 0.0
      %2066 = vmatprep.subr.mxu0 0.0
      %2067 = vmatpush2.msra.mxu0 0.0
      %2068 = vmatprep.subr.mxu0 0.0
      %2069 = vmatpush2.msra.mxu0 0.0
      %2070 = vmatprep.subr.mxu0 0.0
      %2071 = vmatpush2.msra.mxu0 0.0
      %2072 = vmatprep.subr.mxu0 0.0
      %2073 = vmatpush2.msra.mxu0 0.0
      %2074 = vmatprep.subr.mxu0 0.0
      %2075 = vmatpush2.msra.mxu0 0.0
      %2076 = vmatprep.subr.mxu0 0.0
      %2077 = vmatpush2.msra.mxu0 0.0
      %2078 = vmatprep.subr.mxu0 0.0
      %2079 = vmatpush2.msra.mxu0 0.0
      %2080 = vmatprep.subr.mxu0 0.0
      %2081 = vmatpush2.msra.mxu0 0.0
      %2082 = vmatprep.mubr.f32.mxu0 0.0
      %2083 = vmatmul.mubr.f32.gmra.mxu0 %v1969
      %v2084 = vpop.f32.mrf.mxu0
      %v2085 = vadd.f32 0.0, %v2084
      %v2086 = vpop.f32.mrf.mxu0
      %2087 = vmatprep.mubr.f32.mxu0 0.0
      %2088 = vmatmul.mubr.f32.gmra.mxu0 %v1970
      %v2089 = vpop.f32.mrf.mxu0
      %v2090 = vadd.f32 0.0, %v2089
      %v2091 = vpop.f32.mrf.mxu0
      %2092 = vmatprep.mubr.f32.mxu0 0.0
      %2093 = vmatmul.mubr.f32.gmra.mxu0 %v1971
      %v2094 = vpop.f32.mrf.mxu0
      %v2095 = vadd.f32 0.0, %v2094
      %v2096 = vpop.f32.mrf.mxu0
      %2097 = vmatprep.mubr.f32.mxu0 0.0
      %2098 = vmatmul.mubr.f32.gmra.mxu0 %v1972
      %v2099 = vpop.f32.mrf.mxu0
      %v2100 = vadd.f32 0.0, %v2099
      %v2101 = vpop.f32.mrf.mxu0
      %2102 = vmatprep.mubr.f32.mxu0 0.0
      %2103 = vmatmul.mubr.f32.gmra.mxu0 %v1973
      %v2104 = vpop.f32.mrf.mxu0
      %v2105 = vadd.f32 0.0, %v2104
      %v2106 = vpop.f32.mrf.mxu0
      %2107 = vmatprep.mubr.f32.mxu0 0.0
      %2108 = vmatmul.mubr.f32.gmra.mxu0 %v1974
      %v2109 = vpop.f32.mrf.mxu0
      %v2110 = vadd.f32 0.0, %v2109
      %v2111 = vpop.f32.mrf.mxu0
      %2112 = vmatprep.mubr.f32.mxu0 0.0
      %2113 = vmatmul.mubr.f32.gmra.mxu0 %v1975
      %v2114 = vpop.f32.mrf.mxu0
      %v2115 = vadd.f32 0.0, %v2114
      %v2116 = vpop.f32.mrf.mxu0
      %2117 = vmatprep.mubr.f32.mxu0 0.0
      %2118 = vmatmul.mubr.f32.gmra.mxu0 %v1976
      %v2119 = vpop.f32.mrf.mxu0
      %v2120 = vadd.f32 0.0, %v2119
      %v2121 = vpop.f32.mrf.mxu0
      %2122 = vmatprep.mubr.f32.mxu0 0.0
      %2123 = vmatmul.mubr.f32.gmra.mxu0 %v1977
      %v2124 = vpop.f32.mrf.mxu0
      %v2125 = vadd.f32 0.0, %v2124
      %v2126 = vpop.f32.mrf.mxu0
      %2127 = vmatprep.mubr.f32.mxu0 0.0
      %2128 = vmatmul.mubr.f32.gmra.mxu0 %v1978
      %v2129 = vpop.f32.mrf.mxu0
      %v2130 = vadd.f32 0.0, %v2129
      %v2131 = vpop.f32.mrf.mxu0
      %2132 = vmatprep.mubr.f32.mxu0 0.0
      %2133 = vmatmul.mubr.f32.gmra.mxu0 %v1979
      %v2134 = vpop.f32.mrf.mxu0
      %v2135 = vadd.f32 0.0, %v2134
      %v2136 = vpop.f32.mrf.mxu0
      %2137 = vmatprep.mubr.f32.mxu0 0.0
      %2138 = vmatmul.mubr.f32.gmra.mxu0 %v1980
      %v2139 = vpop.f32.mrf.mxu0
      %v2140 = vadd.f32 0.0, %v2139
      %v2141 = vpop.f32.mrf.mxu0
      %2142 = vmatprep.mubr.f32.mxu0 0.0
      %2143 = vmatmul.mubr.f32.gmra.mxu0 %v1981
      %v2144 = vpop.f32.mrf.mxu0
      %v2145 = vadd.f32 0.0, %v2144
      %v2146 = vpop.f32.mrf.mxu0
      %2147 = vmatprep.mubr.f32.mxu0 0.0
      %2148 = vmatmul.mubr.f32.gmra.mxu0 %v1982
      %v2149 = vpop.f32.mrf.mxu0
      %v2150 = vadd.f32 0.0, %v2149
      %v2151 = vpop.f32.mrf.mxu0
      %2152 = vmatprep.mubr.f32.mxu0 0.0
      %2153 = vmatmul.mubr.f32.gmra.mxu0 %v1983
      %v2154 = vpop.f32.mrf.mxu0
      %v2155 = vadd.f32 0.0, %v2154
      %v2156 = vpop.f32.mrf.mxu0
      %2157 = vmatprep.mubr.f32.mxu0 0.0
      %2158 = vmatmul.mubr.f32.gmra.mxu0 %v1984
      %v2159 = vpop.f32.mrf.mxu0
      %v2160 = vadd.f32 0.0, %v2159
      %v2161 = vpop.f32.mrf.mxu0
      %2162 = vmatprep.mubr.f32.mxu0 0.0
      %2163 = vmatmul.mubr.f32.gmra.mxu0 %v1985
      %v2164 = vpop.f32.mrf.mxu0
      %v2165 = vadd.f32 0.0, %v2164
      %v2166 = vpop.f32.mrf.mxu0
      %2167 = vmatprep.mubr.f32.mxu0 0.0
      %2168 = vmatmul.mubr.f32.gmra.mxu0 %v1986
      %v2169 = vpop.f32.mrf.mxu0
      %v2170 = vadd.f32 0.0, %v2169
      %v2171 = vpop.f32.mrf.mxu0
      %2172 = vmatprep.mubr.f32.mxu0 0.0
      %2173 = vmatmul.mubr.f32.gmra.mxu0 %v1987
      %v2174 = vpop.f32.mrf.mxu0
      %v2175 = vadd.f32 0.0, %v2174
      %v2176 = vpop.f32.mrf.mxu0
      %2177 = vmatprep.mubr.f32.mxu0 0.0
      %2178 = vmatmul.mubr.f32.gmra.mxu0 %v1988
      %v2179 = vpop.f32.mrf.mxu0
      %v2180 = vadd.f32 0.0, %v2179
      %v2181 = vpop.f32.mrf.mxu0
      %2182 = vmatprep.mubr.f32.mxu0 0.0
      %2183 = vmatmul.mubr.f32.gmra.mxu0 %v1989
      %v2184 = vpop.f32.mrf.mxu0
      %v2185 = vadd.f32 0.0, %v2184
      %v2186 = vpop.f32.mrf.mxu0
      %2187 = vmatprep.mubr.f32.mxu0 0.0
      %2188 = vmatmul.mubr.f32.gmra.mxu0 %v1990
      %v2189 = vpop.f32.mrf.mxu0
      %v2190 = vadd.f32 0.0, %v2189
      %v2191 = vpop.f32.mrf.mxu0
      %2192 = vmatprep.mubr.f32.mxu0 0.0
      %2193 = vmatmul.mubr.f32.gmra.mxu0 %v1991
      %v2194 = vpop.f32.mrf.mxu0
      %v2195 = vadd.f32 0.0, %v2194
      %v2196 = vpop.f32.mrf.mxu0
      %2197 = vmatprep.mubr.f32.mxu0 0.0
      %2198 = vmatmul.mubr.f32.gmra.mxu0 %v1992
      %v2199 = vpop.f32.mrf.mxu0
      %v2200 = vadd.f32 0.0, %v2199
      %v2201 = vpop.f32.mrf.mxu0
      %2202 = vmatprep.mubr.f32.mxu0 0.0
      %2203 = vmatmul.mubr.f32.gmra.mxu0 %v1993
      %v2204 = vpop.f32.mrf.mxu0
      %v2205 = vadd.f32 0.0, %v2204
      %v2206 = vpop.f32.mrf.mxu0
      %2207 = vmatprep.mubr.f32.mxu0 0.0
      %2208 = vmatmul.mubr.f32.gmra.mxu0 %v1994
      %v2209 = vpop.f32.mrf.mxu0
      %v2210 = vadd.f32 0.0, %v2209
      %v2211 = vpop.f32.mrf.mxu0
      %2212 = vmatprep.mubr.f32.mxu0 0.0
      %2213 = vmatmul.mubr.f32.gmra.mxu0 %v1995
      %v2214 = vpop.f32.mrf.mxu0
      %v2215 = vadd.f32 0.0, %v2214
      %v2216 = vpop.f32.mrf.mxu0
      %2217 = vmatprep.mubr.f32.mxu0 0.0
      %2218 = vmatmul.mubr.f32.gmra.mxu0 %v1996
      %v2219 = vpop.f32.mrf.mxu0
      %v2220 = vadd.f32 0.0, %v2219
      %v2221 = vpop.f32.mrf.mxu0
      %2222 = vmatprep.mubr.f32.mxu0 0.0
      %2223 = vmatmul.mubr.f32.gmra.mxu0 %v1997
      %v2224 = vpop.f32.mrf.mxu0
      %v2225 = vadd.f32 0.0, %v2224
      %v2226 = vpop.f32.mrf.mxu0
      %2227 = vmatprep.mubr.f32.mxu0 0.0
      %2228 = vmatmul.mubr.f32.gmra.mxu0 %v1998
      %v2229 = vpop.f32.mrf.mxu0
      %v2230 = vadd.f32 0.0, %v2229
      %v2231 = vpop.f32.mrf.mxu0
      %2232 = vmatprep.mubr.f32.mxu0 0.0
      %2233 = vmatmul.mubr.f32.gmra.mxu0 %v1999
      %v2234 = vpop.f32.mrf.mxu0
      %v2235 = vadd.f32 0.0, %v2234
      %v2236 = vpop.f32.mrf.mxu0
      %2237 = vmatprep.mubr.f32.mxu0 0.0
      %2238 = vmatmul.mubr.f32.gmra.mxu0 %v2000
      %v2239 = vpop.f32.mrf.mxu0
      %v2240 = vadd.f32 0.0, %v2239
      %v2241 = vpop.f32.mrf.mxu0
      %2242 = vdwg.mxu0
      %v2243 = vadd.f32 %v1936, %v2085
      %v2244 = vadd.f32 %v1937, %v2090
      %v2245 = vadd.f32 %v1938, %v2095
      %v2246 = vadd.f32 %v1939, %v2100
      %v2247 = vadd.f32 %v1940, %v2105
      %v2248 = vadd.f32 %v1941, %v2110
      %v2249 = vadd.f32 %v1942, %v2115
      %v2250 = vadd.f32 %v1943, %v2120
      %v2251 = vadd.f32 %v1944, %v2125
      %v2252 = vadd.f32 %v1945, %v2130
      %v2253 = vadd.f32 %v1946, %v2135
      %v2254 = vadd.f32 %v1947, %v2140
      %v2255 = vadd.f32 %v1948, %v2145
      %v2256 = vadd.f32 %v1949, %v2150
      %v2257 = vadd.f32 %v1950, %v2155
      %v2258 = vadd.f32 %v1951, %v2160
      %v2259 = vadd.f32 %v1952, %v2165
      %v2260 = vadd.f32 %v1953, %v2170
      %v2261 = vadd.f32 %v1954, %v2175
      %v2262 = vadd.f32 %v1955, %v2180
      %v2263 = vadd.f32 %v1956, %v2185
      %v2264 = vadd.f32 %v1957, %v2190
      %v2265 = vadd.f32 %v1958, %v2195
      %v2266 = vadd.f32 %v1959, %v2200
      %v2267 = vadd.f32 %v1960, %v2205
      %v2268 = vadd.f32 %v1961, %v2210
      %v2269 = vadd.f32 %v1962, %v2215
      %v2270 = vadd.f32 %v1963, %v2220
      %v2271 = vadd.f32 %v1964, %v2225
      %v2272 = vadd.f32 %v1965, %v2230
      %v2273 = vadd.f32 %v1966, %v2235
      %v2274 = vadd.f32 %v1967, %v2240
      %v2275 = vld [vmem:[%s1968 + $0x1] sm:$0xff]
      %v2276 = vld [vmem:[%s1968 + $0x9] sm:$0xff]
      %v2277 = vld [vmem:[%s1968 + $0x19] sm:$0xff]
      %v2278 = vld [vmem:[%s1968 + $0x21] sm:$0xff]
      %v2279 = vld [vmem:[%s1968 + $0x31] sm:$0xff]
      %v2280 = vld [vmem:[%s1968 + $0x39] sm:$0xff]
      %v2281 = vld [vmem:[%s1968 + $0x49] sm:$0xff]
      %v2282 = vld [vmem:[%s1968 + $0x51] sm:$0xff]
      %v2283 = vld [vmem:[%s1968 + $0x61] sm:$0xff]
      %v2284 = vld [vmem:[%s1968 + $0x69] sm:$0xff]
      %v2285 = vld [vmem:[%s1968 + $0x79] sm:$0xff]
      %v2286 = vld [vmem:[%s1968 + $0x81] sm:$0xff]
      %v2287 = vld [vmem:[%s1968 + $0x91] sm:$0xff]
      %v2288 = vld [vmem:[%s1968 + $0x99] sm:$0xff]
      %v2289 = vld [vmem:[%s1968 + $0xa9] sm:$0xff]
      %v2290 = vld [vmem:[%s1968 + $0xb1] sm:$0xff]
      %v2291 = vld [vmem:[%s1968 + $0xc1] sm:$0xff]
      %v2292 = vld [vmem:[%s1968 + $0xc9] sm:$0xff]
      %v2293 = vld [vmem:[%s1968 + $0xd9] sm:$0xff]
      %v2294 = vld [vmem:[%s1968 + $0xe1] sm:$0xff]
      %v2295 = vld [vmem:[%s1968 + $0xf1] sm:$0xff]
      %v2296 = vld [vmem:[%s1968 + $0xf9] sm:$0xff]
      %v2297 = vld [vmem:[%s1968 + $0x109] sm:$0xff]
      %v2298 = vld [vmem:[%s1968 + $0x111] sm:$0xff]
      %v2299 = vld [vmem:[%s1968 + $0x121] sm:$0xff]
      %v2300 = vld [vmem:[%s1968 + $0x129] sm:$0xff]
      %v2301 = vld [vmem:[%s1968 + $0x139] sm:$0xff]
      %v2302 = vld [vmem:[%s1968 + $0x141] sm:$0xff]
      %v2303 = vld [vmem:[%s1968 + $0x151] sm:$0xff]
      %v2304 = vld [vmem:[%s1968 + $0x159] sm:$0xff]
      %v2305 = vld [vmem:[%s1968 + $0x169] sm:$0xff]
      %v2306 = vld [vmem:[%s1968 + $0x171] sm:$0xff]
      %s2307 = scalar_lea.vmem %s1, 896
      %v2308 = vld [vmem:[%s2307] sm:$0xff]
      %v2309 = vld [vmem:[%s2307 + $0x8] sm:$0xff]
      %v2310 = vld [vmem:[%s2307 + $0x10] sm:$0xff]
      %v2311 = vld [vmem:[%s2307 + $0x18] sm:$0xff]
      %v2312 = vld [vmem:[%s2307 + $0x20] sm:$0xff]
      %v2313 = vld [vmem:[%s2307 + $0x28] sm:$0xff]
      %v2314 = vld [vmem:[%s2307 + $0x30] sm:$0xff]
      %v2315 = vld [vmem:[%s2307 + $0x38] sm:$0xff]
      %v2316 = vld [vmem:[%s2307 + $0x40] sm:$0xff]
      %v2317 = vld [vmem:[%s2307 + $0x48] sm:$0xff]
      %v2318 = vld [vmem:[%s2307 + $0x50] sm:$0xff]
      %v2319 = vld [vmem:[%s2307 + $0x58] sm:$0xff]
      %v2320 = vld [vmem:[%s2307 + $0x60] sm:$0xff]
      %v2321 = vld [vmem:[%s2307 + $0x68] sm:$0xff]
      %v2322 = vld [vmem:[%s2307 + $0x70] sm:$0xff]
      %v2323 = vld [vmem:[%s2307 + $0x78] sm:$0xff]
      %2324 = vmatprep.subr.mxu0 0.0
      %2325 = vmatpush1.msra.mxu0 %v2323
      %2326 = vmatprep.subr.mxu0 0.0
      %2327 = vmatpush1.msra.mxu0 %v2322
      %2328 = vmatprep.subr.mxu0 0.0
      %2329 = vmatpush1.msra.mxu0 %v2321
      %2330 = vmatprep.subr.mxu0 0.0
      %2331 = vmatpush1.msra.mxu0 %v2320
      %2332 = vmatprep.subr.mxu0 0.0
      %2333 = vmatpush1.msra.mxu0 %v2319
      %2334 = vmatprep.subr.mxu0 0.0
      %2335 = vmatpush1.msra.mxu0 %v2318
      %2336 = vmatprep.subr.mxu0 0.0
      %2337 = vmatpush1.msra.mxu0 %v2317
      %2338 = vmatprep.subr.mxu0 0.0
      %2339 = vmatpush1.msra.mxu0 %v2316
      %2340 = vmatprep.subr.mxu0 0.0
      %2341 = vmatpush1.msra.mxu0 %v2315
      %2342 = vmatprep.subr.mxu0 0.0
      %2343 = vmatpush1.msra.mxu0 %v2314
      %2344 = vmatprep.subr.mxu0 0.0
      %2345 = vmatpush1.msra.mxu0 %v2313
      %2346 = vmatprep.subr.mxu0 0.0
      %2347 = vmatpush1.msra.mxu0 %v2312
      %2348 = vmatprep.subr.mxu0 0.0
      %2349 = vmatpush1.msra.mxu0 %v2311
      %2350 = vmatprep.subr.mxu0 0.0
      %2351 = vmatpush1.msra.mxu0 %v2310
      %2352 = vmatprep.subr.mxu0 0.0
      %2353 = vmatpush1.msra.mxu0 %v2309
      %2354 = vmatprep.subr.mxu0 0.0
      %2355 = vmatpush1.msra.mxu0 %v2308
      %2356 = vmatprep.subr.mxu0 0.0
      %2357 = vmatpush2.msra.mxu0 0.0
      %2358 = vmatprep.subr.mxu0 0.0
      %2359 = vmatpush2.msra.mxu0 0.0
      %2360 = vmatprep.subr.mxu0 0.0
      %2361 = vmatpush2.msra.mxu0 0.0
      %2362 = vmatprep.subr.mxu0 0.0
      %2363 = vmatpush2.msra.mxu0 0.0
      %2364 = vmatprep.subr.mxu0 0.0
      %2365 = vmatpush2.msra.mxu0 0.0
      %2366 = vmatprep.subr.mxu0 0.0
      %2367 = vmatpush2.msra.mxu0 0.0
      %2368 = vmatprep.subr.mxu0 0.0
      %2369 = vmatpush2.msra.mxu0 0.0
      %2370 = vmatprep.subr.mxu0 0.0
      %2371 = vmatpush2.msra.mxu0 0.0
      %2372 = vmatprep.subr.mxu0 0.0
      %2373 = vmatpush2.msra.mxu0 0.0
      %2374 = vmatprep.subr.mxu0 0.0
      %2375 = vmatpush2.msra.mxu0 0.0
      %2376 = vmatprep.subr.mxu0 0.0
      %2377 = vmatpush2.msra.mxu0 0.0
      %2378 = vmatprep.subr.mxu0 0.0
      %2379 = vmatpush2.msra.mxu0 0.0
      %2380 = vmatprep.subr.mxu0 0.0
      %2381 = vmatpush2.msra.mxu0 0.0
      %2382 = vmatprep.subr.mxu0 0.0
      %2383 = vmatpush2.msra.mxu0 0.0
      %2384 = vmatprep.subr.mxu0 0.0
      %2385 = vmatpush2.msra.mxu0 0.0
      %2386 = vmatprep.subr.mxu0 0.0
      %2387 = vmatpush2.msra.mxu0 0.0
      %2388 = vmatprep.mubr.f32.mxu0 0.0
      %2389 = vmatmul.mubr.f32.gmra.mxu0 %v2275
      %v2390 = vpop.f32.mrf.mxu0
      %v2391 = vadd.f32 0.0, %v2390
      %v2392 = vpop.f32.mrf.mxu0
      %2393 = vmatprep.mubr.f32.mxu0 0.0
      %2394 = vmatmul.mubr.f32.gmra.mxu0 %v2276
      %v2395 = vpop.f32.mrf.mxu0
      %v2396 = vadd.f32 0.0, %v2395
      %v2397 = vpop.f32.mrf.mxu0
      %2398 = vmatprep.mubr.f32.mxu0 0.0
      %2399 = vmatmul.mubr.f32.gmra.mxu0 %v2277
      %v2400 = vpop.f32.mrf.mxu0
      %v2401 = vadd.f32 0.0, %v2400
      %v2402 = vpop.f32.mrf.mxu0
      %2403 = vmatprep.mubr.f32.mxu0 0.0
      %2404 = vmatmul.mubr.f32.gmra.mxu0 %v2278
      %v2405 = vpop.f32.mrf.mxu0
      %v2406 = vadd.f32 0.0, %v2405
      %v2407 = vpop.f32.mrf.mxu0
      %2408 = vmatprep.mubr.f32.mxu0 0.0
      %2409 = vmatmul.mubr.f32.gmra.mxu0 %v2279
      %v2410 = vpop.f32.mrf.mxu0
      %v2411 = vadd.f32 0.0, %v2410
      %v2412 = vpop.f32.mrf.mxu0
      %2413 = vmatprep.mubr.f32.mxu0 0.0
      %2414 = vmatmul.mubr.f32.gmra.mxu0 %v2280
      %v2415 = vpop.f32.mrf.mxu0
      %v2416 = vadd.f32 0.0, %v2415
      %v2417 = vpop.f32.mrf.mxu0
      %2418 = vmatprep.mubr.f32.mxu0 0.0
      %2419 = vmatmul.mubr.f32.gmra.mxu0 %v2281
      %v2420 = vpop.f32.mrf.mxu0
      %v2421 = vadd.f32 0.0, %v2420
      %v2422 = vpop.f32.mrf.mxu0
      %2423 = vmatprep.mubr.f32.mxu0 0.0
      %2424 = vmatmul.mubr.f32.gmra.mxu0 %v2282
      %v2425 = vpop.f32.mrf.mxu0
      %v2426 = vadd.f32 0.0, %v2425
      %v2427 = vpop.f32.mrf.mxu0
      %2428 = vmatprep.mubr.f32.mxu0 0.0
      %2429 = vmatmul.mubr.f32.gmra.mxu0 %v2283
      %v2430 = vpop.f32.mrf.mxu0
      %v2431 = vadd.f32 0.0, %v2430
      %v2432 = vpop.f32.mrf.mxu0
      %2433 = vmatprep.mubr.f32.mxu0 0.0
      %2434 = vmatmul.mubr.f32.gmra.mxu0 %v2284
      %v2435 = vpop.f32.mrf.mxu0
      %v2436 = vadd.f32 0.0, %v2435
      %v2437 = vpop.f32.mrf.mxu0
      %2438 = vmatprep.mubr.f32.mxu0 0.0
      %2439 = vmatmul.mubr.f32.gmra.mxu0 %v2285
      %v2440 = vpop.f32.mrf.mxu0
      %v2441 = vadd.f32 0.0, %v2440
      %v2442 = vpop.f32.mrf.mxu0
      %2443 = vmatprep.mubr.f32.mxu0 0.0
      %2444 = vmatmul.mubr.f32.gmra.mxu0 %v2286
      %v2445 = vpop.f32.mrf.mxu0
      %v2446 = vadd.f32 0.0, %v2445
      %v2447 = vpop.f32.mrf.mxu0
      %2448 = vmatprep.mubr.f32.mxu0 0.0
      %2449 = vmatmul.mubr.f32.gmra.mxu0 %v2287
      %v2450 = vpop.f32.mrf.mxu0
      %v2451 = vadd.f32 0.0, %v2450
      %v2452 = vpop.f32.mrf.mxu0
      %2453 = vmatprep.mubr.f32.mxu0 0.0
      %2454 = vmatmul.mubr.f32.gmra.mxu0 %v2288
      %v2455 = vpop.f32.mrf.mxu0
      %v2456 = vadd.f32 0.0, %v2455
      %v2457 = vpop.f32.mrf.mxu0
      %2458 = vmatprep.mubr.f32.mxu0 0.0
      %2459 = vmatmul.mubr.f32.gmra.mxu0 %v2289
      %v2460 = vpop.f32.mrf.mxu0
      %v2461 = vadd.f32 0.0, %v2460
      %v2462 = vpop.f32.mrf.mxu0
      %2463 = vmatprep.mubr.f32.mxu0 0.0
      %2464 = vmatmul.mubr.f32.gmra.mxu0 %v2290
      %v2465 = vpop.f32.mrf.mxu0
      %v2466 = vadd.f32 0.0, %v2465
      %v2467 = vpop.f32.mrf.mxu0
      %2468 = vmatprep.mubr.f32.mxu0 0.0
      %2469 = vmatmul.mubr.f32.gmra.mxu0 %v2291
      %v2470 = vpop.f32.mrf.mxu0
      %v2471 = vadd.f32 0.0, %v2470
      %v2472 = vpop.f32.mrf.mxu0
      %2473 = vmatprep.mubr.f32.mxu0 0.0
      %2474 = vmatmul.mubr.f32.gmra.mxu0 %v2292
      %v2475 = vpop.f32.mrf.mxu0
      %v2476 = vadd.f32 0.0, %v2475
      %v2477 = vpop.f32.mrf.mxu0
      %2478 = vmatprep.mubr.f32.mxu0 0.0
      %2479 = vmatmul.mubr.f32.gmra.mxu0 %v2293
      %v2480 = vpop.f32.mrf.mxu0
      %v2481 = vadd.f32 0.0, %v2480
      %v2482 = vpop.f32.mrf.mxu0
      %2483 = vmatprep.mubr.f32.mxu0 0.0
      %2484 = vmatmul.mubr.f32.gmra.mxu0 %v2294
      %v2485 = vpop.f32.mrf.mxu0
      %v2486 = vadd.f32 0.0, %v2485
      %v2487 = vpop.f32.mrf.mxu0
      %2488 = vmatprep.mubr.f32.mxu0 0.0
      %2489 = vmatmul.mubr.f32.gmra.mxu0 %v2295
      %v2490 = vpop.f32.mrf.mxu0
      %v2491 = vadd.f32 0.0, %v2490
      %v2492 = vpop.f32.mrf.mxu0
      %2493 = vmatprep.mubr.f32.mxu0 0.0
      %2494 = vmatmul.mubr.f32.gmra.mxu0 %v2296
      %v2495 = vpop.f32.mrf.mxu0
      %v2496 = vadd.f32 0.0, %v2495
      %v2497 = vpop.f32.mrf.mxu0
      %2498 = vmatprep.mubr.f32.mxu0 0.0
      %2499 = vmatmul.mubr.f32.gmra.mxu0 %v2297
      %v2500 = vpop.f32.mrf.mxu0
      %v2501 = vadd.f32 0.0, %v2500
      %v2502 = vpop.f32.mrf.mxu0
      %2503 = vmatprep.mubr.f32.mxu0 0.0
      %2504 = vmatmul.mubr.f32.gmra.mxu0 %v2298
      %v2505 = vpop.f32.mrf.mxu0
      %v2506 = vadd.f32 0.0, %v2505
      %v2507 = vpop.f32.mrf.mxu0
      %2508 = vmatprep.mubr.f32.mxu0 0.0
      %2509 = vmatmul.mubr.f32.gmra.mxu0 %v2299
      %v2510 = vpop.f32.mrf.mxu0
      %v2511 = vadd.f32 0.0, %v2510
      %v2512 = vpop.f32.mrf.mxu0
      %2513 = vmatprep.mubr.f32.mxu0 0.0
      %2514 = vmatmul.mubr.f32.gmra.mxu0 %v2300
      %v2515 = vpop.f32.mrf.mxu0
      %v2516 = vadd.f32 0.0, %v2515
      %v2517 = vpop.f32.mrf.mxu0
      %2518 = vmatprep.mubr.f32.mxu0 0.0
      %2519 = vmatmul.mubr.f32.gmra.mxu0 %v2301
      %v2520 = vpop.f32.mrf.mxu0
      %v2521 = vadd.f32 0.0, %v2520
      %v2522 = vpop.f32.mrf.mxu0
      %2523 = vmatprep.mubr.f32.mxu0 0.0
      %2524 = vmatmul.mubr.f32.gmra.mxu0 %v2302
      %v2525 = vpop.f32.mrf.mxu0
      %v2526 = vadd.f32 0.0, %v2525
      %v2527 = vpop.f32.mrf.mxu0
      %2528 = vmatprep.mubr.f32.mxu0 0.0
      %2529 = vmatmul.mubr.f32.gmra.mxu0 %v2303
      %v2530 = vpop.f32.mrf.mxu0
      %v2531 = vadd.f32 0.0, %v2530
      %v2532 = vpop.f32.mrf.mxu0
      %2533 = vmatprep.mubr.f32.mxu0 0.0
      %2534 = vmatmul.mubr.f32.gmra.mxu0 %v2304
      %v2535 = vpop.f32.mrf.mxu0
      %v2536 = vadd.f32 0.0, %v2535
      %v2537 = vpop.f32.mrf.mxu0
      %2538 = vmatprep.mubr.f32.mxu0 0.0
      %2539 = vmatmul.mubr.f32.gmra.mxu0 %v2305
      %v2540 = vpop.f32.mrf.mxu0
      %v2541 = vadd.f32 0.0, %v2540
      %v2542 = vpop.f32.mrf.mxu0
      %2543 = vmatprep.mubr.f32.mxu0 0.0
      %2544 = vmatmul.mubr.f32.gmra.mxu0 %v2306
      %v2545 = vpop.f32.mrf.mxu0
      %v2546 = vadd.f32 0.0, %v2545
      %v2547 = vpop.f32.mrf.mxu0
      %2548 = vdwg.mxu0
      %v2549 = vadd.f32 %v2243, %v2391
      %v2550 = vadd.f32 %v2244, %v2396
      %v2551 = vadd.f32 %v2245, %v2401
      %v2552 = vadd.f32 %v2246, %v2406
      %v2553 = vadd.f32 %v2247, %v2411
      %v2554 = vadd.f32 %v2248, %v2416
      %v2555 = vadd.f32 %v2249, %v2421
      %v2556 = vadd.f32 %v2250, %v2426
      %v2557 = vadd.f32 %v2251, %v2431
      %v2558 = vadd.f32 %v2252, %v2436
      %v2559 = vadd.f32 %v2253, %v2441
      %v2560 = vadd.f32 %v2254, %v2446
      %v2561 = vadd.f32 %v2255, %v2451
      %v2562 = vadd.f32 %v2256, %v2456
      %v2563 = vadd.f32 %v2257, %v2461
      %v2564 = vadd.f32 %v2258, %v2466
      %v2565 = vadd.f32 %v2259, %v2471
      %v2566 = vadd.f32 %v2260, %v2476
      %v2567 = vadd.f32 %v2261, %v2481
      %v2568 = vadd.f32 %v2262, %v2486
      %v2569 = vadd.f32 %v2263, %v2491
      %v2570 = vadd.f32 %v2264, %v2496
      %v2571 = vadd.f32 %v2265, %v2501
      %v2572 = vadd.f32 %v2266, %v2506
      %v2573 = vadd.f32 %v2267, %v2511
      %v2574 = vadd.f32 %v2268, %v2516
      %v2575 = vadd.f32 %v2269, %v2521
      %v2576 = vadd.f32 %v2270, %v2526
      %v2577 = vadd.f32 %v2271, %v2531
      %v2578 = vadd.f32 %v2272, %v2536
      %v2579 = vadd.f32 %v2273, %v2541
      %v2580 = vadd.f32 %v2274, %v2546
      %v2581 = vld [vmem:[%s1968 + $0x2] sm:$0xff]
      %v2582 = vld [vmem:[%s1968 + $0xa] sm:$0xff]
      %v2583 = vld [vmem:[%s1968 + $0x1a] sm:$0xff]
      %v2584 = vld [vmem:[%s1968 + $0x22] sm:$0xff]
      %v2585 = vld [vmem:[%s1968 + $0x32] sm:$0xff]
      %v2586 = vld [vmem:[%s1968 + $0x3a] sm:$0xff]
      %v2587 = vld [vmem:[%s1968 + $0x4a] sm:$0xff]
      %v2588 = vld [vmem:[%s1968 + $0x52] sm:$0xff]
      %v2589 = vld [vmem:[%s1968 + $0x62] sm:$0xff]
      %v2590 = vld [vmem:[%s1968 + $0x6a] sm:$0xff]
      %v2591 = vld [vmem:[%s1968 + $0x7a] sm:$0xff]
      %v2592 = vld [vmem:[%s1968 + $0x82] sm:$0xff]
      %v2593 = vld [vmem:[%s1968 + $0x92] sm:$0xff]
      %v2594 = vld [vmem:[%s1968 + $0x9a] sm:$0xff]
      %v2595 = vld [vmem:[%s1968 + $0xaa] sm:$0xff]
      %v2596 = vld [vmem:[%s1968 + $0xb2] sm:$0xff]
      %v2597 = vld [vmem:[%s1968 + $0xc2] sm:$0xff]
      %v2598 = vld [vmem:[%s1968 + $0xca] sm:$0xff]
      %v2599 = vld [vmem:[%s1968 + $0xda] sm:$0xff]
      %v2600 = vld [vmem:[%s1968 + $0xe2] sm:$0xff]
      %v2601 = vld [vmem:[%s1968 + $0xf2] sm:$0xff]
      %v2602 = vld [vmem:[%s1968 + $0xfa] sm:$0xff]
      %v2603 = vld [vmem:[%s1968 + $0x10a] sm:$0xff]
      %v2604 = vld [vmem:[%s1968 + $0x112] sm:$0xff]
      %v2605 = vld [vmem:[%s1968 + $0x122] sm:$0xff]
      %v2606 = vld [vmem:[%s1968 + $0x12a] sm:$0xff]
      %v2607 = vld [vmem:[%s1968 + $0x13a] sm:$0xff]
      %v2608 = vld [vmem:[%s1968 + $0x142] sm:$0xff]
      %v2609 = vld [vmem:[%s1968 + $0x152] sm:$0xff]
      %v2610 = vld [vmem:[%s1968 + $0x15a] sm:$0xff]
      %v2611 = vld [vmem:[%s1968 + $0x16a] sm:$0xff]
      %v2612 = vld [vmem:[%s1968 + $0x172] sm:$0xff]
      %s2613 = scalar_lea.vmem %s1, 1024
      %v2614 = vld [vmem:[%s2613] sm:$0xff]
      %v2615 = vld [vmem:[%s2613 + $0x8] sm:$0xff]
      %v2616 = vld [vmem:[%s2613 + $0x10] sm:$0xff]
      %v2617 = vld [vmem:[%s2613 + $0x18] sm:$0xff]
      %v2618 = vld [vmem:[%s2613 + $0x20] sm:$0xff]
      %v2619 = vld [vmem:[%s2613 + $0x28] sm:$0xff]
      %v2620 = vld [vmem:[%s2613 + $0x30] sm:$0xff]
      %v2621 = vld [vmem:[%s2613 + $0x38] sm:$0xff]
      %v2622 = vld [vmem:[%s2613 + $0x40] sm:$0xff]
      %v2623 = vld [vmem:[%s2613 + $0x48] sm:$0xff]
      %v2624 = vld [vmem:[%s2613 + $0x50] sm:$0xff]
      %v2625 = vld [vmem:[%s2613 + $0x58] sm:$0xff]
      %v2626 = vld [vmem:[%s2613 + $0x60] sm:$0xff]
      %v2627 = vld [vmem:[%s2613 + $0x68] sm:$0xff]
      %v2628 = vld [vmem:[%s2613 + $0x70] sm:$0xff]
      %v2629 = vld [vmem:[%s2613 + $0x78] sm:$0xff]
      %2630 = vmatprep.subr.mxu0 0.0
      %2631 = vmatpush1.msra.mxu0 %v2629
      %2632 = vmatprep.subr.mxu0 0.0
      %2633 = vmatpush1.msra.mxu0 %v2628
      %2634 = vmatprep.subr.mxu0 0.0
      %2635 = vmatpush1.msra.mxu0 %v2627
      %2636 = vmatprep.subr.mxu0 0.0
      %2637 = vmatpush1.msra.mxu0 %v2626
      %2638 = vmatprep.subr.mxu0 0.0
      %2639 = vmatpush1.msra.mxu0 %v2625
      %2640 = vmatprep.subr.mxu0 0.0
      %2641 = vmatpush1.msra.mxu0 %v2624
      %2642 = vmatprep.subr.mxu0 0.0
      %2643 = vmatpush1.msra.mxu0 %v2623
      %2644 = vmatprep.subr.mxu0 0.0
      %2645 = vmatpush1.msra.mxu0 %v2622
      %2646 = vmatprep.subr.mxu0 0.0
      %2647 = vmatpush1.msra.mxu0 %v2621
      %2648 = vmatprep.subr.mxu0 0.0
      %2649 = vmatpush1.msra.mxu0 %v2620
      %2650 = vmatprep.subr.mxu0 0.0
      %2651 = vmatpush1.msra.mxu0 %v2619
      %2652 = vmatprep.subr.mxu0 0.0
      %2653 = vmatpush1.msra.mxu0 %v2618
      %2654 = vmatprep.subr.mxu0 0.0
      %2655 = vmatpush1.msra.mxu0 %v2617
      %2656 = vmatprep.subr.mxu0 0.0
      %2657 = vmatpush1.msra.mxu0 %v2616
      %2658 = vmatprep.subr.mxu0 0.0
      %2659 = vmatpush1.msra.mxu0 %v2615
      %2660 = vmatprep.subr.mxu0 0.0
      %2661 = vmatpush1.msra.mxu0 %v2614
      %2662 = vmatprep.subr.mxu0 0.0
      %2663 = vmatpush2.msra.mxu0 0.0
      %2664 = vmatprep.subr.mxu0 0.0
      %2665 = vmatpush2.msra.mxu0 0.0
      %2666 = vmatprep.subr.mxu0 0.0
      %2667 = vmatpush2.msra.mxu0 0.0
      %2668 = vmatprep.subr.mxu0 0.0
      %2669 = vmatpush2.msra.mxu0 0.0
      %2670 = vmatprep.subr.mxu0 0.0
      %2671 = vmatpush2.msra.mxu0 0.0
      %2672 = vmatprep.subr.mxu0 0.0
      %2673 = vmatpush2.msra.mxu0 0.0
      %2674 = vmatprep.subr.mxu0 0.0
      %2675 = vmatpush2.msra.mxu0 0.0
      %2676 = vmatprep.subr.mxu0 0.0
      %2677 = vmatpush2.msra.mxu0 0.0
      %2678 = vmatprep.subr.mxu0 0.0
      %2679 = vmatpush2.msra.mxu0 0.0
      %2680 = vmatprep.subr.mxu0 0.0
      %2681 = vmatpush2.msra.mxu0 0.0
      %2682 = vmatprep.subr.mxu0 0.0
      %2683 = vmatpush2.msra.mxu0 0.0
      %2684 = vmatprep.subr.mxu0 0.0
      %2685 = vmatpush2.msra.mxu0 0.0
      %2686 = vmatprep.subr.mxu0 0.0
      %2687 = vmatpush2.msra.mxu0 0.0
      %2688 = vmatprep.subr.mxu0 0.0
      %2689 = vmatpush2.msra.mxu0 0.0
      %2690 = vmatprep.subr.mxu0 0.0
      %2691 = vmatpush2.msra.mxu0 0.0
      %2692 = vmatprep.subr.mxu0 0.0
      %2693 = vmatpush2.msra.mxu0 0.0
      %2694 = vmatprep.mubr.f32.mxu0 0.0
      %2695 = vmatmul.mubr.f32.gmra.mxu0 %v2581
      %v2696 = vpop.f32.mrf.mxu0
      %v2697 = vadd.f32 0.0, %v2696
      %v2698 = vpop.f32.mrf.mxu0
      %2699 = vmatprep.mubr.f32.mxu0 0.0
      %2700 = vmatmul.mubr.f32.gmra.mxu0 %v2582
      %v2701 = vpop.f32.mrf.mxu0
      %v2702 = vadd.f32 0.0, %v2701
      %v2703 = vpop.f32.mrf.mxu0
      %2704 = vmatprep.mubr.f32.mxu0 0.0
      %2705 = vmatmul.mubr.f32.gmra.mxu0 %v2583
      %v2706 = vpop.f32.mrf.mxu0
      %v2707 = vadd.f32 0.0, %v2706
      %v2708 = vpop.f32.mrf.mxu0
      %2709 = vmatprep.mubr.f32.mxu0 0.0
      %2710 = vmatmul.mubr.f32.gmra.mxu0 %v2584
      %v2711 = vpop.f32.mrf.mxu0
      %v2712 = vadd.f32 0.0, %v2711
      %v2713 = vpop.f32.mrf.mxu0
      %2714 = vmatprep.mubr.f32.mxu0 0.0
      %2715 = vmatmul.mubr.f32.gmra.mxu0 %v2585
      %v2716 = vpop.f32.mrf.mxu0
      %v2717 = vadd.f32 0.0, %v2716
      %v2718 = vpop.f32.mrf.mxu0
      %2719 = vmatprep.mubr.f32.mxu0 0.0
      %2720 = vmatmul.mubr.f32.gmra.mxu0 %v2586
      %v2721 = vpop.f32.mrf.mxu0
      %v2722 = vadd.f32 0.0, %v2721
      %v2723 = vpop.f32.mrf.mxu0
      %2724 = vmatprep.mubr.f32.mxu0 0.0
      %2725 = vmatmul.mubr.f32.gmra.mxu0 %v2587
      %v2726 = vpop.f32.mrf.mxu0
      %v2727 = vadd.f32 0.0, %v2726
      %v2728 = vpop.f32.mrf.mxu0
      %2729 = vmatprep.mubr.f32.mxu0 0.0
      %2730 = vmatmul.mubr.f32.gmra.mxu0 %v2588
      %v2731 = vpop.f32.mrf.mxu0
      %v2732 = vadd.f32 0.0, %v2731
      %v2733 = vpop.f32.mrf.mxu0
      %2734 = vmatprep.mubr.f32.mxu0 0.0
      %2735 = vmatmul.mubr.f32.gmra.mxu0 %v2589
      %v2736 = vpop.f32.mrf.mxu0
      %v2737 = vadd.f32 0.0, %v2736
      %v2738 = vpop.f32.mrf.mxu0
      %2739 = vmatprep.mubr.f32.mxu0 0.0
      %2740 = vmatmul.mubr.f32.gmra.mxu0 %v2590
      %v2741 = vpop.f32.mrf.mxu0
      %v2742 = vadd.f32 0.0, %v2741
      %v2743 = vpop.f32.mrf.mxu0
      %2744 = vmatprep.mubr.f32.mxu0 0.0
      %2745 = vmatmul.mubr.f32.gmra.mxu0 %v2591
      %v2746 = vpop.f32.mrf.mxu0
      %v2747 = vadd.f32 0.0, %v2746
      %v2748 = vpop.f32.mrf.mxu0
      %2749 = vmatprep.mubr.f32.mxu0 0.0
      %2750 = vmatmul.mubr.f32.gmra.mxu0 %v2592
      %v2751 = vpop.f32.mrf.mxu0
      %v2752 = vadd.f32 0.0, %v2751
      %v2753 = vpop.f32.mrf.mxu0
      %2754 = vmatprep.mubr.f32.mxu0 0.0
      %2755 = vmatmul.mubr.f32.gmra.mxu0 %v2593
      %v2756 = vpop.f32.mrf.mxu0
      %v2757 = vadd.f32 0.0, %v2756
      %v2758 = vpop.f32.mrf.mxu0
      %2759 = vmatprep.mubr.f32.mxu0 0.0
      %2760 = vmatmul.mubr.f32.gmra.mxu0 %v2594
      %v2761 = vpop.f32.mrf.mxu0
      %v2762 = vadd.f32 0.0, %v2761
      %v2763 = vpop.f32.mrf.mxu0
      %2764 = vmatprep.mubr.f32.mxu0 0.0
      %2765 = vmatmul.mubr.f32.gmra.mxu0 %v2595
      %v2766 = vpop.f32.mrf.mxu0
      %v2767 = vadd.f32 0.0, %v2766
      %v2768 = vpop.f32.mrf.mxu0
      %2769 = vmatprep.mubr.f32.mxu0 0.0
      %2770 = vmatmul.mubr.f32.gmra.mxu0 %v2596
      %v2771 = vpop.f32.mrf.mxu0
      %v2772 = vadd.f32 0.0, %v2771
      %v2773 = vpop.f32.mrf.mxu0
      %2774 = vmatprep.mubr.f32.mxu0 0.0
      %2775 = vmatmul.mubr.f32.gmra.mxu0 %v2597
      %v2776 = vpop.f32.mrf.mxu0
      %v2777 = vadd.f32 0.0, %v2776
      %v2778 = vpop.f32.mrf.mxu0
      %2779 = vmatprep.mubr.f32.mxu0 0.0
      %2780 = vmatmul.mubr.f32.gmra.mxu0 %v2598
      %v2781 = vpop.f32.mrf.mxu0
      %v2782 = vadd.f32 0.0, %v2781
      %v2783 = vpop.f32.mrf.mxu0
      %2784 = vmatprep.mubr.f32.mxu0 0.0
      %2785 = vmatmul.mubr.f32.gmra.mxu0 %v2599
      %v2786 = vpop.f32.mrf.mxu0
      %v2787 = vadd.f32 0.0, %v2786
      %v2788 = vpop.f32.mrf.mxu0
      %2789 = vmatprep.mubr.f32.mxu0 0.0
      %2790 = vmatmul.mubr.f32.gmra.mxu0 %v2600
      %v2791 = vpop.f32.mrf.mxu0
      %v2792 = vadd.f32 0.0, %v2791
      %v2793 = vpop.f32.mrf.mxu0
      %2794 = vmatprep.mubr.f32.mxu0 0.0
      %2795 = vmatmul.mubr.f32.gmra.mxu0 %v2601
      %v2796 = vpop.f32.mrf.mxu0
      %v2797 = vadd.f32 0.0, %v2796
      %v2798 = vpop.f32.mrf.mxu0
      %2799 = vmatprep.mubr.f32.mxu0 0.0
      %2800 = vmatmul.mubr.f32.gmra.mxu0 %v2602
      %v2801 = vpop.f32.mrf.mxu0
      %v2802 = vadd.f32 0.0, %v2801
      %v2803 = vpop.f32.mrf.mxu0
      %2804 = vmatprep.mubr.f32.mxu0 0.0
      %2805 = vmatmul.mubr.f32.gmra.mxu0 %v2603
      %v2806 = vpop.f32.mrf.mxu0
      %v2807 = vadd.f32 0.0, %v2806
      %v2808 = vpop.f32.mrf.mxu0
      %2809 = vmatprep.mubr.f32.mxu0 0.0
      %2810 = vmatmul.mubr.f32.gmra.mxu0 %v2604
      %v2811 = vpop.f32.mrf.mxu0
      %v2812 = vadd.f32 0.0, %v2811
      %v2813 = vpop.f32.mrf.mxu0
      %2814 = vmatprep.mubr.f32.mxu0 0.0
      %2815 = vmatmul.mubr.f32.gmra.mxu0 %v2605
      %v2816 = vpop.f32.mrf.mxu0
      %v2817 = vadd.f32 0.0, %v2816
      %v2818 = vpop.f32.mrf.mxu0
      %2819 = vmatprep.mubr.f32.mxu0 0.0
      %2820 = vmatmul.mubr.f32.gmra.mxu0 %v2606
      %v2821 = vpop.f32.mrf.mxu0
      %v2822 = vadd.f32 0.0, %v2821
      %v2823 = vpop.f32.mrf.mxu0
      %2824 = vmatprep.mubr.f32.mxu0 0.0
      %2825 = vmatmul.mubr.f32.gmra.mxu0 %v2607
      %v2826 = vpop.f32.mrf.mxu0
      %v2827 = vadd.f32 0.0, %v2826
      %v2828 = vpop.f32.mrf.mxu0
      %2829 = vmatprep.mubr.f32.mxu0 0.0
      %2830 = vmatmul.mubr.f32.gmra.mxu0 %v2608
      %v2831 = vpop.f32.mrf.mxu0
      %v2832 = vadd.f32 0.0, %v2831
      %v2833 = vpop.f32.mrf.mxu0
      %2834 = vmatprep.mubr.f32.mxu0 0.0
      %2835 = vmatmul.mubr.f32.gmra.mxu0 %v2609
      %v2836 = vpop.f32.mrf.mxu0
      %v2837 = vadd.f32 0.0, %v2836
      %v2838 = vpop.f32.mrf.mxu0
      %2839 = vmatprep.mubr.f32.mxu0 0.0
      %2840 = vmatmul.mubr.f32.gmra.mxu0 %v2610
      %v2841 = vpop.f32.mrf.mxu0
      %v2842 = vadd.f32 0.0, %v2841
      %v2843 = vpop.f32.mrf.mxu0
      %2844 = vmatprep.mubr.f32.mxu0 0.0
      %2845 = vmatmul.mubr.f32.gmra.mxu0 %v2611
      %v2846 = vpop.f32.mrf.mxu0
      %v2847 = vadd.f32 0.0, %v2846
      %v2848 = vpop.f32.mrf.mxu0
      %2849 = vmatprep.mubr.f32.mxu0 0.0
      %2850 = vmatmul.mubr.f32.gmra.mxu0 %v2612
      %v2851 = vpop.f32.mrf.mxu0
      %v2852 = vadd.f32 0.0, %v2851
      %v2853 = vpop.f32.mrf.mxu0
      %2854 = vdwg.mxu0
      %v2855 = vadd.f32 %v2549, %v2697
      %v2856 = vadd.f32 %v2550, %v2702
      %v2857 = vadd.f32 %v2551, %v2707
      %v2858 = vadd.f32 %v2552, %v2712
      %v2859 = vadd.f32 %v2553, %v2717
      %v2860 = vadd.f32 %v2554, %v2722
      %v2861 = vadd.f32 %v2555, %v2727
      %v2862 = vadd.f32 %v2556, %v2732
      %v2863 = vadd.f32 %v2557, %v2737
      %v2864 = vadd.f32 %v2558, %v2742
      %v2865 = vadd.f32 %v2559, %v2747
      %v2866 = vadd.f32 %v2560, %v2752
      %v2867 = vadd.f32 %v2561, %v2757
      %v2868 = vadd.f32 %v2562, %v2762
      %v2869 = vadd.f32 %v2563, %v2767
      %v2870 = vadd.f32 %v2564, %v2772
      %v2871 = vadd.f32 %v2565, %v2777
      %v2872 = vadd.f32 %v2566, %v2782
      %v2873 = vadd.f32 %v2567, %v2787
      %v2874 = vadd.f32 %v2568, %v2792
      %v2875 = vadd.f32 %v2569, %v2797
      %v2876 = vadd.f32 %v2570, %v2802
      %v2877 = vadd.f32 %v2571, %v2807
      %v2878 = vadd.f32 %v2572, %v2812
      %v2879 = vadd.f32 %v2573, %v2817
      %v2880 = vadd.f32 %v2574, %v2822
      %v2881 = vadd.f32 %v2575, %v2827
      %v2882 = vadd.f32 %v2576, %v2832
      %v2883 = vadd.f32 %v2577, %v2837
      %v2884 = vadd.f32 %v2578, %v2842
      %v2885 = vadd.f32 %v2579, %v2847
      %v2886 = vadd.f32 %v2580, %v2852
      %v2887 = vld [vmem:[%s2] sm:$0x1]
      %v2889 = vlaneseq
      %v2890 = vshrl.u32 %v2889, 7
      %v2891 = vsub.s32 0, %v2890
      %v2892 = vrot.slane %v2887, %v2891
      %v2894 = vadd.f32 %v2855, %v2892
      %v2895 = vadd.f32 %v2856, %v2892
      %v2896 = vadd.f32 %v2857, %v2892
      %v2897 = vadd.f32 %v2858, %v2892
      %v2898 = vadd.f32 %v2859, %v2892
      %v2899 = vadd.f32 %v2860, %v2892
      %v2900 = vadd.f32 %v2861, %v2892
      %v2901 = vadd.f32 %v2862, %v2892
      %v2902 = vadd.f32 %v2863, %v2892
      %v2903 = vadd.f32 %v2864, %v2892
      %v2904 = vadd.f32 %v2865, %v2892
      %v2905 = vadd.f32 %v2866, %v2892
      %v2906 = vadd.f32 %v2867, %v2892
      %v2907 = vadd.f32 %v2868, %v2892
      %v2908 = vadd.f32 %v2869, %v2892
      %v2909 = vadd.f32 %v2870, %v2892
      %v2910 = vadd.f32 %v2871, %v2892
      %v2911 = vadd.f32 %v2872, %v2892
      %v2912 = vadd.f32 %v2873, %v2892
      %v2913 = vadd.f32 %v2874, %v2892
      %v2914 = vadd.f32 %v2875, %v2892
      %v2915 = vadd.f32 %v2876, %v2892
      %v2916 = vadd.f32 %v2877, %v2892
      %v2917 = vadd.f32 %v2878, %v2892
      %v2918 = vadd.f32 %v2879, %v2892
      %v2919 = vadd.f32 %v2880, %v2892
      %v2920 = vadd.f32 %v2881, %v2892
      %v2921 = vadd.f32 %v2882, %v2892
      %v2922 = vadd.f32 %v2883, %v2892
      %v2923 = vadd.f32 %v2884, %v2892
      %v2924 = vadd.f32 %v2885, %v2892
      %v2925 = vadd.f32 %v2886, %v2892
      %v2926 = vmax.f32 %v2894, 0.0
      %v2927 = vmax.f32 %v2895, 0.0
      %v2928 = vmax.f32 %v2896, 0.0
      %v2929 = vmax.f32 %v2897, 0.0
      %v2930 = vmax.f32 %v2898, 0.0
      %v2931 = vmax.f32 %v2899, 0.0
      %v2932 = vmax.f32 %v2900, 0.0
      %v2933 = vmax.f32 %v2901, 0.0
      %v2934 = vmax.f32 %v2902, 0.0
      %v2935 = vmax.f32 %v2903, 0.0
      %v2936 = vmax.f32 %v2904, 0.0
      %v2937 = vmax.f32 %v2905, 0.0
      %v2938 = vmax.f32 %v2906, 0.0
      %v2939 = vmax.f32 %v2907, 0.0
      %v2940 = vmax.f32 %v2908, 0.0
      %v2941 = vmax.f32 %v2909, 0.0
      %v2942 = vmax.f32 %v2910, 0.0
      %v2943 = vmax.f32 %v2911, 0.0
      %v2944 = vmax.f32 %v2912, 0.0
      %v2945 = vmax.f32 %v2913, 0.0
      %v2946 = vmax.f32 %v2914, 0.0
      %v2947 = vmax.f32 %v2915, 0.0
      %v2948 = vmax.f32 %v2916, 0.0
      %v2949 = vmax.f32 %v2917, 0.0
      %v2950 = vmax.f32 %v2918, 0.0
      %v2951 = vmax.f32 %v2919, 0.0
      %v2952 = vmax.f32 %v2920, 0.0
      %v2953 = vmax.f32 %v2921, 0.0
      %v2954 = vmax.f32 %v2922, 0.0
      %v2955 = vmax.f32 %v2923, 0.0
      %v2956 = vmax.f32 %v2924, 0.0
      %v2957 = vmax.f32 %v2925, 0.0
      %v2958 = vadd.f32 %v2926, %v1356
      %v2959 = vadd.f32 %v2927, %v1357
      %v2960 = vadd.f32 %v2928, %v1358
      %v2961 = vadd.f32 %v2929, %v1359
      %v2962 = vadd.f32 %v2930, %v1360
      %v2963 = vadd.f32 %v2931, %v1361
      %v2964 = vadd.f32 %v2932, %v1362
      %v2965 = vadd.f32 %v2933, %v1363
      %v2966 = vadd.f32 %v2934, %v1364
      %v2967 = vadd.f32 %v2935, %v1365
      %v2968 = vadd.f32 %v2936, %v1366
      %v2969 = vadd.f32 %v2937, %v1367
      %v2970 = vadd.f32 %v2938, %v1368
      %v2971 = vadd.f32 %v2939, %v1369
      %v2972 = vadd.f32 %v2940, %v1370
      %v2973 = vadd.f32 %v2941, %v1371
      %v2974 = vadd.f32 %v2942, %v1372
      %v2975 = vadd.f32 %v2943, %v1373
      %v2976 = vadd.f32 %v2944, %v1374
      %v2977 = vadd.f32 %v2945, %v1375
      %v2978 = vadd.f32 %v2946, %v1376
      %v2979 = vadd.f32 %v2947, %v1377
      %v2980 = vadd.f32 %v2948, %v1378
      %v2981 = vadd.f32 %v2949, %v1379
      %v2982 = vadd.f32 %v2950, %v1380
      %v2983 = vadd.f32 %v2951, %v1381
      %v2984 = vadd.f32 %v2952, %v1382
      %v2985 = vadd.f32 %v2953, %v1383
      %v2986 = vadd.f32 %v2954, %v1384
      %v2987 = vadd.f32 %v2955, %v1385
      %v2988 = vadd.f32 %v2956, %v1386
      %v2989 = vadd.f32 %v2957, %v1387
      %2990 = vst [vmem:[%s194] sm:$0xff] %v2958
      %2991 = vst [vmem:[%s194 + $0x8] sm:$0xff] %v2959
      %2992 = vst [vmem:[%s194 + $0x10] sm:$0xff] %v2960
      %2993 = vst [vmem:[%s194 + $0x18] sm:$0xff] %v2961
      %2994 = vst [vmem:[%s194 + $0x20] sm:$0xff] %v2962
      %2995 = vst [vmem:[%s194 + $0x28] sm:$0xff] %v2963
      %2996 = vst [vmem:[%s194 + $0x30] sm:$0xff] %v2964
      %2997 = vst [vmem:[%s194 + $0x38] sm:$0xff] %v2965
      %2998 = vst [vmem:[%s194 + $0x40] sm:$0xff] %v2966
      %2999 = vst [vmem:[%s194 + $0x48] sm:$0xff] %v2967
      %3000 = vst [vmem:[%s194 + $0x50] sm:$0xff] %v2968
      %3001 = vst [vmem:[%s194 + $0x58] sm:$0xff] %v2969
      %3002 = vst [vmem:[%s194 + $0x60] sm:$0xff] %v2970
      %3003 = vst [vmem:[%s194 + $0x68] sm:$0xff] %v2971
      %3004 = vst [vmem:[%s194 + $0x70] sm:$0xff] %v2972
      %3005 = vst [vmem:[%s194 + $0x78] sm:$0xff] %v2973
      %3006 = vst [vmem:[%s194 + $0x80] sm:$0xff] %v2974
      %3007 = vst [vmem:[%s194 + $0x88] sm:$0xff] %v2975
      %3008 = vst [vmem:[%s194 + $0x90] sm:$0xff] %v2976
      %3009 = vst [vmem:[%s194 + $0x98] sm:$0xff] %v2977
      %3010 = vst [vmem:[%s194 + $0xa0] sm:$0xff] %v2978
      %3011 = vst [vmem:[%s194 + $0xa8] sm:$0xff] %v2979
      %3012 = vst [vmem:[%s194 + $0xb0] sm:$0xff] %v2980
      %3013 = vst [vmem:[%s194 + $0xb8] sm:$0xff] %v2981
      %3014 = vst [vmem:[%s194 + $0xc0] sm:$0xff] %v2982
      %3015 = vst [vmem:[%s194 + $0xc8] sm:$0xff] %v2983
      %3016 = vst [vmem:[%s194 + $0xd0] sm:$0xff] %v2984
      %3017 = vst [vmem:[%s194 + $0xd8] sm:$0xff] %v2985
      %3018 = vst [vmem:[%s194 + $0xe0] sm:$0xff] %v2986
      %3019 = vst [vmem:[%s194 + $0xe8] sm:$0xff] %v2987
      %3020 = vst [vmem:[%s194 + $0xf0] sm:$0xff] %v2988
      %3021 = vst [vmem:[%s194 + $0xf8] sm:$0xff] %v2989
      %s3022 = smul.u32 16, %s19
      %p3023 = scmp.lt.s32.totalorder %s18, 1
      %s3024 = scalar_select %p3023, %s18, 1
      %p3025 = scmp.lt.s32.totalorder %s3022, 15
      %s3026 = scalar_select %p3025, %s3022, 15
      %s3027 = smul.addr %s3026, 2
      %s3028 = smul.addr %s3024, 32
      %s3029 = sadd.s32 %s3027, %s3028
      %s3030 = smul.addr %s3029, 8
      %s3031 = scalar_lea.vmem %s3, %s3030
      // Predicated region
      $region33: #{res_conv_forward.1} parent=31 // pred_check
        %p3032 = pneg %p114
      $region34: #{res_conv_forward.1} parent=31 // pred_check_branch
        %3034 = sbr.rel (%p3032) target = $region36
      $region35: #{res_conv_forward.1} parent=31 // pred_region
        %s3035 = smul.u32 16, %s19
      $region36: #{res_conv_forward.1} parent=31 // pred_fallthru
        _
    $region32: #{res_conv_forward.1} parent=5 // pred_fallthru
      _
    %p3036 = scmp.le.s32.totalorder 2, %s9
    // Predicated region
    $region37: #{res_conv_forward.1} parent=5 // pred_check
      %p3037 = pneg %p3036
    $region38: #{res_conv_forward.1} parent=5 // pred_check_branch
      %3039 = sbr.rel (%p3037) target = $region40
    $region39: #{res_conv_forward.1} parent=5 // pred_region
      %s3040 = ssub.s32 %s9, 2
      // Predicated region
      $region41: #{res_conv_forward.1} parent=39 // pred_check
        %p3041 = pneg %p120
      $region42: #{res_conv_forward.1} parent=39 // pred_check_branch
        %3043 = sbr.rel (%p3041) target = $region44
      $region43: #{res_conv_forward.1} parent=39 // pred_region
        %s3044 = smul.u32 16, %s21
        %p3045 = scmp.lt.s32.totalorder %s20, 1
        %s3046 = scalar_select %p3045, %s20, 1
        %p3047 = scmp.lt.s32.totalorder %s3044, 15
        %s3048 = scalar_select %p3047, %s3044, 15
        %s3049 = smul.addr %s3048, 2
        %s3050 = smul.addr %s3046, 32
        %s3051 = sadd.s32 %s3049, %s3050
        %s3052 = smul.addr %s3051, 8
        %s3053 = scalar_lea.vmem %s3, %s3052
      $region44: #{res_conv_forward.1} parent=39 // pred_fallthru
        _
    $region40: #{res_conv_forward.1} parent=5 // pred_fallthru
      _
  $region6: #{res_conv_forward.1} parent=0 // loop_footer
    %s13 = sadd.s32 1, %s9
  $region7: #{res_conv_forward.1} parent=0 // loop_footer_branch
    %8 = sbr.rel target = $region3
  $region8: #{res_conv_forward.1} parent=0 // loop_exit
    _

</llo_original>
